<compile_context>
chip_gen: v5e
topology: v5e:2x2
jax: 0.10.0
libtpu: 0.0.40
codegen_flags: <defaults>
</compile_context>

<pallas_src>
import functools

import jax
import jax.numpy as jnp
import numpy as np
from jax.experimental import pallas as pl
from jax.experimental.pallas import tpu as pltpu


def _mcs_dw5x5_kernel(w_ref, x_ref, o_ref, xp_ref, *, H, W, Hc=8):
    """Depthwise 5x5 shifted-MAC on a lane-dense slab.

    w_ref : VMEM (25, Lb)        per-lane tap weights (tap index = ki*5 + kj)
    x_ref : VMEM (H, W, Lb)      unpadded input slab, lanes = fused (n, c)
    o_ref : VMEM (H, W, Lb)      output slab
    xp_ref: VMEM (H+4, W+4, Lb)  scratch: zero-padded copy of the input slab
    """
    Lb = o_ref.shape[-1]

    # Fused zero padding (padding=2): zero the scratch, copy the block into its interior.
    xp_ref[...] = jnp.zeros_like(xp_ref)
    xp_ref[2:2 + H, 2:2 + W, :] = x_ref[...]

    # 25-tap MAC, accumulated in f32 over row chunks so the accumulator stays small.
    for h0 in range(0, H, Hc):
        hs = min(Hc, H - h0)
        acc = jnp.zeros((hs, W, Lb), jnp.float32)
        for ki in range(5):
            for kj in range(5):
                tap = xp_ref[h0 + ki:h0 + ki + hs, kj:kj + W, :].astype(jnp.float32)
                wv = w_ref[ki * 5 + kj, :].astype(jnp.float32).reshape(1, 1, Lb)
                acc = acc + tap * wv
        o_ref[h0:h0 + hs, :, :] = acc.astype(o_ref.dtype)


def _pick_lane_block(L, H, W, itemsize, vmem_budget=24 << 20):
    """Largest lane block that divides L, is a multiple of 128 (or all of L), and fits VMEM."""
    if L <= 512:
        return L
    for cand in (512, 256, 128):
        if L % cand != 0:
            continue
        # double-buffered in+out + padded scratch + weights (double-buffered), per step
        need = itemsize * cand * (4 * H * W + (H + 4) * (W + 4) + 2 * 25)
        if need <= vmem_budget:
            return cand
    # TODO(synk): tile H/W with halo DMAs when a full (H, W, 128) slab cannot fit VMEM.
    return L


def mcs_conv(x, weight):
    """Depthwise 5x5 conv, stride 1, padding 2, groups=C (F.conv2d semantics, no bias).

    x:      (N, C, H, W) float32
    weight: (C, 1, 5, 5) float32
    """
    N, C, H, W = x.shape
    assert weight.shape == (C, 1, 5, 5)
    L = N * C

    # Lane-dense layout: (N, C, H, W) -> (H, W, N*C); lane index l = n*C + c.
    x_t = jnp.transpose(x, (2, 3, 0, 1)).reshape(H, W, L)
    # Per-lane tap weights: (C, 1, 5, 5) -> (25, C) -> tiled over batch -> (25, N*C).
    w_lane = jnp.tile(weight.reshape(C, 25).T, (1, N)).astype(x.dtype)

    Lb = _pick_lane_block(L, H, W, x.dtype.itemsize)
    grid = (L // Lb,)

    out_t = pl.pallas_call(
        functools.partial(_mcs_dw5x5_kernel, H=H, W=W),
        out_shape=jax.ShapeDtypeStruct((H, W, L), x.dtype),
        grid_spec=pltpu.PrefetchScalarGridSpec(
            num_scalar_prefetch=0,
            grid=grid,
            in_specs=[
                # lane-vector weights, resident in VMEM (no per-step SMEM DMA)
                pl.BlockSpec((25, Lb), lambda i: (0, i)),
                # unpadded input slab for this lane block
                pl.BlockSpec((H, W, Lb), lambda i: (0, 0, i)),
            ],
            out_specs=pl.BlockSpec((H, W, Lb), lambda i: (0, 0, i)),
            scratch_shapes=[pltpu.VMEM((H + 4, W + 4, Lb), x.dtype)],
        ),
        compiler_params=pltpu.CompilerParams(
            dimension_semantics=("parallel",)),
    )(w_lane, x_t)

    # Back to NCHW.
    return out_t.reshape(H, W, N, C).transpose(2, 3, 0, 1)


def make_mcs_weights(key, in_planes):
    """Deterministic re-implementation of MCSConv.__init__ weight construction."""
    kw, kb = jax.random.split(key)
    w = jax.random.normal(kw, (in_planes, 1, 5, 5), dtype=jnp.float32)
    central = w[:, 0, 2, 2]                       # (C,)
    summed = w.sum(axis=(1, 2, 3)) - central      # sum of all minus central
    w = w / summed[:, None, None, None]
    w = w.at[:, 0, 2, 2].set(-1.0)
    bias = jax.random.normal(kb, (in_planes,), dtype=jnp.float32)  # unused in forward
    return w, bias


if __name__ == "__main__":
    key = jax.random.PRNGKey(0)
    k_x, k_w = jax.random.split(key)

    N, C, H, W = 2, 4, 16, 16
    x = jax.random.normal(k_x, (N, C, H, W), dtype=jnp.float32)
    weight, _bias = make_mcs_weights(k_w, C)  # bias is a Parameter but never used in forward

    out = jax.block_until_ready(mcs_conv(x, weight))

    # Reference: depthwise conv via lax (groups = C), padding=2.
    ref = jax.lax.conv_general_dilated(
        x, weight,
        window_strides=(1, 1),
        padding=((2, 2), (2, 2)),
        dimension_numbers=("NCHW", "OIHW", "NCHW"),
        feature_group_count=C,
    )
    np.testing.assert_allclose(np.asarray(out), np.asarray(ref), rtol=1e-5, atol=1e-5)

    print("KERNEL_OK")
</pallas_src>

<mosaic_0001>
module attributes {stable_mosaic.version = 11 : i64} {
  func.func @_mcs_dw5x5_kernel(%arg0: i32, %arg1: memref<25x8xf32, #tpu.memory_space<vmem>>, %arg2: memref<16x16x8xf32, #tpu.memory_space<vmem>>, %arg3: memref<16x16x8xf32, #tpu.memory_space<vmem>>, %arg4: memref<20x20x8xf32, #tpu.memory_space<vmem>>) attributes {dimension_semantics = [#tpu.dimension_semantics<parallel>], iteration_bounds = array<i64: 1>, scalar_prefetch = 0 : i64, scratch_operands = 1 : i64, tpu.core_type = #tpu.core_type<tc>, window_params = [{transform_indices = @transform_0, window_bounds = array<i64: 25, 8>}, {transform_indices = @transform_1, window_bounds = array<i64: 16, 16, 8>}, {transform_indices = @transform_2, window_bounds = array<i64: 16, 16, 8>}]} {
    %cst = arith.constant 0.000000e+00 : f32
    %0 = vector.broadcast %cst : f32 to vector<20x20x8xf32>
    %c0 = arith.constant 0 : index
    %c0_0 = arith.constant 0 : index
    %c0_1 = arith.constant 0 : index
    %1 = vector.load %arg4[%c0, %c0_0, %c0_1] : memref<20x20x8xf32, #tpu.memory_space<vmem>>, vector<20x20x8xf32>
    tpu.vector_store %arg4[%c0, %c0_0, %c0_1], %0 {strides = array<i32>} : memref<20x20x8xf32, #tpu.memory_space<vmem>>, vector<20x20x8xf32>,
    %c0_2 = arith.constant 0 : index
    %c0_3 = arith.constant 0 : index
    %c0_4 = arith.constant 0 : index
    %2 = vector.load %arg2[%c0_2, %c0_3, %c0_4] : memref<16x16x8xf32, #tpu.memory_space<vmem>>, vector<16x16x8xf32>
    %c2 = arith.constant 2 : index
    %c2_5 = arith.constant 2 : index
    %c0_6 = arith.constant 0 : index
    %3 = vector.load %arg4[%c2, %c2_5, %c0_6] : memref<20x20x8xf32, #tpu.memory_space<vmem>>, vector<16x16x8xf32>
    tpu.vector_store %arg4[%c2, %c2_5, %c0_6], %2 {strides = array<i32>} : memref<20x20x8xf32, #tpu.memory_space<vmem>>, vector<16x16x8xf32>,
    %cst_7 = arith.constant 0.000000e+00 : f32
    %4 = vector.broadcast %cst_7 : f32 to vector<8x16x8xf32>
    %c0_8 = arith.constant 0 : index
    %c0_9 = arith.constant 0 : index
    %c0_10 = arith.constant 0 : index
    %5 = vector.load %arg4[%c0_8, %c0_9, %c0_10] : memref<20x20x8xf32, #tpu.memory_space<vmem>>, vector<8x16x8xf32>
    %c0_11 = arith.constant 0 : index
    %c0_12 = arith.constant 0 : index
    %6 = vector.load %arg1[%c0_11, %c0_12] : memref<25x8xf32, #tpu.memory_space<vmem>>, vector<1x8xf32>
    %7 = vector.shape_cast %6 : vector<1x8xf32> to vector<8xf32>
    %8 = vector.shape_cast %7 : vector<8xf32> to vector<1x1x8xf32>
    %9 = vector.broadcast %8 : vector<1x1x8xf32> to vector<8x16x8xf32>
    %10 = arith.mulf %5, %9 : vector<8x16x8xf32>
    %11 = arith.addf %4, %10 : vector<8x16x8xf32>
    %c0_13 = arith.constant 0 : index
    %c1 = arith.constant 1 : index
    %c0_14 = arith.constant 0 : index
    %12 = vector.load %arg4[%c0_13, %c1, %c0_14] : memref<20x20x8xf32, #tpu.memory_space<vmem>>, vector<8x16x8xf32>
    %c1_15 = arith.constant 1 : index
    %c0_16 = arith.constant 0 : index
    %13 = vector.load %arg1[%c1_15, %c0_16] : memref<25x8xf32, #tpu.memory_space<vmem>>, vector<1x8xf32>
    %14 = vector.shape_cast %13 : vector<1x8xf32> to vector<8xf32>
    %15 = vector.shape_cast %14 : vector<8xf32> to vector<1x1x8xf32>
    %16 = vector.broadcast %15 : vector<1x1x8xf32> to vector<8x16x8xf32>
    %17 = arith.mulf %12, %16 : vector<8x16x8xf32>
    %18 = arith.addf %11, %17 : vector<8x16x8xf32>
    %c0_17 = arith.constant 0 : index
    %c2_18 = arith.constant 2 : index
    %c0_19 = arith.constant 0 : index
    %19 = vector.load %arg4[%c0_17, %c2_18, %c0_19] : memref<20x20x8xf32, #tpu.memory_space<vmem>>, vector<8x16x8xf32>
    %c2_20 = arith.constant 2 : index
    %c0_21 = arith.constant 0 : index
    %20 = vector.load %arg1[%c2_20, %c0_21] : memref<25x8xf32, #tpu.memory_space<vmem>>, vector<1x8xf32>
    %21 = vector.shape_cast %20 : vector<1x8xf32> to vector<8xf32>
    %22 = vector.shape_cast %21 : vector<8xf32> to vector<1x1x8xf32>
    %23 = vector.broadcast %22 : vector<1x1x8xf32> to vector<8x16x8xf32>
    %24 = arith.mulf %19, %23 : vector<8x16x8xf32>
    %25 = arith.addf %18, %24 : vector<8x16x8xf32>
    %c0_22 = arith.constant 0 : index
    %c3 = arith.constant 3 : index
    %c0_23 = arith.constant 0 : index
    %26 = vector.load %arg4[%c0_22, %c3, %c0_23] : memref<20x20x8xf32, #tpu.memory_space<vmem>>, vector<8x16x8xf32>
    %c3_24 = arith.constant 3 : index
    %c0_25 = arith.constant 0 : index
    %27 = vector.load %arg1[%c3_24, %c0_25] : memref<25x8xf32, #tpu.memory_space<vmem>>, vector<1x8xf32>
    %28 = vector.shape_cast %27 : vector<1x8xf32> to vector<8xf32>
    %29 = vector.shape_cast %28 : vector<8xf32> to vector<1x1x8xf32>
    %30 = vector.broadcast %29 : vector<1x1x8xf32> to vector<8x16x8xf32>
    %31 = arith.mulf %26, %30 : vector<8x16x8xf32>
    %32 = arith.addf %25, %31 : vector<8x16x8xf32>
    %c0_26 = arith.constant 0 : index
    %c4 = arith.constant 4 : index
    %c0_27 = arith.constant 0 : index
    %33 = vector.load %arg4[%c0_26, %c4, %c0_27] : memref<20x20x8xf32, #tpu.memory_space<vmem>>, vector<8x16x8xf32>
    %c4_28 = arith.constant 4 : index
    %c0_29 = arith.constant 0 : index
    %34 = vector.load %arg1[%c4_28, %c0_29] : memref<25x8xf32, #tpu.memory_space<vmem>>, vector<1x8xf32>
    %35 = vector.shape_cast %34 : vector<1x8xf32> to vector<8xf32>
    %36 = vector.shape_cast %35 : vector<8xf32> to vector<1x1x8xf32>
    %37 = vector.broadcast %36 : vector<1x1x8xf32> to vector<8x16x8xf32>
    %38 = arith.mulf %33, %37 : vector<8x16x8xf32>
    %39 = arith.addf %32, %38 : vector<8x16x8xf32>
    %c1_30 = arith.constant 1 : index
    %c0_31 = arith.constant 0 : index
    %c0_32 = arith.constant 0 : index
    %40 = vector.load %arg4[%c1_30, %c0_31, %c0_32] : memref<20x20x8xf32, #tpu.memory_space<vmem>>, vector<8x16x8xf32>
    %c5 = arith.constant 5 : index
    %c0_33 = arith.constant 0 : index
    %41 = vector.load %arg1[%c5, %c0_33] : memref<25x8xf32, #tpu.memory_space<vmem>>, vector<1x8xf32>
    %42 = vector.shape_cast %41 : vector<1x8xf32> to vector<8xf32>
    %43 = vector.shape_cast %42 : vector<8xf32> to vector<1x1x8xf32>
    %44 = vector.broadcast %43 : vector<1x1x8xf32> to vector<8x16x8xf32>
    %45 = arith.mulf %40, %44 : vector<8x16x8xf32>
    %46 = arith.addf %39, %45 : vector<8x16x8xf32>
    %c1_34 = arith.constant 1 : index
    %c1_35 = arith.constant 1 : index
    %c0_36 = arith.constant 0 : index
    %47 = vector.load %arg4[%c1_34, %c1_35, %c0_36] : memref<20x20x8xf32, #tpu.memory_space<vmem>>, vector<8x16x8xf32>
    %c6 = arith.constant 6 : index
    %c0_37 = arith.constant 0 : index
    %48 = vector.load %arg1[%c6, %c0_37] : memref<25x8xf32, #tpu.memory_space<vmem>>, vector<1x8xf32>
    %49 = vector.shape_cast %48 : vector<1x8xf32> to vector<8xf32>
    %50 = vector.shape_cast %49 : vector<8xf32> to vector<1x1x8xf32>
    %51 = vector.broadcast %50 : vector<1x1x8xf32> to vector<8x16x8xf32>
    %52 = arith.mulf %47, %51 : vector<8x16x8xf32>
    %53 = arith.addf %46, %52 : vector<8x16x8xf32>
    %c1_38 = arith.constant 1 : index
    %c2_39 = arith.constant 2 : index
    %c0_40 = arith.constant 0 : index
    %54 = vector.load %arg4[%c1_38, %c2_39, %c0_40] : memref<20x20x8xf32, #tpu.memory_space<vmem>>, vector<8x16x8xf32>
    %c7 = arith.constant 7 : index
    %c0_41 = arith.constant 0 : index
    %55 = vector.load %arg1[%c7, %c0_41] : memref<25x8xf32, #tpu.memory_space<vmem>>, vector<1x8xf32>
    %56 = vector.shape_cast %55 : vector<1x8xf32> to vector<8xf32>
    %57 = vector.shape_cast %56 : vector<8xf32> to vector<1x1x8xf32>
    %58 = vector.broadcast %57 : vector<1x1x8xf32> to vector<8x16x8xf32>
    %59 = arith.mulf %54, %58 : vector<8x16x8xf32>
    %60 = arith.addf %53, %59 : vector<8x16x8xf32>
    %c1_42 = arith.constant 1 : index
    %c3_43 = arith.constant 3 : index
    %c0_44 = arith.constant 0 : index
    %61 = vector.load %arg4[%c1_42, %c3_43, %c0_44] : memref<20x20x8xf32, #tpu.memory_space<vmem>>, vector<8x16x8xf32>
    %c8 = arith.constant 8 : index
    %c0_45 = arith.constant 0 : index
    %62 = vector.load %arg1[%c8, %c0_45] : memref<25x8xf32, #tpu.memory_space<vmem>>, vector<1x8xf32>
    %63 = vector.shape_cast %62 : vector<1x8xf32> to vector<8xf32>
    %64 = vector.shape_cast %63 : vector<8xf32> to vector<1x1x8xf32>
    %65 = vector.broadcast %64 : vector<1x1x8xf32> to vector<8x16x8xf32>
    %66 = arith.mulf %61, %65 : vector<8x16x8xf32>
    %67 = arith.addf %60, %66 : vector<8x16x8xf32>
    %c1_46 = arith.constant 1 : index
    %c4_47 = arith.constant 4 : index
    %c0_48 = arith.constant 0 : index
    %68 = vector.load %arg4[%c1_46, %c4_47, %c0_48] : memref<20x20x8xf32, #tpu.memory_space<vmem>>, vector<8x16x8xf32>
    %c9 = arith.constant 9 : index
    %c0_49 = arith.constant 0 : index
    %69 = vector.load %arg1[%c9, %c0_49] : memref<25x8xf32, #tpu.memory_space<vmem>>, vector<1x8xf32>
    %70 = vector.shape_cast %69 : vector<1x8xf32> to vector<8xf32>
    %71 = vector.shape_cast %70 : vector<8xf32> to vector<1x1x8xf32>
    %72 = vector.broadcast %71 : vector<1x1x8xf32> to vector<8x16x8xf32>
    %73 = arith.mulf %68, %72 : vector<8x16x8xf32>
    %74 = arith.addf %67, %73 : vector<8x16x8xf32>
    %c2_50 = arith.constant 2 : index
    %c0_51 = arith.constant 0 : index
    %c0_52 = arith.constant 0 : index
    %75 = vector.load %arg4[%c2_50, %c0_51, %c0_52] : memref<20x20x8xf32, #tpu.memory_space<vmem>>, vector<8x16x8xf32>
    %c10 = arith.constant 10 : index
    %c0_53 = arith.constant 0 : index
    %76 = vector.load %arg1[%c10, %c0_53] : memref<25x8xf32, #tpu.memory_space<vmem>>, vector<1x8xf32>
    %77 = vector.shape_cast %76 : vector<1x8xf32> to vector<8xf32>
    %78 = vector.shape_cast %77 : vector<8xf32> to vector<1x1x8xf32>
    %79 = vector.broadcast %78 : vector<1x1x8xf32> to vector<8x16x8xf32>
    %80 = arith.mulf %75, %79 : vector<8x16x8xf32>
    %81 = arith.addf %74, %80 : vector<8x16x8xf32>
    %c2_54 = arith.constant 2 : index
    %c1_55 = arith.constant 1 : index
    %c0_56 = arith.constant 0 : index
    %82 = vector.load %arg4[%c2_54, %c1_55, %c0_56] : memref<20x20x8xf32, #tpu.memory_space<vmem>>, vector<8x16x8xf32>
    %c11 = arith.constant 11 : index
    %c0_57 = arith.constant 0 : index
    %83 = vector.load %arg1[%c11, %c0_57] : memref<25x8xf32, #tpu.memory_space<vmem>>, vector<1x8xf32>
    %84 = vector.shape_cast %83 : vector<1x8xf32> to vector<8xf32>
    %85 = vector.shape_cast %84 : vector<8xf32> to vector<1x1x8xf32>
    %86 = vector.broadcast %85 : vector<1x1x8xf32> to vector<8x16x8xf32>
    %87 = arith.mulf %82, %86 : vector<8x16x8xf32>
    %88 = arith.addf %81, %87 : vector<8x16x8xf32>
    %c2_58 = arith.constant 2 : index
    %c2_59 = arith.constant 2 : index
    %c0_60 = arith.constant 0 : index
    %89 = vector.load %arg4[%c2_58, %c2_59, %c0_60] : memref<20x20x8xf32, #tpu.memory_space<vmem>>, vector<8x16x8xf32>
    %c12 = arith.constant 12 : index
    %c0_61 = arith.constant 0 : index
    %90 = vector.load %arg1[%c12, %c0_61] : memref<25x8xf32, #tpu.memory_space<vmem>>, vector<1x8xf32>
    %91 = vector.shape_cast %90 : vector<1x8xf32> to vector<8xf32>
    %92 = vector.shape_cast %91 : vector<8xf32> to vector<1x1x8xf32>
    %93 = vector.broadcast %92 : vector<1x1x8xf32> to vector<8x16x8xf32>
    %94 = arith.mulf %89, %93 : vector<8x16x8xf32>
    %95 = arith.addf %88, %94 : vector<8x16x8xf32>
    %c2_62 = arith.constant 2 : index
    %c3_63 = arith.constant 3 : index
    %c0_64 = arith.constant 0 : index
    %96 = vector.load %arg4[%c2_62, %c3_63, %c0_64] : memref<20x20x8xf32, #tpu.memory_space<vmem>>, vector<8x16x8xf32>
    %c13 = arith.constant 13 : index
    %c0_65 = arith.constant 0 : index
    %97 = vector.load %arg1[%c13, %c0_65] : memref<25x8xf32, #tpu.memory_space<vmem>>, vector<1x8xf32>
    %98 = vector.shape_cast %97 : vector<1x8xf32> to vector<8xf32>
    %99 = vector.shape_cast %98 : vector<8xf32> to vector<1x1x8xf32>
    %100 = vector.broadcast %99 : vector<1x1x8xf32> to vector<8x16x8xf32>
    %101 = arith.mulf %96, %100 : vector<8x16x8xf32>
    %102 = arith.addf %95, %101 : vector<8x16x8xf32>
    %c2_66 = arith.constant 2 : index
    %c4_67 = arith.constant 4 : index
    %c0_68 = arith.constant 0 : index
    %103 = vector.load %arg4[%c2_66, %c4_67, %c0_68] : memref<20x20x8xf32, #tpu.memory_space<vmem>>, vector<8x16x8xf32>
    %c14 = arith.constant 14 : index
    %c0_69 = arith.constant 0 : index
    %104 = vector.load %arg1[%c14, %c0_69] : memref<25x8xf32, #tpu.memory_space<vmem>>, vector<1x8xf32>
    %105 = vector.shape_cast %104 : vector<1x8xf32> to vector<8xf32>
    %106 = vector.shape_cast %105 : vector<8xf32> to vector<1x1x8xf32>
    %107 = vector.broadcast %106 : vector<1x1x8xf32> to vector<8x16x8xf32>
    %108 = arith.mulf %103, %107 : vector<8x16x8xf32>
    %109 = arith.addf %102, %108 : vector<8x16x8xf32>
    %c3_70 = arith.constant 3 : index
    %c0_71 = arith.constant 0 : index
    %c0_72 = arith.constant 0 : index
    %110 = vector.load %arg4[%c3_70, %c0_71, %c0_72] : memref<20x20x8xf32, #tpu.memory_space<vmem>>, vector<8x16x8xf32>
    %c15 = arith.constant 15 : index
    %c0_73 = arith.constant 0 : index
    %111 = vector.load %arg1[%c15, %c0_73] : memref<25x8xf32, #tpu.memory_space<vmem>>, vector<1x8xf32>
    %112 = vector.shape_cast %111 : vector<1x8xf32> to vector<8xf32>
    %113 = vector.shape_cast %112 : vector<8xf32> to vector<1x1x8xf32>
    %114 = vector.broadcast %113 : vector<1x1x8xf32> to vector<8x16x8xf32>
    %115 = arith.mulf %110, %114 : vector<8x16x8xf32>
    %116 = arith.addf %109, %115 : vector<8x16x8xf32>
    %c3_74 = arith.constant 3 : index
    %c1_75 = arith.constant 1 : index
    %c0_76 = arith.constant 0 : index
    %117 = vector.load %arg4[%c3_74, %c1_75, %c0_76] : memref<20x20x8xf32, #tpu.memory_space<vmem>>, vector<8x16x8xf32>
    %c16 = arith.constant 16 : index
    %c0_77 = arith.constant 0 : index
    %118 = vector.load %arg1[%c16, %c0_77] : memref<25x8xf32, #tpu.memory_space<vmem>>, vector<1x8xf32>
    %119 = vector.shape_cast %118 : vector<1x8xf32> to vector<8xf32>
    %120 = vector.shape_cast %119 : vector<8xf32> to vector<1x1x8xf32>
    %121 = vector.broadcast %120 : vector<1x1x8xf32> to vector<8x16x8xf32>
    %122 = arith.mulf %117, %121 : vector<8x16x8xf32>
    %123 = arith.addf %116, %122 : vector<8x16x8xf32>
    %c3_78 = arith.constant 3 : index
    %c2_79 = arith.constant 2 : index
    %c0_80 = arith.constant 0 : index
    %124 = vector.load %arg4[%c3_78, %c2_79, %c0_80] : memref<20x20x8xf32, #tpu.memory_space<vmem>>, vector<8x16x8xf32>
    %c17 = arith.constant 17 : index
    %c0_81 = arith.constant 0 : index
    %125 = vector.load %arg1[%c17, %c0_81] : memref<25x8xf32, #tpu.memory_space<vmem>>, vector<1x8xf32>
    %126 = vector.shape_cast %125 : vector<1x8xf32> to vector<8xf32>
    %127 = vector.shape_cast %126 : vector<8xf32> to vector<1x1x8xf32>
    %128 = vector.broadcast %127 : vector<1x1x8xf32> to vector<8x16x8xf32>
    %129 = arith.mulf %124, %128 : vector<8x16x8xf32>
    %130 = arith.addf %123, %129 : vector<8x16x8xf32>
    %c3_82 = arith.constant 3 : index
    %c3_83 = arith.constant 3 : index
    %c0_84 = arith.constant 0 : index
    %131 = vector.load %arg4[%c3_82, %c3_83, %c0_84] : memref<20x20x8xf32, #tpu.memory_space<vmem>>, vector<8x16x8xf32>
    %c18 = arith.constant 18 : index
    %c0_85 = arith.constant 0 : index
    %132 = vector.load %arg1[%c18, %c0_85] : memref<25x8xf32, #tpu.memory_space<vmem>>, vector<1x8xf32>
    %133 = vector.shape_cast %132 : vector<1x8xf32> to vector<8xf32>
    %134 = vector.shape_cast %133 : vector<8xf32> to vector<1x1x8xf32>
    %135 = vector.broadcast %134 : vector<1x1x8xf32> to vector<8x16x8xf32>
    %136 = arith.mulf %131, %135 : vector<8x16x8xf32>
    %137 = arith.addf %130, %136 : vector<8x16x8xf32>
    %c3_86 = arith.constant 3 : index
    %c4_87 = arith.constant 4 : index
    %c0_88 = arith.constant 0 : index
    %138 = vector.load %arg4[%c3_86, %c4_87, %c0_88] : memref<20x20x8xf32, #tpu.memory_space<vmem>>, vector<8x16x8xf32>
    %c19 = arith.constant 19 : index
    %c0_89 = arith.constant 0 : index
    %139 = vector.load %arg1[%c19, %c0_89] : memref<25x8xf32, #tpu.memory_space<vmem>>, vector<1x8xf32>
    %140 = vector.shape_cast %139 : vector<1x8xf32> to vector<8xf32>
    %141 = vector.shape_cast %140 : vector<8xf32> to vector<1x1x8xf32>
    %142 = vector.broadcast %141 : vector<1x1x8xf32> to vector<8x16x8xf32>
    %143 = arith.mulf %138, %142 : vector<8x16x8xf32>
    %144 = arith.addf %137, %143 : vector<8x16x8xf32>
    %c4_90 = arith.constant 4 : index
    %c0_91 = arith.constant 0 : index
    %c0_92 = arith.constant 0 : index
    %145 = vector.load %arg4[%c4_90, %c0_91, %c0_92] : memref<20x20x8xf32, #tpu.memory_space<vmem>>, vector<8x16x8xf32>
    %c20 = arith.constant 20 : index
    %c0_93 = arith.constant 0 : index
    %146 = vector.load %arg1[%c20, %c0_93] : memref<25x8xf32, #tpu.memory_space<vmem>>, vector<1x8xf32>
    %147 = vector.shape_cast %146 : vector<1x8xf32> to vector<8xf32>
    %148 = vector.shape_cast %147 : vector<8xf32> to vector<1x1x8xf32>
    %149 = vector.broadcast %148 : vector<1x1x8xf32> to vector<8x16x8xf32>
    %150 = arith.mulf %145, %149 : vector<8x16x8xf32>
    %151 = arith.addf %144, %150 : vector<8x16x8xf32>
    %c4_94 = arith.constant 4 : index
    %c1_95 = arith.constant 1 : index
    %c0_96 = arith.constant 0 : index
    %152 = vector.load %arg4[%c4_94, %c1_95, %c0_96] : memref<20x20x8xf32, #tpu.memory_space<vmem>>, vector<8x16x8xf32>
    %c21 = arith.constant 21 : index
    %c0_97 = arith.constant 0 : index
    %153 = vector.load %arg1[%c21, %c0_97] : memref<25x8xf32, #tpu.memory_space<vmem>>, vector<1x8xf32>
    %154 = vector.shape_cast %153 : vector<1x8xf32> to vector<8xf32>
    %155 = vector.shape_cast %154 : vector<8xf32> to vector<1x1x8xf32>
    %156 = vector.broadcast %155 : vector<1x1x8xf32> to vector<8x16x8xf32>
    %157 = arith.mulf %152, %156 : vector<8x16x8xf32>
    %158 = arith.addf %151, %157 : vector<8x16x8xf32>
    %c4_98 = arith.constant 4 : index
    %c2_99 = arith.constant 2 : index
    %c0_100 = arith.constant 0 : index
    %159 = vector.load %arg4[%c4_98, %c2_99, %c0_100] : memref<20x20x8xf32, #tpu.memory_space<vmem>>, vector<8x16x8xf32>
    %c22 = arith.constant 22 : index
    %c0_101 = arith.constant 0 : index
    %160 = vector.load %arg1[%c22, %c0_101] : memref<25x8xf32, #tpu.memory_space<vmem>>, vector<1x8xf32>
    %161 = vector.shape_cast %160 : vector<1x8xf32> to vector<8xf32>
    %162 = vector.shape_cast %161 : vector<8xf32> to vector<1x1x8xf32>
    %163 = vector.broadcast %162 : vector<1x1x8xf32> to vector<8x16x8xf32>
    %164 = arith.mulf %159, %163 : vector<8x16x8xf32>
    %165 = arith.addf %158, %164 : vector<8x16x8xf32>
    %c4_102 = arith.constant 4 : index
    %c3_103 = arith.constant 3 : index
    %c0_104 = arith.constant 0 : index
    %166 = vector.load %arg4[%c4_102, %c3_103, %c0_104] : memref<20x20x8xf32, #tpu.memory_space<vmem>>, vector<8x16x8xf32>
    %c23 = arith.constant 23 : index
    %c0_105 = arith.constant 0 : index
    %167 = vector.load %arg1[%c23, %c0_105] : memref<25x8xf32, #tpu.memory_space<vmem>>, vector<1x8xf32>
    %168 = vector.shape_cast %167 : vector<1x8xf32> to vector<8xf32>
    %169 = vector.shape_cast %168 : vector<8xf32> to vector<1x1x8xf32>
    %170 = vector.broadcast %169 : vector<1x1x8xf32> to vector<8x16x8xf32>
    %171 = arith.mulf %166, %170 : vector<8x16x8xf32>
    %172 = arith.addf %165, %171 : vector<8x16x8xf32>
    %c4_106 = arith.constant 4 : index
    %c4_107 = arith.constant 4 : index
    %c0_108 = arith.constant 0 : index
    %173 = vector.load %arg4[%c4_106, %c4_107, %c0_108] : memref<20x20x8xf32, #tpu.memory_space<vmem>>, vector<8x16x8xf32>
    %c24 = arith.constant 24 : index
    %c0_109 = arith.constant 0 : index
    %174 = vector.load %arg1[%c24, %c0_109] : memref<25x8xf32, #tpu.memory_space<vmem>>, vector<1x8xf32>
    %175 = vector.shape_cast %174 : vector<1x8xf32> to vector<8xf32>
    %176 = vector.shape_cast %175 : vector<8xf32> to vector<1x1x8xf32>
    %177 = vector.broadcast %176 : vector<1x1x8xf32> to vector<8x16x8xf32>
    %178 = arith.mulf %173, %177 : vector<8x16x8xf32>
    %179 = arith.addf %172, %178 : vector<8x16x8xf32>
    %c0_110 = arith.constant 0 : index
    %c0_111 = arith.constant 0 : index
    %c0_112 = arith.constant 0 : index
    %180 = vector.load %arg3[%c0_110, %c0_111, %c0_112] : memref<16x16x8xf32, #tpu.memory_space<vmem>>, vector<8x16x8xf32>
    tpu.vector_store %arg3[%c0_110, %c0_111, %c0_112], %179 {strides = array<i32>} : memref<16x16x8xf32, #tpu.memory_space<vmem>>, vector<8x16x8xf32>,
    %cst_113 = arith.constant 0.000000e+00 : f32
    %181 = vector.broadcast %cst_113 : f32 to vector<8x16x8xf32>
    %c8_114 = arith.constant 8 : index
    %c0_115 = arith.constant 0 : index
    %c0_116 = arith.constant 0 : index
    %182 = vector.load %arg4[%c8_114, %c0_115, %c0_116] : memref<20x20x8xf32, #tpu.memory_space<vmem>>, vector<8x16x8xf32>
    %c0_117 = arith.constant 0 : index
    %c0_118 = arith.constant 0 : index
    %183 = vector.load %arg1[%c0_117, %c0_118] : memref<25x8xf32, #tpu.memory_space<vmem>>, vector<1x8xf32>
    %184 = vector.shape_cast %183 : vector<1x8xf32> to vector<8xf32>
    %185 = vector.shape_cast %184 : vector<8xf32> to vector<1x1x8xf32>
    %186 = vector.broadcast %185 : vector<1x1x8xf32> to vector<8x16x8xf32>
    %187 = arith.mulf %182, %186 : vector<8x16x8xf32>
    %188 = arith.addf %181, %187 : vector<8x16x8xf32>
    %c8_119 = arith.constant 8 : index
    %c1_120 = arith.constant 1 : index
    %c0_121 = arith.constant 0 : index
    %189 = vector.load %arg4[%c8_119, %c1_120, %c0_121] : memref<20x20x8xf32, #tpu.memory_space<vmem>>, vector<8x16x8xf32>
    %c1_122 = arith.constant 1 : index
    %c0_123 = arith.constant 0 : index
    %190 = vector.load %arg1[%c1_122, %c0_123] : memref<25x8xf32, #tpu.memory_space<vmem>>, vector<1x8xf32>
    %191 = vector.shape_cast %190 : vector<1x8xf32> to vector<8xf32>
    %192 = vector.shape_cast %191 : vector<8xf32> to vector<1x1x8xf32>
    %193 = vector.broadcast %192 : vector<1x1x8xf32> to vector<8x16x8xf32>
    %194 = arith.mulf %189, %193 : vector<8x16x8xf32>
    %195 = arith.addf %188, %194 : vector<8x16x8xf32>
    %c8_124 = arith.constant 8 : index
    %c2_125 = arith.constant 2 : index
    %c0_126 = arith.constant 0 : index
    %196 = vector.load %arg4[%c8_124, %c2_125, %c0_126] : memref<20x20x8xf32, #tpu.memory_space<vmem>>, vector<8x16x8xf32>
    %c2_127 = arith.constant 2 : index
    %c0_128 = arith.constant 0 : index
    %197 = vector.load %arg1[%c2_127, %c0_128] : memref<25x8xf32, #tpu.memory_space<vmem>>, vector<1x8xf32>
    %198 = vector.shape_cast %197 : vector<1x8xf32> to vector<8xf32>
    %199 = vector.shape_cast %198 : vector<8xf32> to vector<1x1x8xf32>
    %200 = vector.broadcast %199 : vector<1x1x8xf32> to vector<8x16x8xf32>
    %201 = arith.mulf %196, %200 : vector<8x16x8xf32>
    %202 = arith.addf %195, %201 : vector<8x16x8xf32>
    %c8_129 = arith.constant 8 : index
    %c3_130 = arith.constant 3 : index
    %c0_131 = arith.constant 0 : index
    %203 = vector.load %arg4[%c8_129, %c3_130, %c0_131] : memref<20x20x8xf32, #tpu.memory_space<vmem>>, vector<8x16x8xf32>
    %c3_132 = arith.constant 3 : index
    %c0_133 = arith.constant 0 : index
    %204 = vector.load %arg1[%c3_132, %c0_133] : memref<25x8xf32, #tpu.memory_space<vmem>>, vector<1x8xf32>
    %205 = vector.shape_cast %204 : vector<1x8xf32> to vector<8xf32>
    %206 = vector.shape_cast %205 : vector<8xf32> to vector<1x1x8xf32>
    %207 = vector.broadcast %206 : vector<1x1x8xf32> to vector<8x16x8xf32>
    %208 = arith.mulf %203, %207 : vector<8x16x8xf32>
    %209 = arith.addf %202, %208 : vector<8x16x8xf32>
    %c8_134 = arith.constant 8 : index
    %c4_135 = arith.constant 4 : index
    %c0_136 = arith.constant 0 : index
    %210 = vector.load %arg4[%c8_134, %c4_135, %c0_136] : memref<20x20x8xf32, #tpu.memory_space<vmem>>, vector<8x16x8xf32>
    %c4_137 = arith.constant 4 : index
    %c0_138 = arith.constant 0 : index
    %211 = vector.load %arg1[%c4_137, %c0_138] : memref<25x8xf32, #tpu.memory_space<vmem>>, vector<1x8xf32>
    %212 = vector.shape_cast %211 : vector<1x8xf32> to vector<8xf32>
    %213 = vector.shape_cast %212 : vector<8xf32> to vector<1x1x8xf32>
    %214 = vector.broadcast %213 : vector<1x1x8xf32> to vector<8x16x8xf32>
    %215 = arith.mulf %210, %214 : vector<8x16x8xf32>
    %216 = arith.addf %209, %215 : vector<8x16x8xf32>
    %c9_139 = arith.constant 9 : index
    %c0_140 = arith.constant 0 : index
    %c0_141 = arith.constant 0 : index
    %217 = vector.load %arg4[%c9_139, %c0_140, %c0_141] : memref<20x20x8xf32, #tpu.memory_space<vmem>>, vector<8x16x8xf32>
    %c5_142 = arith.constant 5 : index
    %c0_143 = arith.constant 0 : index
    %218 = vector.load %arg1[%c5_142, %c0_143] : memref<25x8xf32, #tpu.memory_space<vmem>>, vector<1x8xf32>
    %219 = vector.shape_cast %218 : vector<1x8xf32> to vector<8xf32>
    %220 = vector.shape_cast %219 : vector<8xf32> to vector<1x1x8xf32>
    %221 = vector.broadcast %220 : vector<1x1x8xf32> to vector<8x16x8xf32>
    %222 = arith.mulf %217, %221 : vector<8x16x8xf32>
    %223 = arith.addf %216, %222 : vector<8x16x8xf32>
    %c9_144 = arith.constant 9 : index
    %c1_145 = arith.constant 1 : index
    %c0_146 = arith.constant 0 : index
    %224 = vector.load %arg4[%c9_144, %c1_145, %c0_146] : memref<20x20x8xf32, #tpu.memory_space<vmem>>, vector<8x16x8xf32>
    %c6_147 = arith.constant 6 : index
    %c0_148 = arith.constant 0 : index
    %225 = vector.load %arg1[%c6_147, %c0_148] : memref<25x8xf32, #tpu.memory_space<vmem>>, vector<1x8xf32>
    %226 = vector.shape_cast %225 : vector<1x8xf32> to vector<8xf32>
    %227 = vector.shape_cast %226 : vector<8xf32> to vector<1x1x8xf32>
    %228 = vector.broadcast %227 : vector<1x1x8xf32> to vector<8x16x8xf32>
    %229 = arith.mulf %224, %228 : vector<8x16x8xf32>
    %230 = arith.addf %223, %229 : vector<8x16x8xf32>
    %c9_149 = arith.constant 9 : index
    %c2_150 = arith.constant 2 : index
    %c0_151 = arith.constant 0 : index
    %231 = vector.load %arg4[%c9_149, %c2_150, %c0_151] : memref<20x20x8xf32, #tpu.memory_space<vmem>>, vector<8x16x8xf32>
    %c7_152 = arith.constant 7 : index
    %c0_153 = arith.constant 0 : index
    %232 = vector.load %arg1[%c7_152, %c0_153] : memref<25x8xf32, #tpu.memory_space<vmem>>, vector<1x8xf32>
    %233 = vector.shape_cast %232 : vector<1x8xf32> to vector<8xf32>
    %234 = vector.shape_cast %233 : vector<8xf32> to vector<1x1x8xf32>
    %235 = vector.broadcast %234 : vector<1x1x8xf32> to vector<8x16x8xf32>
    %236 = arith.mulf %231, %235 : vector<8x16x8xf32>
    %237 = arith.addf %230, %236 : vector<8x16x8xf32>
    %c9_154 = arith.constant 9 : index
    %c3_155 = arith.constant 3 : index
    %c0_156 = arith.constant 0 : index
    %238 = vector.load %arg4[%c9_154, %c3_155, %c0_156] : memref<20x20x8xf32, #tpu.memory_space<vmem>>, vector<8x16x8xf32>
    %c8_157 = arith.constant 8 : index
    %c0_158 = arith.constant 0 : index
    %239 = vector.load %arg1[%c8_157, %c0_158] : memref<25x8xf32, #tpu.memory_space<vmem>>, vector<1x8xf32>
    %240 = vector.shape_cast %239 : vector<1x8xf32> to vector<8xf32>
    %241 = vector.shape_cast %240 : vector<8xf32> to vector<1x1x8xf32>
    %242 = vector.broadcast %241 : vector<1x1x8xf32> to vector<8x16x8xf32>
    %243 = arith.mulf %238, %242 : vector<8x16x8xf32>
    %244 = arith.addf %237, %243 : vector<8x16x8xf32>
    %c9_159 = arith.constant 9 : index
    %c4_160 = arith.constant 4 : index
    %c0_161 = arith.constant 0 : index
    %245 = vector.load %arg4[%c9_159, %c4_160, %c0_161] : memref<20x20x8xf32, #tpu.memory_space<vmem>>, vector<8x16x8xf32>
    %c9_162 = arith.constant 9 : index
    %c0_163 = arith.constant 0 : index
    %246 = vector.load %arg1[%c9_162, %c0_163] : memref<25x8xf32, #tpu.memory_space<vmem>>, vector<1x8xf32>
    %247 = vector.shape_cast %246 : vector<1x8xf32> to vector<8xf32>
    %248 = vector.shape_cast %247 : vector<8xf32> to vector<1x1x8xf32>
    %249 = vector.broadcast %248 : vector<1x1x8xf32> to vector<8x16x8xf32>
    %250 = arith.mulf %245, %249 : vector<8x16x8xf32>
    %251 = arith.addf %244, %250 : vector<8x16x8xf32>
    %c10_164 = arith.constant 10 : index
    %c0_165 = arith.constant 0 : index
    %c0_166 = arith.constant 0 : index
    %252 = vector.load %arg4[%c10_164, %c0_165, %c0_166] : memref<20x20x8xf32, #tpu.memory_space<vmem>>, vector<8x16x8xf32>
    %c10_167 = arith.constant 10 : index
    %c0_168 = arith.constant 0 : index
    %253 = vector.load %arg1[%c10_167, %c0_168] : memref<25x8xf32, #tpu.memory_space<vmem>>, vector<1x8xf32>
    %254 = vector.shape_cast %253 : vector<1x8xf32> to vector<8xf32>
    %255 = vector.shape_cast %254 : vector<8xf32> to vector<1x1x8xf32>
    %256 = vector.broadcast %255 : vector<1x1x8xf32> to vector<8x16x8xf32>
    %257 = arith.mulf %252, %256 : vector<8x16x8xf32>
    %258 = arith.addf %251, %257 : vector<8x16x8xf32>
    %c10_169 = arith.constant 10 : index
    %c1_170 = arith.constant 1 : index
    %c0_171 = arith.constant 0 : index
    %259 = vector.load %arg4[%c10_169, %c1_170, %c0_171] : memref<20x20x8xf32, #tpu.memory_space<vmem>>, vector<8x16x8xf32>
    %c11_172 = arith.constant 11 : index
    %c0_173 = arith.constant 0 : index
    %260 = vector.load %arg1[%c11_172, %c0_173] : memref<25x8xf32, #tpu.memory_space<vmem>>, vector<1x8xf32>
    %261 = vector.shape_cast %260 : vector<1x8xf32> to vector<8xf32>
    %262 = vector.shape_cast %261 : vector<8xf32> to vector<1x1x8xf32>
    %263 = vector.broadcast %262 : vector<1x1x8xf32> to vector<8x16x8xf32>
    %264 = arith.mulf %259, %263 : vector<8x16x8xf32>
    %265 = arith.addf %258, %264 : vector<8x16x8xf32>
    %c10_174 = arith.constant 10 : index
    %c2_175 = arith.constant 2 : index
    %c0_176 = arith.constant 0 : index
    %266 = vector.load %arg4[%c10_174, %c2_175, %c0_176] : memref<20x20x8xf32, #tpu.memory_space<vmem>>, vector<8x16x8xf32>
    %c12_177 = arith.constant 12 : index
    %c0_178 = arith.constant 0 : index
    %267 = vector.load %arg1[%c12_177, %c0_178] : memref<25x8xf32, #tpu.memory_space<vmem>>, vector<1x8xf32>
    %268 = vector.shape_cast %267 : vector<1x8xf32> to vector<8xf32>
    %269 = vector.shape_cast %268 : vector<8xf32> to vector<1x1x8xf32>
    %270 = vector.broadcast %269 : vector<1x1x8xf32> to vector<8x16x8xf32>
    %271 = arith.mulf %266, %270 : vector<8x16x8xf32>
    %272 = arith.addf %265, %271 : vector<8x16x8xf32>
    %c10_179 = arith.constant 10 : index
    %c3_180 = arith.constant 3 : index
    %c0_181 = arith.constant 0 : index
    %273 = vector.load %arg4[%c10_179, %c3_180, %c0_181] : memref<20x20x8xf32, #tpu.memory_space<vmem>>, vector<8x16x8xf32>
    %c13_182 = arith.constant 13 : index
    %c0_183 = arith.constant 0 : index
    %274 = vector.load %arg1[%c13_182, %c0_183] : memref<25x8xf32, #tpu.memory_space<vmem>>, vector<1x8xf32>
    %275 = vector.shape_cast %274 : vector<1x8xf32> to vector<8xf32>
    %276 = vector.shape_cast %275 : vector<8xf32> to vector<1x1x8xf32>
    %277 = vector.broadcast %276 : vector<1x1x8xf32> to vector<8x16x8xf32>
    %278 = arith.mulf %273, %277 : vector<8x16x8xf32>
    %279 = arith.addf %272, %278 : vector<8x16x8xf32>
    %c10_184 = arith.constant 10 : index
    %c4_185 = arith.constant 4 : index
    %c0_186 = arith.constant 0 : index
    %280 = vector.load %arg4[%c10_184, %c4_185, %c0_186] : memref<20x20x8xf32, #tpu.memory_space<vmem>>, vector<8x16x8xf32>
    %c14_187 = arith.constant 14 : index
    %c0_188 = arith.constant 0 : index
    %281 = vector.load %arg1[%c14_187, %c0_188] : memref<25x8xf32, #tpu.memory_space<vmem>>, vector<1x8xf32>
    %282 = vector.shape_cast %281 : vector<1x8xf32> to vector<8xf32>
    %283 = vector.shape_cast %282 : vector<8xf32> to vector<1x1x8xf32>
    %284 = vector.broadcast %283 : vector<1x1x8xf32> to vector<8x16x8xf32>
    %285 = arith.mulf %280, %284 : vector<8x16x8xf32>
    %286 = arith.addf %279, %285 : vector<8x16x8xf32>
    %c11_189 = arith.constant 11 : index
    %c0_190 = arith.constant 0 : index
    %c0_191 = arith.constant 0 : index
    %287 = vector.load %arg4[%c11_189, %c0_190, %c0_191] : memref<20x20x8xf32, #tpu.memory_space<vmem>>, vector<8x16x8xf32>
    %c15_192 = arith.constant 15 : index
    %c0_193 = arith.constant 0 : index
    %288 = vector.load %arg1[%c15_192, %c0_193] : memref<25x8xf32, #tpu.memory_space<vmem>>, vector<1x8xf32>
    %289 = vector.shape_cast %288 : vector<1x8xf32> to vector<8xf32>
    %290 = vector.shape_cast %289 : vector<8xf32> to vector<1x1x8xf32>
    %291 = vector.broadcast %290 : vector<1x1x8xf32> to vector<8x16x8xf32>
    %292 = arith.mulf %287, %291 : vector<8x16x8xf32>
    %293 = arith.addf %286, %292 : vector<8x16x8xf32>
    %c11_194 = arith.constant 11 : index
    %c1_195 = arith.constant 1 : index
    %c0_196 = arith.constant 0 : index
    %294 = vector.load %arg4[%c11_194, %c1_195, %c0_196] : memref<20x20x8xf32, #tpu.memory_space<vmem>>, vector<8x16x8xf32>
    %c16_197 = arith.constant 16 : index
    %c0_198 = arith.constant 0 : index
    %295 = vector.load %arg1[%c16_197, %c0_198] : memref<25x8xf32, #tpu.memory_space<vmem>>, vector<1x8xf32>
    %296 = vector.shape_cast %295 : vector<1x8xf32> to vector<8xf32>
    %297 = vector.shape_cast %296 : vector<8xf32> to vector<1x1x8xf32>
    %298 = vector.broadcast %297 : vector<1x1x8xf32> to vector<8x16x8xf32>
    %299 = arith.mulf %294, %298 : vector<8x16x8xf32>
    %300 = arith.addf %293, %299 : vector<8x16x8xf32>
    %c11_199 = arith.constant 11 : index
    %c2_200 = arith.constant 2 : index
    %c0_201 = arith.constant 0 : index
    %301 = vector.load %arg4[%c11_199, %c2_200, %c0_201] : memref<20x20x8xf32, #tpu.memory_space<vmem>>, vector<8x16x8xf32>
    %c17_202 = arith.constant 17 : index
    %c0_203 = arith.constant 0 : index
    %302 = vector.load %arg1[%c17_202, %c0_203] : memref<25x8xf32, #tpu.memory_space<vmem>>, vector<1x8xf32>
    %303 = vector.shape_cast %302 : vector<1x8xf32> to vector<8xf32>
    %304 = vector.shape_cast %303 : vector<8xf32> to vector<1x1x8xf32>
    %305 = vector.broadcast %304 : vector<1x1x8xf32> to vector<8x16x8xf32>
    %306 = arith.mulf %301, %305 : vector<8x16x8xf32>
    %307 = arith.addf %300, %306 : vector<8x16x8xf32>
    %c11_204 = arith.constant 11 : index
    %c3_205 = arith.constant 3 : index
    %c0_206 = arith.constant 0 : index
    %308 = vector.load %arg4[%c11_204, %c3_205, %c0_206] : memref<20x20x8xf32, #tpu.memory_space<vmem>>, vector<8x16x8xf32>
    %c18_207 = arith.constant 18 : index
    %c0_208 = arith.constant 0 : index
    %309 = vector.load %arg1[%c18_207, %c0_208] : memref<25x8xf32, #tpu.memory_space<vmem>>, vector<1x8xf32>
    %310 = vector.shape_cast %309 : vector<1x8xf32> to vector<8xf32>
    %311 = vector.shape_cast %310 : vector<8xf32> to vector<1x1x8xf32>
    %312 = vector.broadcast %311 : vector<1x1x8xf32> to vector<8x16x8xf32>
    %313 = arith.mulf %308, %312 : vector<8x16x8xf32>
    %314 = arith.addf %307, %313 : vector<8x16x8xf32>
    %c11_209 = arith.constant 11 : index
    %c4_210 = arith.constant 4 : index
    %c0_211 = arith.constant 0 : index
    %315 = vector.load %arg4[%c11_209, %c4_210, %c0_211] : memref<20x20x8xf32, #tpu.memory_space<vmem>>, vector<8x16x8xf32>
    %c19_212 = arith.constant 19 : index
    %c0_213 = arith.constant 0 : index
    %316 = vector.load %arg1[%c19_212, %c0_213] : memref<25x8xf32, #tpu.memory_space<vmem>>, vector<1x8xf32>
    %317 = vector.shape_cast %316 : vector<1x8xf32> to vector<8xf32>
    %318 = vector.shape_cast %317 : vector<8xf32> to vector<1x1x8xf32>
    %319 = vector.broadcast %318 : vector<1x1x8xf32> to vector<8x16x8xf32>
    %320 = arith.mulf %315, %319 : vector<8x16x8xf32>
    %321 = arith.addf %314, %320 : vector<8x16x8xf32>
    %c12_214 = arith.constant 12 : index
    %c0_215 = arith.constant 0 : index
    %c0_216 = arith.constant 0 : index
    %322 = vector.load %arg4[%c12_214, %c0_215, %c0_216] : memref<20x20x8xf32, #tpu.memory_space<vmem>>, vector<8x16x8xf32>
    %c20_217 = arith.constant 20 : index
    %c0_218 = arith.constant 0 : index
    %323 = vector.load %arg1[%c20_217, %c0_218] : memref<25x8xf32, #tpu.memory_space<vmem>>, vector<1x8xf32>
    %324 = vector.shape_cast %323 : vector<1x8xf32> to vector<8xf32>
    %325 = vector.shape_cast %324 : vector<8xf32> to vector<1x1x8xf32>
    %326 = vector.broadcast %325 : vector<1x1x8xf32> to vector<8x16x8xf32>
    %327 = arith.mulf %322, %326 : vector<8x16x8xf32>
    %328 = arith.addf %321, %327 : vector<8x16x8xf32>
    %c12_219 = arith.constant 12 : index
    %c1_220 = arith.constant 1 : index
    %c0_221 = arith.constant 0 : index
    %329 = vector.load %arg4[%c12_219, %c1_220, %c0_221] : memref<20x20x8xf32, #tpu.memory_space<vmem>>, vector<8x16x8xf32>
    %c21_222 = arith.constant 21 : index
    %c0_223 = arith.constant 0 : index
    %330 = vector.load %arg1[%c21_222, %c0_223] : memref<25x8xf32, #tpu.memory_space<vmem>>, vector<1x8xf32>
    %331 = vector.shape_cast %330 : vector<1x8xf32> to vector<8xf32>
    %332 = vector.shape_cast %331 : vector<8xf32> to vector<1x1x8xf32>
    %333 = vector.broadcast %332 : vector<1x1x8xf32> to vector<8x16x8xf32>
    %334 = arith.mulf %329, %333 : vector<8x16x8xf32>
    %335 = arith.addf %328, %334 : vector<8x16x8xf32>
    %c12_224 = arith.constant 12 : index
    %c2_225 = arith.constant 2 : index
    %c0_226 = arith.constant 0 : index
    %336 = vector.load %arg4[%c12_224, %c2_225, %c0_226] : memref<20x20x8xf32, #tpu.memory_space<vmem>>, vector<8x16x8xf32>
    %c22_227 = arith.constant 22 : index
    %c0_228 = arith.constant 0 : index
    %337 = vector.load %arg1[%c22_227, %c0_228] : memref<25x8xf32, #tpu.memory_space<vmem>>, vector<1x8xf32>
    %338 = vector.shape_cast %337 : vector<1x8xf32> to vector<8xf32>
    %339 = vector.shape_cast %338 : vector<8xf32> to vector<1x1x8xf32>
    %340 = vector.broadcast %339 : vector<1x1x8xf32> to vector<8x16x8xf32>
    %341 = arith.mulf %336, %340 : vector<8x16x8xf32>
    %342 = arith.addf %335, %341 : vector<8x16x8xf32>
    %c12_229 = arith.constant 12 : index
    %c3_230 = arith.constant 3 : index
    %c0_231 = arith.constant 0 : index
    %343 = vector.load %arg4[%c12_229, %c3_230, %c0_231] : memref<20x20x8xf32, #tpu.memory_space<vmem>>, vector<8x16x8xf32>
    %c23_232 = arith.constant 23 : index
    %c0_233 = arith.constant 0 : index
    %344 = vector.load %arg1[%c23_232, %c0_233] : memref<25x8xf32, #tpu.memory_space<vmem>>, vector<1x8xf32>
    %345 = vector.shape_cast %344 : vector<1x8xf32> to vector<8xf32>
    %346 = vector.shape_cast %345 : vector<8xf32> to vector<1x1x8xf32>
    %347 = vector.broadcast %346 : vector<1x1x8xf32> to vector<8x16x8xf32>
    %348 = arith.mulf %343, %347 : vector<8x16x8xf32>
    %349 = arith.addf %342, %348 : vector<8x16x8xf32>
    %c12_234 = arith.constant 12 : index
    %c4_235 = arith.constant 4 : index
    %c0_236 = arith.constant 0 : index
    %350 = vector.load %arg4[%c12_234, %c4_235, %c0_236] : memref<20x20x8xf32, #tpu.memory_space<vmem>>, vector<8x16x8xf32>
    %c24_237 = arith.constant 24 : index
    %c0_238 = arith.constant 0 : index
    %351 = vector.load %arg1[%c24_237, %c0_238] : memref<25x8xf32, #tpu.memory_space<vmem>>, vector<1x8xf32>
    %352 = vector.shape_cast %351 : vector<1x8xf32> to vector<8xf32>
    %353 = vector.shape_cast %352 : vector<8xf32> to vector<1x1x8xf32>
    %354 = vector.broadcast %353 : vector<1x1x8xf32> to vector<8x16x8xf32>
    %355 = arith.mulf %350, %354 : vector<8x16x8xf32>
    %356 = arith.addf %349, %355 : vector<8x16x8xf32>
    %c8_239 = arith.constant 8 : index
    %c0_240 = arith.constant 0 : index
    %c0_241 = arith.constant 0 : index
    %357 = vector.load %arg3[%c8_239, %c0_240, %c0_241] : memref<16x16x8xf32, #tpu.memory_space<vmem>>, vector<8x16x8xf32>
    tpu.vector_store %arg3[%c8_239, %c0_240, %c0_241], %356 {strides = array<i32>} : memref<16x16x8xf32, #tpu.memory_space<vmem>>, vector<8x16x8xf32>,
    return
  }
  func.func @transform_0(%arg0: i32) -> (i32, i32) {
    %c0_i32 = arith.constant 0 : i32
    %c0_i32_0 = arith.constant 0 : i32
    return %c0_i32, %arg0 : i32, i32
  }
  func.func @transform_1(%arg0: i32) -> (i32, i32, i32) {
    %c0_i32 = arith.constant 0 : i32
    %c0_i32_0 = arith.constant 0 : i32
    %c0_i32_1 = arith.constant 0 : i32
    return %c0_i32, %c0_i32_0, %arg0 : i32, i32, i32
  }
  func.func @transform_2(%arg0: i32) -> (i32, i32, i32) {
    %c0_i32 = arith.constant 0 : i32
    %c0_i32_0 = arith.constant 0 : i32
    %c0_i32_1 = arith.constant 0 : i32
    return %c0_i32, %c0_i32_0, %arg0 : i32, i32, i32
  }
}

</mosaic_0001>

<llo_original>
// kernel: tpu_custom_call.1
$region0: #{tpu_custom_call.1}
  #allocation0 [shape = 'u32[]', space=smem, size = 0x4, offset = 0x4, fixed_abs, tag = 'smem constant byte address 0x4 - core index']
  #allocation1 [shape = 'u32[72,128]{1,0:T(1,128)}', space=vmem, size = 0x9000, scoped, tag = 'internal scratch']
  #allocation2 [shape = 'f32[20,20,8]{2,1,0:T(8,128)}', space=vmem, size = 0x3c000, scoped, tag = 'scratch operand']
  %s0 = inlined_call_operand.vmem [shape: f32[25,8], index: 0, kind: input, shape index: {}]
  %s1 = inlined_call_operand.vmem [shape: f32[16,16,8], index: 1, kind: input, shape index: {}]
  %s2 = inlined_call_operand.vmem [shape: f32[16,16,8], index: 2, kind: output, shape index: {}]
  %s3 = sld [smem:[#allocation0]]
  $region18: #{tpu_custom_call.1} parent=0
    _
  %s5 = ssub.s32 1, %s3
  %s6 = scalar_select 0, %s5, %s3
  // Predicated region
  $region2: #{tpu_custom_call.1} parent=0 // pred_check
    _
  $region3: #{tpu_custom_call.1} parent=0 // pred_check_branch
    %8 = sbr.rel (0) target = $region5
  $region4: #{tpu_custom_call.1} parent=0 // pred_region
    _
  $region5: #{tpu_custom_call.1} parent=0 // pred_fallthru
    _
  // Predicated region
  $region6: #{tpu_custom_call.1} parent=0 // pred_check
    _
  $region7: #{tpu_custom_call.1} parent=0 // pred_check_branch
    %10 = sbr.rel (0) target = $region9
  $region8: #{tpu_custom_call.1} parent=0 // pred_region
    _
  $region9: #{tpu_custom_call.1} parent=0 // pred_fallthru
    _
  %vm11 = vcmask 64512
  %12 = vst.msk [vmem:[#allocation2] sm:$0xff] %vm11, 0.0
  %13 = vst.msk [vmem:[#allocation2 + $0x8] sm:$0xff] %vm11, 0.0
  %vm14 = vcmask 60416
  %15 = vst.msk [vmem:[#allocation2 + $0x10] sm:$0xf] %vm14, 0.0
  %16 = vst.msk [vmem:[#allocation2 + $0x18] sm:$0xff] %vm11, 0.0
  %17 = vst.msk [vmem:[#allocation2 + $0x20] sm:$0xff] %vm11, 0.0
  %18 = vst.msk [vmem:[#allocation2 + $0x28] sm:$0xf] %vm14, 0.0
  %19 = vst.msk [vmem:[#allocation2 + $0x30] sm:$0xff] %vm11, 0.0
  %20 = vst.msk [vmem:[#allocation2 + $0x38] sm:$0xff] %vm11, 0.0
  %21 = vst.msk [vmem:[#allocation2 + $0x40] sm:$0xf] %vm14, 0.0
  %22 = vst.msk [vmem:[#allocation2 + $0x48] sm:$0xff] %vm11, 0.0
  %23 = vst.msk [vmem:[#allocation2 + $0x50] sm:$0xff] %vm11, 0.0
  %24 = vst.msk [vmem:[#allocation2 + $0x58] sm:$0xf] %vm14, 0.0
  %25 = vst.msk [vmem:[#allocation2 + $0x60] sm:$0xff] %vm11, 0.0
  %26 = vst.msk [vmem:[#allocation2 + $0x68] sm:$0xff] %vm11, 0.0
  %27 = vst.msk [vmem:[#allocation2 + $0x70] sm:$0xf] %vm14, 0.0
  %28 = vst.msk [vmem:[#allocation2 + $0x78] sm:$0xff] %vm11, 0.0
  %29 = vst.msk [vmem:[#allocation2 + $0x80] sm:$0xff] %vm11, 0.0
  %30 = vst.msk [vmem:[#allocation2 + $0x88] sm:$0xf] %vm14, 0.0
  %31 = vst.msk [vmem:[#allocation2 + $0x90] sm:$0xff] %vm11, 0.0
  %32 = vst.msk [vmem:[#allocation2 + $0x98] sm:$0xff] %vm11, 0.0
  %33 = vst.msk [vmem:[#allocation2 + $0xa0] sm:$0xf] %vm14, 0.0
  %34 = vst.msk [vmem:[#allocation2 + $0xa8] sm:$0xff] %vm11, 0.0
  %35 = vst.msk [vmem:[#allocation2 + $0xb0] sm:$0xff] %vm11, 0.0
  %36 = vst.msk [vmem:[#allocation2 + $0xb8] sm:$0xf] %vm14, 0.0
  %37 = vst.msk [vmem:[#allocation2 + $0xc0] sm:$0xff] %vm11, 0.0
  %38 = vst.msk [vmem:[#allocation2 + $0xc8] sm:$0xff] %vm11, 0.0
  %39 = vst.msk [vmem:[#allocation2 + $0xd0] sm:$0xf] %vm14, 0.0
  %40 = vst.msk [vmem:[#allocation2 + $0xd8] sm:$0xff] %vm11, 0.0
  %41 = vst.msk [vmem:[#allocation2 + $0xe0] sm:$0xff] %vm11, 0.0
  %42 = vst.msk [vmem:[#allocation2 + $0xe8] sm:$0xf] %vm14, 0.0
  %43 = vst.msk [vmem:[#allocation2 + $0xf0] sm:$0xff] %vm11, 0.0
  %44 = vst.msk [vmem:[#allocation2 + $0xf8] sm:$0xff] %vm11, 0.0
  %45 = vst.msk [vmem:[#allocation2 + $0x100] sm:$0xf] %vm14, 0.0
  %46 = vst.msk [vmem:[#allocation2 + $0x108] sm:$0xff] %vm11, 0.0
  %47 = vst.msk [vmem:[#allocation2 + $0x110] sm:$0xff] %vm11, 0.0
  %48 = vst.msk [vmem:[#allocation2 + $0x118] sm:$0xf] %vm14, 0.0
  %49 = vst.msk [vmem:[#allocation2 + $0x120] sm:$0xff] %vm11, 0.0
  %50 = vst.msk [vmem:[#allocation2 + $0x128] sm:$0xff] %vm11, 0.0
  %51 = vst.msk [vmem:[#allocation2 + $0x130] sm:$0xf] %vm14, 0.0
  %52 = vst.msk [vmem:[#allocation2 + $0x138] sm:$0xff] %vm11, 0.0
  %53 = vst.msk [vmem:[#allocation2 + $0x140] sm:$0xff] %vm11, 0.0
  %54 = vst.msk [vmem:[#allocation2 + $0x148] sm:$0xf] %vm14, 0.0
  %55 = vst.msk [vmem:[#allocation2 + $0x150] sm:$0xff] %vm11, 0.0
  %56 = vst.msk [vmem:[#allocation2 + $0x158] sm:$0xff] %vm11, 0.0
  %57 = vst.msk [vmem:[#allocation2 + $0x160] sm:$0xf] %vm14, 0.0
  %58 = vst.msk [vmem:[#allocation2 + $0x168] sm:$0xff] %vm11, 0.0
  %59 = vst.msk [vmem:[#allocation2 + $0x170] sm:$0xff] %vm11, 0.0
  %60 = vst.msk [vmem:[#allocation2 + $0x178] sm:$0xf] %vm14, 0.0
  %61 = vst.msk [vmem:[#allocation2 + $0x180] sm:$0xff] %vm11, 0.0
  %62 = vst.msk [vmem:[#allocation2 + $0x188] sm:$0xff] %vm11, 0.0
  %63 = vst.msk [vmem:[#allocation2 + $0x190] sm:$0xf] %vm14, 0.0
  %64 = vst.msk [vmem:[#allocation2 + $0x198] sm:$0xff] %vm11, 0.0
  %65 = vst.msk [vmem:[#allocation2 + $0x1a0] sm:$0xff] %vm11, 0.0
  %66 = vst.msk [vmem:[#allocation2 + $0x1a8] sm:$0xf] %vm14, 0.0
  %67 = vst.msk [vmem:[#allocation2 + $0x1b0] sm:$0xff] %vm11, 0.0
  %68 = vst.msk [vmem:[#allocation2 + $0x1b8] sm:$0xff] %vm11, 0.0
  %69 = vst.msk [vmem:[#allocation2 + $0x1c0] sm:$0xf] %vm14, 0.0
  %70 = vst.msk [vmem:[#allocation2 + $0x1c8] sm:$0xff] %vm11, 0.0
  %71 = vst.msk [vmem:[#allocation2 + $0x1d0] sm:$0xff] %vm11, 0.0
  %72 = vst.msk [vmem:[#allocation2 + $0x1d8] sm:$0xf] %vm14, 0.0
  %v73 = vld [vmem:[%s1] sm:$0xff]
  %v74 = vld [vmem:[%s1 + $0x8] sm:$0xff]
  %v75 = vld [vmem:[%s1 + $0x10] sm:$0xff]
  %v76 = vld [vmem:[%s1 + $0x18] sm:$0xff]
  %v77 = vld [vmem:[%s1 + $0x20] sm:$0xff]
  %v78 = vld [vmem:[%s1 + $0x28] sm:$0xff]
  %v79 = vld [vmem:[%s1 + $0x30] sm:$0xff]
  %v80 = vld [vmem:[%s1 + $0x38] sm:$0xff]
  %v81 = vld [vmem:[%s1 + $0x40] sm:$0xff]
  %v82 = vld [vmem:[%s1 + $0x48] sm:$0xff]
  %v83 = vld [vmem:[%s1 + $0x50] sm:$0xff]
  %v84 = vld [vmem:[%s1 + $0x58] sm:$0xff]
  %v85 = vld [vmem:[%s1 + $0x60] sm:$0xff]
  %v86 = vld [vmem:[%s1 + $0x68] sm:$0xff]
  %v87 = vld [vmem:[%s1 + $0x70] sm:$0xff]
  %v88 = vld [vmem:[%s1 + $0x78] sm:$0xff]
  %v89 = vld [vmem:[%s1 + $0x80] sm:$0xff]
  %v90 = vld [vmem:[%s1 + $0x88] sm:$0xff]
  %v91 = vld [vmem:[%s1 + $0x90] sm:$0xff]
  %v92 = vld [vmem:[%s1 + $0x98] sm:$0xff]
  %v93 = vld [vmem:[%s1 + $0xa0] sm:$0xff]
  %v94 = vld [vmem:[%s1 + $0xa8] sm:$0xff]
  %v95 = vld [vmem:[%s1 + $0xb0] sm:$0xff]
  %v96 = vld [vmem:[%s1 + $0xb8] sm:$0xff]
  %v97 = vld [vmem:[%s1 + $0xc0] sm:$0xff]
  %v98 = vld [vmem:[%s1 + $0xc8] sm:$0xff]
  %v99 = vld [vmem:[%s1 + $0xd0] sm:$0xff]
  %v100 = vld [vmem:[%s1 + $0xd8] sm:$0xff]
  %v101 = vld [vmem:[%s1 + $0xe0] sm:$0xff]
  %v102 = vld [vmem:[%s1 + $0xe8] sm:$0xff]
  %v103 = vld [vmem:[%s1 + $0xf0] sm:$0xff]
  %v104 = vld [vmem:[%s1 + $0xf8] sm:$0xff]
  %s105 = scalar_lea.vmem [#allocation2], 48
  %106 = vst.msk [vmem:[%s105 + $0x2] sm:$0xff] %vm11, %v73
  %107 = vst.msk [vmem:[%s105 + $0xa] sm:$0xff] %vm11, %v74
  %108 = vst.msk [vmem:[%s105 + $0x1a] sm:$0xff] %vm11, %v75
  %109 = vst.msk [vmem:[%s105 + $0x22] sm:$0xff] %vm11, %v76
  %110 = vst.msk [vmem:[%s105 + $0x32] sm:$0xff] %vm11, %v77
  %111 = vst.msk [vmem:[%s105 + $0x3a] sm:$0xff] %vm11, %v78
  %112 = vst.msk [vmem:[%s105 + $0x4a] sm:$0xff] %vm11, %v79
  %113 = vst.msk [vmem:[%s105 + $0x52] sm:$0xff] %vm11, %v80
  %114 = vst.msk [vmem:[%s105 + $0x62] sm:$0xff] %vm11, %v81
  %115 = vst.msk [vmem:[%s105 + $0x6a] sm:$0xff] %vm11, %v82
  %116 = vst.msk [vmem:[%s105 + $0x7a] sm:$0xff] %vm11, %v83
  %117 = vst.msk [vmem:[%s105 + $0x82] sm:$0xff] %vm11, %v84
  %118 = vst.msk [vmem:[%s105 + $0x92] sm:$0xff] %vm11, %v85
  %119 = vst.msk [vmem:[%s105 + $0x9a] sm:$0xff] %vm11, %v86
  %120 = vst.msk [vmem:[%s105 + $0xaa] sm:$0xff] %vm11, %v87
  %121 = vst.msk [vmem:[%s105 + $0xb2] sm:$0xff] %vm11, %v88
  %122 = vst.msk [vmem:[%s105 + $0xc2] sm:$0xff] %vm11, %v89
  %123 = vst.msk [vmem:[%s105 + $0xca] sm:$0xff] %vm11, %v90
  %124 = vst.msk [vmem:[%s105 + $0xda] sm:$0xff] %vm11, %v91
  %125 = vst.msk [vmem:[%s105 + $0xe2] sm:$0xff] %vm11, %v92
  %126 = vst.msk [vmem:[%s105 + $0xf2] sm:$0xff] %vm11, %v93
  %127 = vst.msk [vmem:[%s105 + $0xfa] sm:$0xff] %vm11, %v94
  %128 = vst.msk [vmem:[%s105 + $0x10a] sm:$0xff] %vm11, %v95
  %129 = vst.msk [vmem:[%s105 + $0x112] sm:$0xff] %vm11, %v96
  %130 = vst.msk [vmem:[%s105 + $0x122] sm:$0xff] %vm11, %v97
  %131 = vst.msk [vmem:[%s105 + $0x12a] sm:$0xff] %vm11, %v98
  %132 = vst.msk [vmem:[%s105 + $0x13a] sm:$0xff] %vm11, %v99
  %133 = vst.msk [vmem:[%s105 + $0x142] sm:$0xff] %vm11, %v100
  %134 = vst.msk [vmem:[%s105 + $0x152] sm:$0xff] %vm11, %v101
  %135 = vst.msk [vmem:[%s105 + $0x15a] sm:$0xff] %vm11, %v102
  %136 = vst.msk [vmem:[%s105 + $0x16a] sm:$0xff] %vm11, %v103
  %137 = vst.msk [vmem:[%s105 + $0x172] sm:$0xff] %vm11, %v104
  %v138 = vld [vmem:[#allocation2] sm:$0xff]
  %v139 = vld [vmem:[#allocation2 + $0x8] sm:$0xff]
  %v140 = vld [vmem:[#allocation2 + $0x18] sm:$0xff]
  %v141 = vld [vmem:[#allocation2 + $0x20] sm:$0xff]
  %v142 = vld [vmem:[#allocation2 + $0x30] sm:$0xff]
  %v143 = vld [vmem:[#allocation2 + $0x38] sm:$0xff]
  %v144 = vld [vmem:[#allocation2 + $0x48] sm:$0xff]
  %v145 = vld [vmem:[#allocation2 + $0x50] sm:$0xff]
  %v146 = vld [vmem:[#allocation2 + $0x60] sm:$0xff]
  %v147 = vld [vmem:[#allocation2 + $0x68] sm:$0xff]
  %v148 = vld [vmem:[#allocation2 + $0x78] sm:$0xff]
  %v149 = vld [vmem:[#allocation2 + $0x80] sm:$0xff]
  %v150 = vld [vmem:[#allocation2 + $0x90] sm:$0xff]
  %v151 = vld [vmem:[#allocation2 + $0x98] sm:$0xff]
  %v152 = vld [vmem:[#allocation2 + $0xa8] sm:$0xff]
  %v153 = vld [vmem:[#allocation2 + $0xb0] sm:$0xff]
  %v154 = vld [vmem:[%s0] sm:$0x1]
  %v155 = vperm.slane %v154, 0
  %v156 = vmul.f32 %v138, %v155
  %v157 = vmul.f32 %v139, %v155
  %v158 = vmul.f32 %v140, %v155
  %v159 = vmul.f32 %v141, %v155
  %v160 = vmul.f32 %v142, %v155
  %v161 = vmul.f32 %v143, %v155
  %v162 = vmul.f32 %v144, %v155
  %v163 = vmul.f32 %v145, %v155
  %v164 = vmul.f32 %v146, %v155
  %v165 = vmul.f32 %v147, %v155
  %v166 = vmul.f32 %v148, %v155
  %v167 = vmul.f32 %v149, %v155
  %v168 = vmul.f32 %v150, %v155
  %v169 = vmul.f32 %v151, %v155
  %v170 = vmul.f32 %v152, %v155
  %v171 = vmul.f32 %v153, %v155
  %v172 = vadd.f32 %v156, 0.0
  %v173 = vadd.f32 %v157, 0.0
  %v174 = vadd.f32 %v158, 0.0
  %v175 = vadd.f32 %v159, 0.0
  %v176 = vadd.f32 %v160, 0.0
  %v177 = vadd.f32 %v161, 0.0
  %v178 = vadd.f32 %v162, 0.0
  %v179 = vadd.f32 %v163, 0.0
  %v180 = vadd.f32 %v164, 0.0
  %v181 = vadd.f32 %v165, 0.0
  %v182 = vadd.f32 %v166, 0.0
  %v183 = vadd.f32 %v167, 0.0
  %v184 = vadd.f32 %v168, 0.0
  %v185 = vadd.f32 %v169, 0.0
  %v186 = vadd.f32 %v170, 0.0
  %v187 = vadd.f32 %v171, 0.0
  %v188 = vld [vmem:[#allocation2 + $0x1] sm:$0xff]
  %v189 = vld [vmem:[#allocation2 + $0x9] sm:$0xff]
  %v190 = vld [vmem:[#allocation2 + $0x19] sm:$0xff]
  %v191 = vld [vmem:[#allocation2 + $0x21] sm:$0xff]
  %v192 = vld [vmem:[#allocation2 + $0x31] sm:$0xff]
  %v193 = vld [vmem:[#allocation2 + $0x39] sm:$0xff]
  %v194 = vld [vmem:[#allocation2 + $0x49] sm:$0xff]
  %v195 = vld [vmem:[#allocation2 + $0x51] sm:$0xff]
  %v196 = vld [vmem:[#allocation2 + $0x61] sm:$0xff]
  %v197 = vld [vmem:[#allocation2 + $0x69] sm:$0xff]
  %v198 = vld [vmem:[#allocation2 + $0x79] sm:$0xff]
  %v199 = vld [vmem:[#allocation2 + $0x81] sm:$0xff]
  %v200 = vld [vmem:[#allocation2 + $0x91] sm:$0xff]
  %v201 = vld [vmem:[#allocation2 + $0x99] sm:$0xff]
  %v202 = vld [vmem:[#allocation2 + $0xa9] sm:$0xff]
  %v203 = vld [vmem:[#allocation2 + $0xb1] sm:$0xff]
  %v204 = vld [vmem:[%s0 + $0x1] sm:$0x1]
  %v205 = vperm.slane %v204, 0
  %v206 = vmul.f32 %v188, %v205
  %v207 = vmul.f32 %v189, %v205
  %v208 = vmul.f32 %v190, %v205
  %v209 = vmul.f32 %v191, %v205
  %v210 = vmul.f32 %v192, %v205
  %v211 = vmul.f32 %v193, %v205
  %v212 = vmul.f32 %v194, %v205
  %v213 = vmul.f32 %v195, %v205
  %v214 = vmul.f32 %v196, %v205
  %v215 = vmul.f32 %v197, %v205
  %v216 = vmul.f32 %v198, %v205
  %v217 = vmul.f32 %v199, %v205
  %v218 = vmul.f32 %v200, %v205
  %v219 = vmul.f32 %v201, %v205
  %v220 = vmul.f32 %v202, %v205
  %v221 = vmul.f32 %v203, %v205
  %v222 = vadd.f32 %v172, %v206
  %v223 = vadd.f32 %v173, %v207
  %v224 = vadd.f32 %v174, %v208
  %v225 = vadd.f32 %v175, %v209
  %v226 = vadd.f32 %v176, %v210
  %v227 = vadd.f32 %v177, %v211
  %v228 = vadd.f32 %v178, %v212
  %v229 = vadd.f32 %v179, %v213
  %v230 = vadd.f32 %v180, %v214
  %v231 = vadd.f32 %v181, %v215
  %v232 = vadd.f32 %v182, %v216
  %v233 = vadd.f32 %v183, %v217
  %v234 = vadd.f32 %v184, %v218
  %v235 = vadd.f32 %v185, %v219
  %v236 = vadd.f32 %v186, %v220
  %v237 = vadd.f32 %v187, %v221
  %v238 = vld [vmem:[#allocation2 + $0x2] sm:$0xff]
  %v239 = vld [vmem:[#allocation2 + $0xa] sm:$0xff]
  %v240 = vld [vmem:[#allocation2 + $0x1a] sm:$0xff]
  %v241 = vld [vmem:[#allocation2 + $0x22] sm:$0xff]
  %v242 = vld [vmem:[#allocation2 + $0x32] sm:$0xff]
  %v243 = vld [vmem:[#allocation2 + $0x3a] sm:$0xff]
  %v244 = vld [vmem:[#allocation2 + $0x4a] sm:$0xff]
  %v245 = vld [vmem:[#allocation2 + $0x52] sm:$0xff]
  %v246 = vld [vmem:[#allocation2 + $0x62] sm:$0xff]
  %v247 = vld [vmem:[#allocation2 + $0x6a] sm:$0xff]
  %v248 = vld [vmem:[#allocation2 + $0x7a] sm:$0xff]
  %v249 = vld [vmem:[#allocation2 + $0x82] sm:$0xff]
  %v250 = vld [vmem:[#allocation2 + $0x92] sm:$0xff]
  %v251 = vld [vmem:[#allocation2 + $0x9a] sm:$0xff]
  %v252 = vld [vmem:[#allocation2 + $0xaa] sm:$0xff]
  %v253 = vld [vmem:[#allocation2 + $0xb2] sm:$0xff]
  %v254 = vld [vmem:[%s0 + $0x2] sm:$0x1]
  %v255 = vperm.slane %v254, 0
  %v256 = vmul.f32 %v238, %v255
  %v257 = vmul.f32 %v239, %v255
  %v258 = vmul.f32 %v240, %v255
  %v259 = vmul.f32 %v241, %v255
  %v260 = vmul.f32 %v242, %v255
  %v261 = vmul.f32 %v243, %v255
  %v262 = vmul.f32 %v244, %v255
  %v263 = vmul.f32 %v245, %v255
  %v264 = vmul.f32 %v246, %v255
  %v265 = vmul.f32 %v247, %v255
  %v266 = vmul.f32 %v248, %v255
  %v267 = vmul.f32 %v249, %v255
  %v268 = vmul.f32 %v250, %v255
  %v269 = vmul.f32 %v251, %v255
  %v270 = vmul.f32 %v252, %v255
  %v271 = vmul.f32 %v253, %v255
  %v272 = vadd.f32 %v222, %v256
  %v273 = vadd.f32 %v223, %v257
  %v274 = vadd.f32 %v224, %v258
  %v275 = vadd.f32 %v225, %v259
  %v276 = vadd.f32 %v226, %v260
  %v277 = vadd.f32 %v227, %v261
  %v278 = vadd.f32 %v228, %v262
  %v279 = vadd.f32 %v229, %v263
  %v280 = vadd.f32 %v230, %v264
  %v281 = vadd.f32 %v231, %v265
  %v282 = vadd.f32 %v232, %v266
  %v283 = vadd.f32 %v233, %v267
  %v284 = vadd.f32 %v234, %v268
  %v285 = vadd.f32 %v235, %v269
  %v286 = vadd.f32 %v236, %v270
  %v287 = vadd.f32 %v237, %v271
  %v288 = vld [vmem:[#allocation2 + $0x3] sm:$0xff]
  %v289 = vld [vmem:[#allocation2 + $0xb] sm:$0xff]
  %v290 = vld [vmem:[#allocation2 + $0x1b] sm:$0xff]
  %v291 = vld [vmem:[#allocation2 + $0x23] sm:$0xff]
  %v292 = vld [vmem:[#allocation2 + $0x33] sm:$0xff]
  %v293 = vld [vmem:[#allocation2 + $0x3b] sm:$0xff]
  %v294 = vld [vmem:[#allocation2 + $0x4b] sm:$0xff]
  %v295 = vld [vmem:[#allocation2 + $0x53] sm:$0xff]
  %v296 = vld [vmem:[#allocation2 + $0x63] sm:$0xff]
  %v297 = vld [vmem:[#allocation2 + $0x6b] sm:$0xff]
  %v298 = vld [vmem:[#allocation2 + $0x7b] sm:$0xff]
  %v299 = vld [vmem:[#allocation2 + $0x83] sm:$0xff]
  %v300 = vld [vmem:[#allocation2 + $0x93] sm:$0xff]
  %v301 = vld [vmem:[#allocation2 + $0x9b] sm:$0xff]
  %v302 = vld [vmem:[#allocation2 + $0xab] sm:$0xff]
  %v303 = vld [vmem:[#allocation2 + $0xb3] sm:$0xff]
  %v304 = vld [vmem:[%s0 + $0x3] sm:$0x1]
  %v305 = vperm.slane %v304, 0
  %v306 = vmul.f32 %v288, %v305
  %v307 = vmul.f32 %v289, %v305
  %v308 = vmul.f32 %v290, %v305
  %v309 = vmul.f32 %v291, %v305
  %v310 = vmul.f32 %v292, %v305
  %v311 = vmul.f32 %v293, %v305
  %v312 = vmul.f32 %v294, %v305
  %v313 = vmul.f32 %v295, %v305
  %v314 = vmul.f32 %v296, %v305
  %v315 = vmul.f32 %v297, %v305
  %v316 = vmul.f32 %v298, %v305
  %v317 = vmul.f32 %v299, %v305
  %v318 = vmul.f32 %v300, %v305
  %v319 = vmul.f32 %v301, %v305
  %v320 = vmul.f32 %v302, %v305
  %v321 = vmul.f32 %v303, %v305
  %v322 = vadd.f32 %v272, %v306
  %v323 = vadd.f32 %v273, %v307
  %v324 = vadd.f32 %v274, %v308
  %v325 = vadd.f32 %v275, %v309
  %v326 = vadd.f32 %v276, %v310
  %v327 = vadd.f32 %v277, %v311
  %v328 = vadd.f32 %v278, %v312
  %v329 = vadd.f32 %v279, %v313
  %v330 = vadd.f32 %v280, %v314
  %v331 = vadd.f32 %v281, %v315
  %v332 = vadd.f32 %v282, %v316
  %v333 = vadd.f32 %v283, %v317
  %v334 = vadd.f32 %v284, %v318
  %v335 = vadd.f32 %v285, %v319
  %v336 = vadd.f32 %v286, %v320
  %v337 = vadd.f32 %v287, %v321
  %v338 = vld [vmem:[#allocation2 + $0x4] sm:$0xff]
  %v339 = vld [vmem:[#allocation2 + $0xc] sm:$0xff]
  %v340 = vld [vmem:[#allocation2 + $0x1c] sm:$0xff]
  %v341 = vld [vmem:[#allocation2 + $0x24] sm:$0xff]
  %v342 = vld [vmem:[#allocation2 + $0x34] sm:$0xff]
  %v343 = vld [vmem:[#allocation2 + $0x3c] sm:$0xff]
  %v344 = vld [vmem:[#allocation2 + $0x4c] sm:$0xff]
  %v345 = vld [vmem:[#allocation2 + $0x54] sm:$0xff]
  %v346 = vld [vmem:[#allocation2 + $0x64] sm:$0xff]
  %v347 = vld [vmem:[#allocation2 + $0x6c] sm:$0xff]
  %v348 = vld [vmem:[#allocation2 + $0x7c] sm:$0xff]
  %v349 = vld [vmem:[#allocation2 + $0x84] sm:$0xff]
  %v350 = vld [vmem:[#allocation2 + $0x94] sm:$0xff]
  %v351 = vld [vmem:[#allocation2 + $0x9c] sm:$0xff]
  %v352 = vld [vmem:[#allocation2 + $0xac] sm:$0xff]
  %v353 = vld [vmem:[#allocation2 + $0xb4] sm:$0xff]
  %v354 = vld [vmem:[%s0 + $0x4] sm:$0x1]
  %v355 = vperm.slane %v354, 0
  %v356 = vmul.f32 %v338, %v355
  %v357 = vmul.f32 %v339, %v355
  %v358 = vmul.f32 %v340, %v355
  %v359 = vmul.f32 %v341, %v355
  %v360 = vmul.f32 %v342, %v355
  %v361 = vmul.f32 %v343, %v355
  %v362 = vmul.f32 %v344, %v355
  %v363 = vmul.f32 %v345, %v355
  %v364 = vmul.f32 %v346, %v355
  %v365 = vmul.f32 %v347, %v355
  %v366 = vmul.f32 %v348, %v355
  %v367 = vmul.f32 %v349, %v355
  %v368 = vmul.f32 %v350, %v355
  %v369 = vmul.f32 %v351, %v355
  %v370 = vmul.f32 %v352, %v355
  %v371 = vmul.f32 %v353, %v355
  %v372 = vadd.f32 %v322, %v356
  %v373 = vadd.f32 %v323, %v357
  %v374 = vadd.f32 %v324, %v358
  %v375 = vadd.f32 %v325, %v359
  %v376 = vadd.f32 %v326, %v360
  %v377 = vadd.f32 %v327, %v361
  %v378 = vadd.f32 %v328, %v362
  %v379 = vadd.f32 %v329, %v363
  %v380 = vadd.f32 %v330, %v364
  %v381 = vadd.f32 %v331, %v365
  %v382 = vadd.f32 %v332, %v366
  %v383 = vadd.f32 %v333, %v367
  %v384 = vadd.f32 %v334, %v368
  %v385 = vadd.f32 %v335, %v369
  %v386 = vadd.f32 %v336, %v370
  %v387 = vadd.f32 %v337, %v371
  %s388 = scalar_lea.vmem [#allocation2], 24
  %v389 = vld [vmem:[%s388] sm:$0xff]
  %v390 = vld [vmem:[%s388 + $0x8] sm:$0xff]
  %v391 = vld [vmem:[%s388 + $0x18] sm:$0xff]
  %v392 = vld [vmem:[%s388 + $0x20] sm:$0xff]
  %v393 = vld [vmem:[%s388 + $0x30] sm:$0xff]
  %v394 = vld [vmem:[%s388 + $0x38] sm:$0xff]
  %v395 = vld [vmem:[%s388 + $0x48] sm:$0xff]
  %v396 = vld [vmem:[%s388 + $0x50] sm:$0xff]
  %v397 = vld [vmem:[%s388 + $0x60] sm:$0xff]
  %v398 = vld [vmem:[%s388 + $0x68] sm:$0xff]
  %v399 = vld [vmem:[%s388 + $0x78] sm:$0xff]
  %v400 = vld [vmem:[%s388 + $0x80] sm:$0xff]
  %v401 = vld [vmem:[%s388 + $0x90] sm:$0xff]
  %v402 = vld [vmem:[%s388 + $0x98] sm:$0xff]
  %v403 = vld [vmem:[%s388 + $0xa8] sm:$0xff]
  %v404 = vld [vmem:[%s388 + $0xb0] sm:$0xff]
  %v405 = vld [vmem:[%s0 + $0x5] sm:$0x1]
  %v406 = vperm.slane %v405, 0
  %v407 = vmul.f32 %v389, %v406
  %v408 = vmul.f32 %v390, %v406
  %v409 = vmul.f32 %v391, %v406
  %v410 = vmul.f32 %v392, %v406
  %v411 = vmul.f32 %v393, %v406
  %v412 = vmul.f32 %v394, %v406
  %v413 = vmul.f32 %v395, %v406
  %v414 = vmul.f32 %v396, %v406
  %v415 = vmul.f32 %v397, %v406
  %v416 = vmul.f32 %v398, %v406
  %v417 = vmul.f32 %v399, %v406
  %v418 = vmul.f32 %v400, %v406
  %v419 = vmul.f32 %v401, %v406
  %v420 = vmul.f32 %v402, %v406
  %v421 = vmul.f32 %v403, %v406
  %v422 = vmul.f32 %v404, %v406
  %v423 = vadd.f32 %v372, %v407
  %v424 = vadd.f32 %v373, %v408
  %v425 = vadd.f32 %v374, %v409
  %v426 = vadd.f32 %v375, %v410
  %v427 = vadd.f32 %v376, %v411
  %v428 = vadd.f32 %v377, %v412
  %v429 = vadd.f32 %v378, %v413
  %v430 = vadd.f32 %v379, %v414
  %v431 = vadd.f32 %v380, %v415
  %v432 = vadd.f32 %v381, %v416
  %v433 = vadd.f32 %v382, %v417
  %v434 = vadd.f32 %v383, %v418
  %v435 = vadd.f32 %v384, %v419
  %v436 = vadd.f32 %v385, %v420
  %v437 = vadd.f32 %v386, %v421
  %v438 = vadd.f32 %v387, %v422
  %v439 = vld [vmem:[%s388 + $0x1] sm:$0xff]
  %v440 = vld [vmem:[%s388 + $0x9] sm:$0xff]
  %v441 = vld [vmem:[%s388 + $0x19] sm:$0xff]
  %v442 = vld [vmem:[%s388 + $0x21] sm:$0xff]
  %v443 = vld [vmem:[%s388 + $0x31] sm:$0xff]
  %v444 = vld [vmem:[%s388 + $0x39] sm:$0xff]
  %v445 = vld [vmem:[%s388 + $0x49] sm:$0xff]
  %v446 = vld [vmem:[%s388 + $0x51] sm:$0xff]
  %v447 = vld [vmem:[%s388 + $0x61] sm:$0xff]
  %v448 = vld [vmem:[%s388 + $0x69] sm:$0xff]
  %v449 = vld [vmem:[%s388 + $0x79] sm:$0xff]
  %v450 = vld [vmem:[%s388 + $0x81] sm:$0xff]
  %v451 = vld [vmem:[%s388 + $0x91] sm:$0xff]
  %v452 = vld [vmem:[%s388 + $0x99] sm:$0xff]
  %v453 = vld [vmem:[%s388 + $0xa9] sm:$0xff]
  %v454 = vld [vmem:[%s388 + $0xb1] sm:$0xff]
  %v455 = vld [vmem:[%s0 + $0x6] sm:$0x1]
  %v456 = vperm.slane %v455, 0
  %v457 = vmul.f32 %v439, %v456
  %v458 = vmul.f32 %v440, %v456
  %v459 = vmul.f32 %v441, %v456
  %v460 = vmul.f32 %v442, %v456
  %v461 = vmul.f32 %v443, %v456
  %v462 = vmul.f32 %v444, %v456
  %v463 = vmul.f32 %v445, %v456
  %v464 = vmul.f32 %v446, %v456
  %v465 = vmul.f32 %v447, %v456
  %v466 = vmul.f32 %v448, %v456
  %v467 = vmul.f32 %v449, %v456
  %v468 = vmul.f32 %v450, %v456
  %v469 = vmul.f32 %v451, %v456
  %v470 = vmul.f32 %v452, %v456
  %v471 = vmul.f32 %v453, %v456
  %v472 = vmul.f32 %v454, %v456
  %v473 = vadd.f32 %v423, %v457
  %v474 = vadd.f32 %v424, %v458
  %v475 = vadd.f32 %v425, %v459
  %v476 = vadd.f32 %v426, %v460
  %v477 = vadd.f32 %v427, %v461
  %v478 = vadd.f32 %v428, %v462
  %v479 = vadd.f32 %v429, %v463
  %v480 = vadd.f32 %v430, %v464
  %v481 = vadd.f32 %v431, %v465
  %v482 = vadd.f32 %v432, %v466
  %v483 = vadd.f32 %v433, %v467
  %v484 = vadd.f32 %v434, %v468
  %v485 = vadd.f32 %v435, %v469
  %v486 = vadd.f32 %v436, %v470
  %v487 = vadd.f32 %v437, %v471
  %v488 = vadd.f32 %v438, %v472
  %v489 = vld [vmem:[%s388 + $0x2] sm:$0xff]
  %v490 = vld [vmem:[%s388 + $0xa] sm:$0xff]
  %v491 = vld [vmem:[%s388 + $0x1a] sm:$0xff]
  %v492 = vld [vmem:[%s388 + $0x22] sm:$0xff]
  %v493 = vld [vmem:[%s388 + $0x32] sm:$0xff]
  %v494 = vld [vmem:[%s388 + $0x3a] sm:$0xff]
  %v495 = vld [vmem:[%s388 + $0x4a] sm:$0xff]
  %v496 = vld [vmem:[%s388 + $0x52] sm:$0xff]
  %v497 = vld [vmem:[%s388 + $0x62] sm:$0xff]
  %v498 = vld [vmem:[%s388 + $0x6a] sm:$0xff]
  %v499 = vld [vmem:[%s388 + $0x7a] sm:$0xff]
  %v500 = vld [vmem:[%s388 + $0x82] sm:$0xff]
  %v501 = vld [vmem:[%s388 + $0x92] sm:$0xff]
  %v502 = vld [vmem:[%s388 + $0x9a] sm:$0xff]
  %v503 = vld [vmem:[%s388 + $0xaa] sm:$0xff]
  %v504 = vld [vmem:[%s388 + $0xb2] sm:$0xff]
  %v505 = vld [vmem:[%s0 + $0x7] sm:$0x1]
  %v506 = vperm.slane %v505, 0
  %v507 = vmul.f32 %v489, %v506
  %v508 = vmul.f32 %v490, %v506
  %v509 = vmul.f32 %v491, %v506
  %v510 = vmul.f32 %v492, %v506
  %v511 = vmul.f32 %v493, %v506
  %v512 = vmul.f32 %v494, %v506
  %v513 = vmul.f32 %v495, %v506
  %v514 = vmul.f32 %v496, %v506
  %v515 = vmul.f32 %v497, %v506
  %v516 = vmul.f32 %v498, %v506
  %v517 = vmul.f32 %v499, %v506
  %v518 = vmul.f32 %v500, %v506
  %v519 = vmul.f32 %v501, %v506
  %v520 = vmul.f32 %v502, %v506
  %v521 = vmul.f32 %v503, %v506
  %v522 = vmul.f32 %v504, %v506
  %v523 = vadd.f32 %v473, %v507
  %v524 = vadd.f32 %v474, %v508
  %v525 = vadd.f32 %v475, %v509
  %v526 = vadd.f32 %v476, %v510
  %v527 = vadd.f32 %v477, %v511
  %v528 = vadd.f32 %v478, %v512
  %v529 = vadd.f32 %v479, %v513
  %v530 = vadd.f32 %v480, %v514
  %v531 = vadd.f32 %v481, %v515
  %v532 = vadd.f32 %v482, %v516
  %v533 = vadd.f32 %v483, %v517
  %v534 = vadd.f32 %v484, %v518
  %v535 = vadd.f32 %v485, %v519
  %v536 = vadd.f32 %v486, %v520
  %v537 = vadd.f32 %v487, %v521
  %v538 = vadd.f32 %v488, %v522
  %v539 = vld [vmem:[%s388 + $0x3] sm:$0xff]
  %v540 = vld [vmem:[%s388 + $0xb] sm:$0xff]
  %v541 = vld [vmem:[%s388 + $0x1b] sm:$0xff]
  %v542 = vld [vmem:[%s388 + $0x23] sm:$0xff]
  %v543 = vld [vmem:[%s388 + $0x33] sm:$0xff]
  %v544 = vld [vmem:[%s388 + $0x3b] sm:$0xff]
  %v545 = vld [vmem:[%s388 + $0x4b] sm:$0xff]
  %v546 = vld [vmem:[%s388 + $0x53] sm:$0xff]
  %v547 = vld [vmem:[%s388 + $0x63] sm:$0xff]
  %v548 = vld [vmem:[%s388 + $0x6b] sm:$0xff]
  %v549 = vld [vmem:[%s388 + $0x7b] sm:$0xff]
  %v550 = vld [vmem:[%s388 + $0x83] sm:$0xff]
  %v551 = vld [vmem:[%s388 + $0x93] sm:$0xff]
  %v552 = vld [vmem:[%s388 + $0x9b] sm:$0xff]
  %v553 = vld [vmem:[%s388 + $0xab] sm:$0xff]
  %v554 = vld [vmem:[%s388 + $0xb3] sm:$0xff]
  %v555 = vld [vmem:[%s0 + $0x8] sm:$0x1]
  %v556 = vperm.slane %v555, 0
  %v557 = vmul.f32 %v539, %v556
  %v558 = vmul.f32 %v540, %v556
  %v559 = vmul.f32 %v541, %v556
  %v560 = vmul.f32 %v542, %v556
  %v561 = vmul.f32 %v543, %v556
  %v562 = vmul.f32 %v544, %v556
  %v563 = vmul.f32 %v545, %v556
  %v564 = vmul.f32 %v546, %v556
  %v565 = vmul.f32 %v547, %v556
  %v566 = vmul.f32 %v548, %v556
  %v567 = vmul.f32 %v549, %v556
  %v568 = vmul.f32 %v550, %v556
  %v569 = vmul.f32 %v551, %v556
  %v570 = vmul.f32 %v552, %v556
  %v571 = vmul.f32 %v553, %v556
  %v572 = vmul.f32 %v554, %v556
  %v573 = vadd.f32 %v523, %v557
  %v574 = vadd.f32 %v524, %v558
  %v575 = vadd.f32 %v525, %v559
  %v576 = vadd.f32 %v526, %v560
  %v577 = vadd.f32 %v527, %v561
  %v578 = vadd.f32 %v528, %v562
  %v579 = vadd.f32 %v529, %v563
  %v580 = vadd.f32 %v530, %v564
  %v581 = vadd.f32 %v531, %v565
  %v582 = vadd.f32 %v532, %v566
  %v583 = vadd.f32 %v533, %v567
  %v584 = vadd.f32 %v534, %v568
  %v585 = vadd.f32 %v535, %v569
  %v586 = vadd.f32 %v536, %v570
  %v587 = vadd.f32 %v537, %v571
  %v588 = vadd.f32 %v538, %v572
  %v589 = vld [vmem:[%s388 + $0x4] sm:$0xff]
  %v590 = vld [vmem:[%s388 + $0xc] sm:$0xff]
  %v591 = vld [vmem:[%s388 + $0x1c] sm:$0xff]
  %v592 = vld [vmem:[%s388 + $0x24] sm:$0xff]
  %v593 = vld [vmem:[%s388 + $0x34] sm:$0xff]
  %v594 = vld [vmem:[%s388 + $0x3c] sm:$0xff]
  %v595 = vld [vmem:[%s388 + $0x4c] sm:$0xff]
  %v596 = vld [vmem:[%s388 + $0x54] sm:$0xff]
  %v597 = vld [vmem:[%s388 + $0x64] sm:$0xff]
  %v598 = vld [vmem:[%s388 + $0x6c] sm:$0xff]
  %v599 = vld [vmem:[%s388 + $0x7c] sm:$0xff]
  %v600 = vld [vmem:[%s388 + $0x84] sm:$0xff]
  %v601 = vld [vmem:[%s388 + $0x94] sm:$0xff]
  %v602 = vld [vmem:[%s388 + $0x9c] sm:$0xff]
  %v603 = vld [vmem:[%s388 + $0xac] sm:$0xff]
  %v604 = vld [vmem:[%s388 + $0xb4] sm:$0xff]
  %v605 = vld [vmem:[%s0 + $0x9] sm:$0x1]
  %v606 = vperm.slane %v605, 0
  %v607 = vmul.f32 %v589, %v606
  %v608 = vmul.f32 %v590, %v606
  %v609 = vmul.f32 %v591, %v606
  %v610 = vmul.f32 %v592, %v606
  %v611 = vmul.f32 %v593, %v606
  %v612 = vmul.f32 %v594, %v606
  %v613 = vmul.f32 %v595, %v606
  %v614 = vmul.f32 %v596, %v606
  %v615 = vmul.f32 %v597, %v606
  %v616 = vmul.f32 %v598, %v606
  %v617 = vmul.f32 %v599, %v606
  %v618 = vmul.f32 %v600, %v606
  %v619 = vmul.f32 %v601, %v606
  %v620 = vmul.f32 %v602, %v606
  %v621 = vmul.f32 %v603, %v606
  %v622 = vmul.f32 %v604, %v606
  %v623 = vadd.f32 %v573, %v607
  %v624 = vadd.f32 %v574, %v608
  %v625 = vadd.f32 %v575, %v609
  %v626 = vadd.f32 %v576, %v610
  %v627 = vadd.f32 %v577, %v611
  %v628 = vadd.f32 %v578, %v612
  %v629 = vadd.f32 %v579, %v613
  %v630 = vadd.f32 %v580, %v614
  %v631 = vadd.f32 %v581, %v615
  %v632 = vadd.f32 %v582, %v616
  %v633 = vadd.f32 %v583, %v617
  %v634 = vadd.f32 %v584, %v618
  %v635 = vadd.f32 %v585, %v619
  %v636 = vadd.f32 %v586, %v620
  %v637 = vadd.f32 %v587, %v621
  %v638 = vadd.f32 %v588, %v622
  %v639 = vld [vmem:[%s105] sm:$0xff]
  %v640 = vld [vmem:[%s105 + $0x8] sm:$0xff]
  %v641 = vld [vmem:[%s105 + $0x18] sm:$0xff]
  %v642 = vld [vmem:[%s105 + $0x20] sm:$0xff]
  %v643 = vld [vmem:[%s105 + $0x30] sm:$0xff]
  %v644 = vld [vmem:[%s105 + $0x38] sm:$0xff]
  %v645 = vld [vmem:[%s105 + $0x48] sm:$0xff]
  %v646 = vld [vmem:[%s105 + $0x50] sm:$0xff]
  %v647 = vld [vmem:[%s105 + $0x60] sm:$0xff]
  %v648 = vld [vmem:[%s105 + $0x68] sm:$0xff]
  %v649 = vld [vmem:[%s105 + $0x78] sm:$0xff]
  %v650 = vld [vmem:[%s105 + $0x80] sm:$0xff]
  %v651 = vld [vmem:[%s105 + $0x90] sm:$0xff]
  %v652 = vld [vmem:[%s105 + $0x98] sm:$0xff]
  %v653 = vld [vmem:[%s105 + $0xa8] sm:$0xff]
  %v654 = vld [vmem:[%s105 + $0xb0] sm:$0xff]
  %v655 = vld [vmem:[%s0 + $0xa] sm:$0x1]
  %v656 = vperm.slane %v655, 0
  %v657 = vmul.f32 %v639, %v656
  %v658 = vmul.f32 %v640, %v656
  %v659 = vmul.f32 %v641, %v656
  %v660 = vmul.f32 %v642, %v656
  %v661 = vmul.f32 %v643, %v656
  %v662 = vmul.f32 %v644, %v656
  %v663 = vmul.f32 %v645, %v656
  %v664 = vmul.f32 %v646, %v656
  %v665 = vmul.f32 %v647, %v656
  %v666 = vmul.f32 %v648, %v656
  %v667 = vmul.f32 %v649, %v656
  %v668 = vmul.f32 %v650, %v656
  %v669 = vmul.f32 %v651, %v656
  %v670 = vmul.f32 %v652, %v656
  %v671 = vmul.f32 %v653, %v656
  %v672 = vmul.f32 %v654, %v656
  %v673 = vadd.f32 %v623, %v657
  %v674 = vadd.f32 %v624, %v658
  %v675 = vadd.f32 %v625, %v659
  %v676 = vadd.f32 %v626, %v660
  %v677 = vadd.f32 %v627, %v661
  %v678 = vadd.f32 %v628, %v662
  %v679 = vadd.f32 %v629, %v663
  %v680 = vadd.f32 %v630, %v664
  %v681 = vadd.f32 %v631, %v665
  %v682 = vadd.f32 %v632, %v666
  %v683 = vadd.f32 %v633, %v667
  %v684 = vadd.f32 %v634, %v668
  %v685 = vadd.f32 %v635, %v669
  %v686 = vadd.f32 %v636, %v670
  %v687 = vadd.f32 %v637, %v671
  %v688 = vadd.f32 %v638, %v672
  %v689 = vld [vmem:[%s105 + $0x1] sm:$0xff]
  %v690 = vld [vmem:[%s105 + $0x9] sm:$0xff]
  %v691 = vld [vmem:[%s105 + $0x19] sm:$0xff]
  %v692 = vld [vmem:[%s105 + $0x21] sm:$0xff]
  %v693 = vld [vmem:[%s105 + $0x31] sm:$0xff]
  %v694 = vld [vmem:[%s105 + $0x39] sm:$0xff]
  %v695 = vld [vmem:[%s105 + $0x49] sm:$0xff]
  %v696 = vld [vmem:[%s105 + $0x51] sm:$0xff]
  %v697 = vld [vmem:[%s105 + $0x61] sm:$0xff]
  %v698 = vld [vmem:[%s105 + $0x69] sm:$0xff]
  %v699 = vld [vmem:[%s105 + $0x79] sm:$0xff]
  %v700 = vld [vmem:[%s105 + $0x81] sm:$0xff]
  %v701 = vld [vmem:[%s105 + $0x91] sm:$0xff]
  %v702 = vld [vmem:[%s105 + $0x99] sm:$0xff]
  %v703 = vld [vmem:[%s105 + $0xa9] sm:$0xff]
  %v704 = vld [vmem:[%s105 + $0xb1] sm:$0xff]
  %v705 = vld [vmem:[%s0 + $0xb] sm:$0x1]
  %v706 = vperm.slane %v705, 0
  %v707 = vmul.f32 %v689, %v706
  %v708 = vmul.f32 %v690, %v706
  %v709 = vmul.f32 %v691, %v706
  %v710 = vmul.f32 %v692, %v706
  %v711 = vmul.f32 %v693, %v706
  %v712 = vmul.f32 %v694, %v706
  %v713 = vmul.f32 %v695, %v706
  %v714 = vmul.f32 %v696, %v706
  %v715 = vmul.f32 %v697, %v706
  %v716 = vmul.f32 %v698, %v706
  %v717 = vmul.f32 %v699, %v706
  %v718 = vmul.f32 %v700, %v706
  %v719 = vmul.f32 %v701, %v706
  %v720 = vmul.f32 %v702, %v706
  %v721 = vmul.f32 %v703, %v706
  %v722 = vmul.f32 %v704, %v706
  %v723 = vadd.f32 %v673, %v707
  %v724 = vadd.f32 %v674, %v708
  %v725 = vadd.f32 %v675, %v709
  %v726 = vadd.f32 %v676, %v710
  %v727 = vadd.f32 %v677, %v711
  %v728 = vadd.f32 %v678, %v712
  %v729 = vadd.f32 %v679, %v713
  %v730 = vadd.f32 %v680, %v714
  %v731 = vadd.f32 %v681, %v715
  %v732 = vadd.f32 %v682, %v716
  %v733 = vadd.f32 %v683, %v717
  %v734 = vadd.f32 %v684, %v718
  %v735 = vadd.f32 %v685, %v719
  %v736 = vadd.f32 %v686, %v720
  %v737 = vadd.f32 %v687, %v721
  %v738 = vadd.f32 %v688, %v722
  %v739 = vld [vmem:[%s105 + $0x2] sm:$0xff]
  %v740 = vld [vmem:[%s105 + $0xa] sm:$0xff]
  %v741 = vld [vmem:[%s105 + $0x1a] sm:$0xff]
  %v742 = vld [vmem:[%s105 + $0x22] sm:$0xff]
  %v743 = vld [vmem:[%s105 + $0x32] sm:$0xff]
  %v744 = vld [vmem:[%s105 + $0x3a] sm:$0xff]
  %v745 = vld [vmem:[%s105 + $0x4a] sm:$0xff]
  %v746 = vld [vmem:[%s105 + $0x52] sm:$0xff]
  %v747 = vld [vmem:[%s105 + $0x62] sm:$0xff]
  %v748 = vld [vmem:[%s105 + $0x6a] sm:$0xff]
  %v749 = vld [vmem:[%s105 + $0x7a] sm:$0xff]
  %v750 = vld [vmem:[%s105 + $0x82] sm:$0xff]
  %v751 = vld [vmem:[%s105 + $0x92] sm:$0xff]
  %v752 = vld [vmem:[%s105 + $0x9a] sm:$0xff]
  %v753 = vld [vmem:[%s105 + $0xaa] sm:$0xff]
  %v754 = vld [vmem:[%s105 + $0xb2] sm:$0xff]
  %v755 = vld [vmem:[%s0 + $0xc] sm:$0x1]
  %v756 = vperm.slane %v755, 0
  %v757 = vmul.f32 %v739, %v756
  %v758 = vmul.f32 %v740, %v756
  %v759 = vmul.f32 %v741, %v756
  %v760 = vmul.f32 %v742, %v756
  %v761 = vmul.f32 %v743, %v756
  %v762 = vmul.f32 %v744, %v756
  %v763 = vmul.f32 %v745, %v756
  %v764 = vmul.f32 %v746, %v756
  %v765 = vmul.f32 %v747, %v756
  %v766 = vmul.f32 %v748, %v756
  %v767 = vmul.f32 %v749, %v756
  %v768 = vmul.f32 %v750, %v756
  %v769 = vmul.f32 %v751, %v756
  %v770 = vmul.f32 %v752, %v756
  %v771 = vmul.f32 %v753, %v756
  %v772 = vmul.f32 %v754, %v756
  %v773 = vadd.f32 %v723, %v757
  %v774 = vadd.f32 %v724, %v758
  %v775 = vadd.f32 %v725, %v759
  %v776 = vadd.f32 %v726, %v760
  %v777 = vadd.f32 %v727, %v761
  %v778 = vadd.f32 %v728, %v762
  %v779 = vadd.f32 %v729, %v763
  %v780 = vadd.f32 %v730, %v764
  %v781 = vadd.f32 %v731, %v765
  %v782 = vadd.f32 %v732, %v766
  %v783 = vadd.f32 %v733, %v767
  %v784 = vadd.f32 %v734, %v768
  %v785 = vadd.f32 %v735, %v769
  %v786 = vadd.f32 %v736, %v770
  %v787 = vadd.f32 %v737, %v771
  %v788 = vadd.f32 %v738, %v772
  %v789 = vld [vmem:[%s105 + $0x3] sm:$0xff]
  %v790 = vld [vmem:[%s105 + $0xb] sm:$0xff]
  %v791 = vld [vmem:[%s105 + $0x1b] sm:$0xff]
  %v792 = vld [vmem:[%s105 + $0x23] sm:$0xff]
  %v793 = vld [vmem:[%s105 + $0x33] sm:$0xff]
  %v794 = vld [vmem:[%s105 + $0x3b] sm:$0xff]
  %v795 = vld [vmem:[%s105 + $0x4b] sm:$0xff]
  %v796 = vld [vmem:[%s105 + $0x53] sm:$0xff]
  %v797 = vld [vmem:[%s105 + $0x63] sm:$0xff]
  %v798 = vld [vmem:[%s105 + $0x6b] sm:$0xff]
  %v799 = vld [vmem:[%s105 + $0x7b] sm:$0xff]
  %v800 = vld [vmem:[%s105 + $0x83] sm:$0xff]
  %v801 = vld [vmem:[%s105 + $0x93] sm:$0xff]
  %v802 = vld [vmem:[%s105 + $0x9b] sm:$0xff]
  %v803 = vld [vmem:[%s105 + $0xab] sm:$0xff]
  %v804 = vld [vmem:[%s105 + $0xb3] sm:$0xff]
  %v805 = vld [vmem:[%s0 + $0xd] sm:$0x1]
  %v806 = vperm.slane %v805, 0
  %v807 = vmul.f32 %v789, %v806
  %v808 = vmul.f32 %v790, %v806
  %v809 = vmul.f32 %v791, %v806
  %v810 = vmul.f32 %v792, %v806
  %v811 = vmul.f32 %v793, %v806
  %v812 = vmul.f32 %v794, %v806
  %v813 = vmul.f32 %v795, %v806
  %v814 = vmul.f32 %v796, %v806
  %v815 = vmul.f32 %v797, %v806
  %v816 = vmul.f32 %v798, %v806
  %v817 = vmul.f32 %v799, %v806
  %v818 = vmul.f32 %v800, %v806
  %v819 = vmul.f32 %v801, %v806
  %v820 = vmul.f32 %v802, %v806
  %v821 = vmul.f32 %v803, %v806
  %v822 = vmul.f32 %v804, %v806
  %v823 = vadd.f32 %v773, %v807
  %v824 = vadd.f32 %v774, %v808
  %v825 = vadd.f32 %v775, %v809
  %v826 = vadd.f32 %v776, %v810
  %v827 = vadd.f32 %v777, %v811
  %v828 = vadd.f32 %v778, %v812
  %v829 = vadd.f32 %v779, %v813
  %v830 = vadd.f32 %v780, %v814
  %v831 = vadd.f32 %v781, %v815
  %v832 = vadd.f32 %v782, %v816
  %v833 = vadd.f32 %v783, %v817
  %v834 = vadd.f32 %v784, %v818
  %v835 = vadd.f32 %v785, %v819
  %v836 = vadd.f32 %v786, %v820
  %v837 = vadd.f32 %v787, %v821
  %v838 = vadd.f32 %v788, %v822
  %v839 = vld [vmem:[%s105 + $0x4] sm:$0xff]
  %v840 = vld [vmem:[%s105 + $0xc] sm:$0xff]
  %v841 = vld [vmem:[%s105 + $0x1c] sm:$0xff]
  %v842 = vld [vmem:[%s105 + $0x24] sm:$0xff]
  %v843 = vld [vmem:[%s105 + $0x34] sm:$0xff]
  %v844 = vld [vmem:[%s105 + $0x3c] sm:$0xff]
  %v845 = vld [vmem:[%s105 + $0x4c] sm:$0xff]
  %v846 = vld [vmem:[%s105 + $0x54] sm:$0xff]
  %v847 = vld [vmem:[%s105 + $0x64] sm:$0xff]
  %v848 = vld [vmem:[%s105 + $0x6c] sm:$0xff]
  %v849 = vld [vmem:[%s105 + $0x7c] sm:$0xff]
  %v850 = vld [vmem:[%s105 + $0x84] sm:$0xff]
  %v851 = vld [vmem:[%s105 + $0x94] sm:$0xff]
  %v852 = vld [vmem:[%s105 + $0x9c] sm:$0xff]
  %v853 = vld [vmem:[%s105 + $0xac] sm:$0xff]
  %v854 = vld [vmem:[%s105 + $0xb4] sm:$0xff]
  %v855 = vld [vmem:[%s0 + $0xe] sm:$0x1]
  %v856 = vperm.slane %v855, 0
  %v857 = vmul.f32 %v839, %v856
  %v858 = vmul.f32 %v840, %v856
  %v859 = vmul.f32 %v841, %v856
  %v860 = vmul.f32 %v842, %v856
  %v861 = vmul.f32 %v843, %v856
  %v862 = vmul.f32 %v844, %v856
  %v863 = vmul.f32 %v845, %v856
  %v864 = vmul.f32 %v846, %v856
  %v865 = vmul.f32 %v847, %v856
  %v866 = vmul.f32 %v848, %v856
  %v867 = vmul.f32 %v849, %v856
  %v868 = vmul.f32 %v850, %v856
  %v869 = vmul.f32 %v851, %v856
  %v870 = vmul.f32 %v852, %v856
  %v871 = vmul.f32 %v853, %v856
  %v872 = vmul.f32 %v854, %v856
  %v873 = vadd.f32 %v823, %v857
  %v874 = vadd.f32 %v824, %v858
  %v875 = vadd.f32 %v825, %v859
  %v876 = vadd.f32 %v826, %v860
  %v877 = vadd.f32 %v827, %v861
  %v878 = vadd.f32 %v828, %v862
  %v879 = vadd.f32 %v829, %v863
  %v880 = vadd.f32 %v830, %v864
  %v881 = vadd.f32 %v831, %v865
  %v882 = vadd.f32 %v832, %v866
  %v883 = vadd.f32 %v833, %v867
  %v884 = vadd.f32 %v834, %v868
  %v885 = vadd.f32 %v835, %v869
  %v886 = vadd.f32 %v836, %v870
  %v887 = vadd.f32 %v837, %v871
  %v888 = vadd.f32 %v838, %v872
  %s889 = scalar_lea.vmem [#allocation2], 72
  %v890 = vld [vmem:[%s889] sm:$0xff]
  %v891 = vld [vmem:[%s889 + $0x8] sm:$0xff]
  %v892 = vld [vmem:[%s889 + $0x18] sm:$0xff]
  %v893 = vld [vmem:[%s889 + $0x20] sm:$0xff]
  %v894 = vld [vmem:[%s889 + $0x30] sm:$0xff]
  %v895 = vld [vmem:[%s889 + $0x38] sm:$0xff]
  %v896 = vld [vmem:[%s889 + $0x48] sm:$0xff]
  %v897 = vld [vmem:[%s889 + $0x50] sm:$0xff]
  %v898 = vld [vmem:[%s889 + $0x60] sm:$0xff]
  %v899 = vld [vmem:[%s889 + $0x68] sm:$0xff]
  %v900 = vld [vmem:[%s889 + $0x78] sm:$0xff]
  %v901 = vld [vmem:[%s889 + $0x80] sm:$0xff]
  %v902 = vld [vmem:[%s889 + $0x90] sm:$0xff]
  %v903 = vld [vmem:[%s889 + $0x98] sm:$0xff]
  %v904 = vld [vmem:[%s889 + $0xa8] sm:$0xff]
  %v905 = vld [vmem:[%s889 + $0xb0] sm:$0xff]
  %v906 = vld [vmem:[%s0 + $0xf] sm:$0x1]
  %v907 = vperm.slane %v906, 0
  %v908 = vmul.f32 %v890, %v907
  %v909 = vmul.f32 %v891, %v907
  %v910 = vmul.f32 %v892, %v907
  %v911 = vmul.f32 %v893, %v907
  %v912 = vmul.f32 %v894, %v907
  %v913 = vmul.f32 %v895, %v907
  %v914 = vmul.f32 %v896, %v907
  %v915 = vmul.f32 %v897, %v907
  %v916 = vmul.f32 %v898, %v907
  %v917 = vmul.f32 %v899, %v907
  %v918 = vmul.f32 %v900, %v907
  %v919 = vmul.f32 %v901, %v907
  %v920 = vmul.f32 %v902, %v907
  %v921 = vmul.f32 %v903, %v907
  %v922 = vmul.f32 %v904, %v907
  %v923 = vmul.f32 %v905, %v907
  %v924 = vadd.f32 %v873, %v908
  %v925 = vadd.f32 %v874, %v909
  %v926 = vadd.f32 %v875, %v910
  %v927 = vadd.f32 %v876, %v911
  %v928 = vadd.f32 %v877, %v912
  %v929 = vadd.f32 %v878, %v913
  %v930 = vadd.f32 %v879, %v914
  %v931 = vadd.f32 %v880, %v915
  %v932 = vadd.f32 %v881, %v916
  %v933 = vadd.f32 %v882, %v917
  %v934 = vadd.f32 %v883, %v918
  %v935 = vadd.f32 %v884, %v919
  %v936 = vadd.f32 %v885, %v920
  %v937 = vadd.f32 %v886, %v921
  %v938 = vadd.f32 %v887, %v922
  %v939 = vadd.f32 %v888, %v923
  %v940 = vld [vmem:[%s889 + $0x1] sm:$0xff]
  %v941 = vld [vmem:[%s889 + $0x9] sm:$0xff]
  %v942 = vld [vmem:[%s889 + $0x19] sm:$0xff]
  %v943 = vld [vmem:[%s889 + $0x21] sm:$0xff]
  %v944 = vld [vmem:[%s889 + $0x31] sm:$0xff]
  %v945 = vld [vmem:[%s889 + $0x39] sm:$0xff]
  %v946 = vld [vmem:[%s889 + $0x49] sm:$0xff]
  %v947 = vld [vmem:[%s889 + $0x51] sm:$0xff]
  %v948 = vld [vmem:[%s889 + $0x61] sm:$0xff]
  %v949 = vld [vmem:[%s889 + $0x69] sm:$0xff]
  %v950 = vld [vmem:[%s889 + $0x79] sm:$0xff]
  %v951 = vld [vmem:[%s889 + $0x81] sm:$0xff]
  %v952 = vld [vmem:[%s889 + $0x91] sm:$0xff]
  %v953 = vld [vmem:[%s889 + $0x99] sm:$0xff]
  %v954 = vld [vmem:[%s889 + $0xa9] sm:$0xff]
  %v955 = vld [vmem:[%s889 + $0xb1] sm:$0xff]
  %v956 = vld [vmem:[%s0 + $0x10] sm:$0x1]
  %v957 = vperm.slane %v956, 0
  %v958 = vmul.f32 %v940, %v957
  %v959 = vmul.f32 %v941, %v957
  %v960 = vmul.f32 %v942, %v957
  %v961 = vmul.f32 %v943, %v957
  %v962 = vmul.f32 %v944, %v957
  %v963 = vmul.f32 %v945, %v957
  %v964 = vmul.f32 %v946, %v957
  %v965 = vmul.f32 %v947, %v957
  %v966 = vmul.f32 %v948, %v957
  %v967 = vmul.f32 %v949, %v957
  %v968 = vmul.f32 %v950, %v957
  %v969 = vmul.f32 %v951, %v957
  %v970 = vmul.f32 %v952, %v957
  %v971 = vmul.f32 %v953, %v957
  %v972 = vmul.f32 %v954, %v957
  %v973 = vmul.f32 %v955, %v957
  %v974 = vadd.f32 %v924, %v958
  %v975 = vadd.f32 %v925, %v959
  %v976 = vadd.f32 %v926, %v960
  %v977 = vadd.f32 %v927, %v961
  %v978 = vadd.f32 %v928, %v962
  %v979 = vadd.f32 %v929, %v963
  %v980 = vadd.f32 %v930, %v964
  %v981 = vadd.f32 %v931, %v965
  %v982 = vadd.f32 %v932, %v966
  %v983 = vadd.f32 %v933, %v967
  %v984 = vadd.f32 %v934, %v968
  %v985 = vadd.f32 %v935, %v969
  %v986 = vadd.f32 %v936, %v970
  %v987 = vadd.f32 %v937, %v971
  %v988 = vadd.f32 %v938, %v972
  %v989 = vadd.f32 %v939, %v973
  %v990 = vld [vmem:[%s889 + $0x2] sm:$0xff]
  %v991 = vld [vmem:[%s889 + $0xa] sm:$0xff]
  %v992 = vld [vmem:[%s889 + $0x1a] sm:$0xff]
  %v993 = vld [vmem:[%s889 + $0x22] sm:$0xff]
  %v994 = vld [vmem:[%s889 + $0x32] sm:$0xff]
  %v995 = vld [vmem:[%s889 + $0x3a] sm:$0xff]
  %v996 = vld [vmem:[%s889 + $0x4a] sm:$0xff]
  %v997 = vld [vmem:[%s889 + $0x52] sm:$0xff]
  %v998 = vld [vmem:[%s889 + $0x62] sm:$0xff]
  %v999 = vld [vmem:[%s889 + $0x6a] sm:$0xff]
  %v1000 = vld [vmem:[%s889 + $0x7a] sm:$0xff]
  %v1001 = vld [vmem:[%s889 + $0x82] sm:$0xff]
  %v1002 = vld [vmem:[%s889 + $0x92] sm:$0xff]
  %v1003 = vld [vmem:[%s889 + $0x9a] sm:$0xff]
  %v1004 = vld [vmem:[%s889 + $0xaa] sm:$0xff]
  %v1005 = vld [vmem:[%s889 + $0xb2] sm:$0xff]
  %v1006 = vld [vmem:[%s0 + $0x11] sm:$0x1]
  %v1007 = vperm.slane %v1006, 0
  %v1008 = vmul.f32 %v990, %v1007
  %v1009 = vmul.f32 %v991, %v1007
  %v1010 = vmul.f32 %v992, %v1007
  %v1011 = vmul.f32 %v993, %v1007
  %v1012 = vmul.f32 %v994, %v1007
  %v1013 = vmul.f32 %v995, %v1007
  %v1014 = vmul.f32 %v996, %v1007
  %v1015 = vmul.f32 %v997, %v1007
  %v1016 = vmul.f32 %v998, %v1007
  %v1017 = vmul.f32 %v999, %v1007
  %v1018 = vmul.f32 %v1000, %v1007
  %v1019 = vmul.f32 %v1001, %v1007
  %v1020 = vmul.f32 %v1002, %v1007
  %v1021 = vmul.f32 %v1003, %v1007
  %v1022 = vmul.f32 %v1004, %v1007
  %v1023 = vmul.f32 %v1005, %v1007
  %v1024 = vadd.f32 %v974, %v1008
  %v1025 = vadd.f32 %v975, %v1009
  %v1026 = vadd.f32 %v976, %v1010
  %v1027 = vadd.f32 %v977, %v1011
  %v1028 = vadd.f32 %v978, %v1012
  %v1029 = vadd.f32 %v979, %v1013
  %v1030 = vadd.f32 %v980, %v1014
  %v1031 = vadd.f32 %v981, %v1015
  %v1032 = vadd.f32 %v982, %v1016
  %v1033 = vadd.f32 %v983, %v1017
  %v1034 = vadd.f32 %v984, %v1018
  %v1035 = vadd.f32 %v985, %v1019
  %v1036 = vadd.f32 %v986, %v1020
  %v1037 = vadd.f32 %v987, %v1021
  %v1038 = vadd.f32 %v988, %v1022
  %v1039 = vadd.f32 %v989, %v1023
  %v1040 = vld [vmem:[%s889 + $0x3] sm:$0xff]
  %v1041 = vld [vmem:[%s889 + $0xb] sm:$0xff]
  %v1042 = vld [vmem:[%s889 + $0x1b] sm:$0xff]
  %v1043 = vld [vmem:[%s889 + $0x23] sm:$0xff]
  %v1044 = vld [vmem:[%s889 + $0x33] sm:$0xff]
  %v1045 = vld [vmem:[%s889 + $0x3b] sm:$0xff]
  %v1046 = vld [vmem:[%s889 + $0x4b] sm:$0xff]
  %v1047 = vld [vmem:[%s889 + $0x53] sm:$0xff]
  %v1048 = vld [vmem:[%s889 + $0x63] sm:$0xff]
  %v1049 = vld [vmem:[%s889 + $0x6b] sm:$0xff]
  %v1050 = vld [vmem:[%s889 + $0x7b] sm:$0xff]
  %v1051 = vld [vmem:[%s889 + $0x83] sm:$0xff]
  %v1052 = vld [vmem:[%s889 + $0x93] sm:$0xff]
  %v1053 = vld [vmem:[%s889 + $0x9b] sm:$0xff]
  %v1054 = vld [vmem:[%s889 + $0xab] sm:$0xff]
  %v1055 = vld [vmem:[%s889 + $0xb3] sm:$0xff]
  %v1056 = vld [vmem:[%s0 + $0x12] sm:$0x1]
  %v1057 = vperm.slane %v1056, 0
  %v1058 = vmul.f32 %v1040, %v1057
  %v1059 = vmul.f32 %v1041, %v1057
  %v1060 = vmul.f32 %v1042, %v1057
  %v1061 = vmul.f32 %v1043, %v1057
  %v1062 = vmul.f32 %v1044, %v1057
  %v1063 = vmul.f32 %v1045, %v1057
  %v1064 = vmul.f32 %v1046, %v1057
  %v1065 = vmul.f32 %v1047, %v1057
  %v1066 = vmul.f32 %v1048, %v1057
  %v1067 = vmul.f32 %v1049, %v1057
  %v1068 = vmul.f32 %v1050, %v1057
  %v1069 = vmul.f32 %v1051, %v1057
  %v1070 = vmul.f32 %v1052, %v1057
  %v1071 = vmul.f32 %v1053, %v1057
  %v1072 = vmul.f32 %v1054, %v1057
  %v1073 = vmul.f32 %v1055, %v1057
  %v1074 = vadd.f32 %v1024, %v1058
  %v1075 = vadd.f32 %v1025, %v1059
  %v1076 = vadd.f32 %v1026, %v1060
  %v1077 = vadd.f32 %v1027, %v1061
  %v1078 = vadd.f32 %v1028, %v1062
  %v1079 = vadd.f32 %v1029, %v1063
  %v1080 = vadd.f32 %v1030, %v1064
  %v1081 = vadd.f32 %v1031, %v1065
  %v1082 = vadd.f32 %v1032, %v1066
  %v1083 = vadd.f32 %v1033, %v1067
  %v1084 = vadd.f32 %v1034, %v1068
  %v1085 = vadd.f32 %v1035, %v1069
  %v1086 = vadd.f32 %v1036, %v1070
  %v1087 = vadd.f32 %v1037, %v1071
  %v1088 = vadd.f32 %v1038, %v1072
  %v1089 = vadd.f32 %v1039, %v1073
  %v1090 = vld [vmem:[%s889 + $0x4] sm:$0xff]
  %v1091 = vld [vmem:[%s889 + $0xc] sm:$0xff]
  %v1092 = vld [vmem:[%s889 + $0x1c] sm:$0xff]
  %v1093 = vld [vmem:[%s889 + $0x24] sm:$0xff]
  %v1094 = vld [vmem:[%s889 + $0x34] sm:$0xff]
  %v1095 = vld [vmem:[%s889 + $0x3c] sm:$0xff]
  %v1096 = vld [vmem:[%s889 + $0x4c] sm:$0xff]
  %v1097 = vld [vmem:[%s889 + $0x54] sm:$0xff]
  %v1098 = vld [vmem:[%s889 + $0x64] sm:$0xff]
  %v1099 = vld [vmem:[%s889 + $0x6c] sm:$0xff]
  %v1100 = vld [vmem:[%s889 + $0x7c] sm:$0xff]
  %v1101 = vld [vmem:[%s889 + $0x84] sm:$0xff]
  %v1102 = vld [vmem:[%s889 + $0x94] sm:$0xff]
  %v1103 = vld [vmem:[%s889 + $0x9c] sm:$0xff]
  %v1104 = vld [vmem:[%s889 + $0xac] sm:$0xff]
  %v1105 = vld [vmem:[%s889 + $0xb4] sm:$0xff]
  %v1106 = vld [vmem:[%s0 + $0x13] sm:$0x1]
  %v1107 = vperm.slane %v1106, 0
  %v1108 = vmul.f32 %v1090, %v1107
  %v1109 = vmul.f32 %v1091, %v1107
  %v1110 = vmul.f32 %v1092, %v1107
  %v1111 = vmul.f32 %v1093, %v1107
  %v1112 = vmul.f32 %v1094, %v1107
  %v1113 = vmul.f32 %v1095, %v1107
  %v1114 = vmul.f32 %v1096, %v1107
  %v1115 = vmul.f32 %v1097, %v1107
  %v1116 = vmul.f32 %v1098, %v1107
  %v1117 = vmul.f32 %v1099, %v1107
  %v1118 = vmul.f32 %v1100, %v1107
  %v1119 = vmul.f32 %v1101, %v1107
  %v1120 = vmul.f32 %v1102, %v1107
  %v1121 = vmul.f32 %v1103, %v1107
  %v1122 = vmul.f32 %v1104, %v1107
  %v1123 = vmul.f32 %v1105, %v1107
  %v1124 = vadd.f32 %v1074, %v1108
  %v1125 = vadd.f32 %v1075, %v1109
  %v1126 = vadd.f32 %v1076, %v1110
  %v1127 = vadd.f32 %v1077, %v1111
  %v1128 = vadd.f32 %v1078, %v1112
  %v1129 = vadd.f32 %v1079, %v1113
  %v1130 = vadd.f32 %v1080, %v1114
  %v1131 = vadd.f32 %v1081, %v1115
  %v1132 = vadd.f32 %v1082, %v1116
  %v1133 = vadd.f32 %v1083, %v1117
  %v1134 = vadd.f32 %v1084, %v1118
  %v1135 = vadd.f32 %v1085, %v1119
  %v1136 = vadd.f32 %v1086, %v1120
  %v1137 = vadd.f32 %v1087, %v1121
  %v1138 = vadd.f32 %v1088, %v1122
  %v1139 = vadd.f32 %v1089, %v1123
  %s1140 = scalar_lea.vmem [#allocation2], 96
  %v1141 = vld [vmem:[%s1140] sm:$0xff]
  %v1142 = vld [vmem:[%s1140 + $0x8] sm:$0xff]
  %v1143 = vld [vmem:[%s1140 + $0x18] sm:$0xff]
  %v1144 = vld [vmem:[%s1140 + $0x20] sm:$0xff]
  %v1145 = vld [vmem:[%s1140 + $0x30] sm:$0xff]
  %v1146 = vld [vmem:[%s1140 + $0x38] sm:$0xff]
  %v1147 = vld [vmem:[%s1140 + $0x48] sm:$0xff]
  %v1148 = vld [vmem:[%s1140 + $0x50] sm:$0xff]
  %v1149 = vld [vmem:[%s1140 + $0x60] sm:$0xff]
  %v1150 = vld [vmem:[%s1140 + $0x68] sm:$0xff]
  %v1151 = vld [vmem:[%s1140 + $0x78] sm:$0xff]
  %v1152 = vld [vmem:[%s1140 + $0x80] sm:$0xff]
  %v1153 = vld [vmem:[%s1140 + $0x90] sm:$0xff]
  %v1154 = vld [vmem:[%s1140 + $0x98] sm:$0xff]
  %v1155 = vld [vmem:[%s1140 + $0xa8] sm:$0xff]
  %v1156 = vld [vmem:[%s1140 + $0xb0] sm:$0xff]
  %v1157 = vld [vmem:[%s0 + $0x14] sm:$0x1]
  %v1158 = vperm.slane %v1157, 0
  %v1159 = vmul.f32 %v1141, %v1158
  %v1160 = vmul.f32 %v1142, %v1158
  %v1161 = vmul.f32 %v1143, %v1158
  %v1162 = vmul.f32 %v1144, %v1158
  %v1163 = vmul.f32 %v1145, %v1158
  %v1164 = vmul.f32 %v1146, %v1158
  %v1165 = vmul.f32 %v1147, %v1158
  %v1166 = vmul.f32 %v1148, %v1158
  %v1167 = vmul.f32 %v1149, %v1158
  %v1168 = vmul.f32 %v1150, %v1158
  %v1169 = vmul.f32 %v1151, %v1158
  %v1170 = vmul.f32 %v1152, %v1158
  %v1171 = vmul.f32 %v1153, %v1158
  %v1172 = vmul.f32 %v1154, %v1158
  %v1173 = vmul.f32 %v1155, %v1158
  %v1174 = vmul.f32 %v1156, %v1158
  %v1175 = vadd.f32 %v1124, %v1159
  %v1176 = vadd.f32 %v1125, %v1160
  %v1177 = vadd.f32 %v1126, %v1161
  %v1178 = vadd.f32 %v1127, %v1162
  %v1179 = vadd.f32 %v1128, %v1163
  %v1180 = vadd.f32 %v1129, %v1164
  %v1181 = vadd.f32 %v1130, %v1165
  %v1182 = vadd.f32 %v1131, %v1166
  %v1183 = vadd.f32 %v1132, %v1167
  %v1184 = vadd.f32 %v1133, %v1168
  %v1185 = vadd.f32 %v1134, %v1169
  %v1186 = vadd.f32 %v1135, %v1170
  %v1187 = vadd.f32 %v1136, %v1171
  %v1188 = vadd.f32 %v1137, %v1172
  %v1189 = vadd.f32 %v1138, %v1173
  %v1190 = vadd.f32 %v1139, %v1174
  %v1191 = vld [vmem:[%s1140 + $0x1] sm:$0xff]
  %v1192 = vld [vmem:[%s1140 + $0x9] sm:$0xff]
  %v1193 = vld [vmem:[%s1140 + $0x19] sm:$0xff]
  %v1194 = vld [vmem:[%s1140 + $0x21] sm:$0xff]
  %v1195 = vld [vmem:[%s1140 + $0x31] sm:$0xff]
  %v1196 = vld [vmem:[%s1140 + $0x39] sm:$0xff]
  %v1197 = vld [vmem:[%s1140 + $0x49] sm:$0xff]
  %v1198 = vld [vmem:[%s1140 + $0x51] sm:$0xff]
  %v1199 = vld [vmem:[%s1140 + $0x61] sm:$0xff]
  %v1200 = vld [vmem:[%s1140 + $0x69] sm:$0xff]
  %v1201 = vld [vmem:[%s1140 + $0x79] sm:$0xff]
  %v1202 = vld [vmem:[%s1140 + $0x81] sm:$0xff]
  %v1203 = vld [vmem:[%s1140 + $0x91] sm:$0xff]
  %v1204 = vld [vmem:[%s1140 + $0x99] sm:$0xff]
  %v1205 = vld [vmem:[%s1140 + $0xa9] sm:$0xff]
  %v1206 = vld [vmem:[%s1140 + $0xb1] sm:$0xff]
  %v1207 = vld [vmem:[%s0 + $0x15] sm:$0x1]
  %v1208 = vperm.slane %v1207, 0
  %v1209 = vmul.f32 %v1191, %v1208
  %v1210 = vmul.f32 %v1192, %v1208
  %v1211 = vmul.f32 %v1193, %v1208
  %v1212 = vmul.f32 %v1194, %v1208
  %v1213 = vmul.f32 %v1195, %v1208
  %v1214 = vmul.f32 %v1196, %v1208
  %v1215 = vmul.f32 %v1197, %v1208
  %v1216 = vmul.f32 %v1198, %v1208
  %v1217 = vmul.f32 %v1199, %v1208
  %v1218 = vmul.f32 %v1200, %v1208
  %v1219 = vmul.f32 %v1201, %v1208
  %v1220 = vmul.f32 %v1202, %v1208
  %v1221 = vmul.f32 %v1203, %v1208
  %v1222 = vmul.f32 %v1204, %v1208
  %v1223 = vmul.f32 %v1205, %v1208
  %v1224 = vmul.f32 %v1206, %v1208
  %v1225 = vadd.f32 %v1175, %v1209
  %v1226 = vadd.f32 %v1176, %v1210
  %v1227 = vadd.f32 %v1177, %v1211
  %v1228 = vadd.f32 %v1178, %v1212
  %v1229 = vadd.f32 %v1179, %v1213
  %v1230 = vadd.f32 %v1180, %v1214
  %v1231 = vadd.f32 %v1181, %v1215
  %v1232 = vadd.f32 %v1182, %v1216
  %v1233 = vadd.f32 %v1183, %v1217
  %v1234 = vadd.f32 %v1184, %v1218
  %v1235 = vadd.f32 %v1185, %v1219
  %v1236 = vadd.f32 %v1186, %v1220
  %v1237 = vadd.f32 %v1187, %v1221
  %v1238 = vadd.f32 %v1188, %v1222
  %v1239 = vadd.f32 %v1189, %v1223
  %v1240 = vadd.f32 %v1190, %v1224
  %v1241 = vld [vmem:[%s1140 + $0x2] sm:$0xff]
  %v1242 = vld [vmem:[%s1140 + $0xa] sm:$0xff]
  %v1243 = vld [vmem:[%s1140 + $0x1a] sm:$0xff]
  %v1244 = vld [vmem:[%s1140 + $0x22] sm:$0xff]
  %v1245 = vld [vmem:[%s1140 + $0x32] sm:$0xff]
  %v1246 = vld [vmem:[%s1140 + $0x3a] sm:$0xff]
  %v1247 = vld [vmem:[%s1140 + $0x4a] sm:$0xff]
  %v1248 = vld [vmem:[%s1140 + $0x52] sm:$0xff]
  %v1249 = vld [vmem:[%s1140 + $0x62] sm:$0xff]
  %v1250 = vld [vmem:[%s1140 + $0x6a] sm:$0xff]
  %v1251 = vld [vmem:[%s1140 + $0x7a] sm:$0xff]
  %v1252 = vld [vmem:[%s1140 + $0x82] sm:$0xff]
  %v1253 = vld [vmem:[%s1140 + $0x92] sm:$0xff]
  %v1254 = vld [vmem:[%s1140 + $0x9a] sm:$0xff]
  %v1255 = vld [vmem:[%s1140 + $0xaa] sm:$0xff]
  %v1256 = vld [vmem:[%s1140 + $0xb2] sm:$0xff]
  %v1257 = vld [vmem:[%s0 + $0x16] sm:$0x1]
  %v1258 = vperm.slane %v1257, 0
  %v1259 = vmul.f32 %v1241, %v1258
  %v1260 = vmul.f32 %v1242, %v1258
  %v1261 = vmul.f32 %v1243, %v1258
  %v1262 = vmul.f32 %v1244, %v1258
  %v1263 = vmul.f32 %v1245, %v1258
  %v1264 = vmul.f32 %v1246, %v1258
  %v1265 = vmul.f32 %v1247, %v1258
  %v1266 = vmul.f32 %v1248, %v1258
  %v1267 = vmul.f32 %v1249, %v1258
  %v1268 = vmul.f32 %v1250, %v1258
  %v1269 = vmul.f32 %v1251, %v1258
  %v1270 = vmul.f32 %v1252, %v1258
  %v1271 = vmul.f32 %v1253, %v1258
  %v1272 = vmul.f32 %v1254, %v1258
  %v1273 = vmul.f32 %v1255, %v1258
  %v1274 = vmul.f32 %v1256, %v1258
  %v1275 = vadd.f32 %v1225, %v1259
  %v1276 = vadd.f32 %v1226, %v1260
  %v1277 = vadd.f32 %v1227, %v1261
  %v1278 = vadd.f32 %v1228, %v1262
  %v1279 = vadd.f32 %v1229, %v1263
  %v1280 = vadd.f32 %v1230, %v1264
  %v1281 = vadd.f32 %v1231, %v1265
  %v1282 = vadd.f32 %v1232, %v1266
  %v1283 = vadd.f32 %v1233, %v1267
  %v1284 = vadd.f32 %v1234, %v1268
  %v1285 = vadd.f32 %v1235, %v1269
  %v1286 = vadd.f32 %v1236, %v1270
  %v1287 = vadd.f32 %v1237, %v1271
  %v1288 = vadd.f32 %v1238, %v1272
  %v1289 = vadd.f32 %v1239, %v1273
  %v1290 = vadd.f32 %v1240, %v1274
  %v1291 = vld [vmem:[%s1140 + $0x3] sm:$0xff]
  %v1292 = vld [vmem:[%s1140 + $0xb] sm:$0xff]
  %v1293 = vld [vmem:[%s1140 + $0x1b] sm:$0xff]
  %v1294 = vld [vmem:[%s1140 + $0x23] sm:$0xff]
  %v1295 = vld [vmem:[%s1140 + $0x33] sm:$0xff]
  %v1296 = vld [vmem:[%s1140 + $0x3b] sm:$0xff]
  %v1297 = vld [vmem:[%s1140 + $0x4b] sm:$0xff]
  %v1298 = vld [vmem:[%s1140 + $0x53] sm:$0xff]
  %v1299 = vld [vmem:[%s1140 + $0x63] sm:$0xff]
  %v1300 = vld [vmem:[%s1140 + $0x6b] sm:$0xff]
  %v1301 = vld [vmem:[%s1140 + $0x7b] sm:$0xff]
  %v1302 = vld [vmem:[%s1140 + $0x83] sm:$0xff]
  %v1303 = vld [vmem:[%s1140 + $0x93] sm:$0xff]
  %v1304 = vld [vmem:[%s1140 + $0x9b] sm:$0xff]
  %v1305 = vld [vmem:[%s1140 + $0xab] sm:$0xff]
  %v1306 = vld [vmem:[%s1140 + $0xb3] sm:$0xff]
  %v1307 = vld [vmem:[%s0 + $0x17] sm:$0x1]
  %v1308 = vperm.slane %v1307, 0
  %v1309 = vmul.f32 %v1291, %v1308
  %v1310 = vmul.f32 %v1292, %v1308
  %v1311 = vmul.f32 %v1293, %v1308
  %v1312 = vmul.f32 %v1294, %v1308
  %v1313 = vmul.f32 %v1295, %v1308
  %v1314 = vmul.f32 %v1296, %v1308
  %v1315 = vmul.f32 %v1297, %v1308
  %v1316 = vmul.f32 %v1298, %v1308
  %v1317 = vmul.f32 %v1299, %v1308
  %v1318 = vmul.f32 %v1300, %v1308
  %v1319 = vmul.f32 %v1301, %v1308
  %v1320 = vmul.f32 %v1302, %v1308
  %v1321 = vmul.f32 %v1303, %v1308
  %v1322 = vmul.f32 %v1304, %v1308
  %v1323 = vmul.f32 %v1305, %v1308
  %v1324 = vmul.f32 %v1306, %v1308
  %v1325 = vadd.f32 %v1275, %v1309
  %v1326 = vadd.f32 %v1276, %v1310
  %v1327 = vadd.f32 %v1277, %v1311
  %v1328 = vadd.f32 %v1278, %v1312
  %v1329 = vadd.f32 %v1279, %v1313
  %v1330 = vadd.f32 %v1280, %v1314
  %v1331 = vadd.f32 %v1281, %v1315
  %v1332 = vadd.f32 %v1282, %v1316
  %v1333 = vadd.f32 %v1283, %v1317
  %v1334 = vadd.f32 %v1284, %v1318
  %v1335 = vadd.f32 %v1285, %v1319
  %v1336 = vadd.f32 %v1286, %v1320
  %v1337 = vadd.f32 %v1287, %v1321
  %v1338 = vadd.f32 %v1288, %v1322
  %v1339 = vadd.f32 %v1289, %v1323
  %v1340 = vadd.f32 %v1290, %v1324
  %v1341 = vld [vmem:[%s1140 + $0x4] sm:$0xff]
  %v1342 = vld [vmem:[%s1140 + $0xc] sm:$0xff]
  %v1343 = vld [vmem:[%s1140 + $0x1c] sm:$0xff]
  %v1344 = vld [vmem:[%s1140 + $0x24] sm:$0xff]
  %v1345 = vld [vmem:[%s1140 + $0x34] sm:$0xff]
  %v1346 = vld [vmem:[%s1140 + $0x3c] sm:$0xff]
  %v1347 = vld [vmem:[%s1140 + $0x4c] sm:$0xff]
  %v1348 = vld [vmem:[%s1140 + $0x54] sm:$0xff]
  %v1349 = vld [vmem:[%s1140 + $0x64] sm:$0xff]
  %v1350 = vld [vmem:[%s1140 + $0x6c] sm:$0xff]
  %v1351 = vld [vmem:[%s1140 + $0x7c] sm:$0xff]
  %v1352 = vld [vmem:[%s1140 + $0x84] sm:$0xff]
  %v1353 = vld [vmem:[%s1140 + $0x94] sm:$0xff]
  %v1354 = vld [vmem:[%s1140 + $0x9c] sm:$0xff]
  %v1355 = vld [vmem:[%s1140 + $0xac] sm:$0xff]
  %v1356 = vld [vmem:[%s1140 + $0xb4] sm:$0xff]
  %v1357 = vld [vmem:[%s0 + $0x18] sm:$0x1]
  %v1358 = vperm.slane %v1357, 0
  %v1359 = vmul.f32 %v1341, %v1358
  %v1360 = vmul.f32 %v1342, %v1358
  %v1361 = vmul.f32 %v1343, %v1358
  %v1362 = vmul.f32 %v1344, %v1358
  %v1363 = vmul.f32 %v1345, %v1358
  %v1364 = vmul.f32 %v1346, %v1358
  %v1365 = vmul.f32 %v1347, %v1358
  %v1366 = vmul.f32 %v1348, %v1358
  %v1367 = vmul.f32 %v1349, %v1358
  %v1368 = vmul.f32 %v1350, %v1358
  %v1369 = vmul.f32 %v1351, %v1358
  %v1370 = vmul.f32 %v1352, %v1358
  %v1371 = vmul.f32 %v1353, %v1358
  %v1372 = vmul.f32 %v1354, %v1358
  %v1373 = vmul.f32 %v1355, %v1358
  %v1374 = vmul.f32 %v1356, %v1358
  %v1375 = vadd.f32 %v1325, %v1359
  %v1376 = vadd.f32 %v1326, %v1360
  %v1377 = vadd.f32 %v1327, %v1361
  %v1378 = vadd.f32 %v1328, %v1362
  %v1379 = vadd.f32 %v1329, %v1363
  %v1380 = vadd.f32 %v1330, %v1364
  %v1381 = vadd.f32 %v1331, %v1365
  %v1382 = vadd.f32 %v1332, %v1366
  %v1383 = vadd.f32 %v1333, %v1367
  %v1384 = vadd.f32 %v1334, %v1368
  %v1385 = vadd.f32 %v1335, %v1369
  %v1386 = vadd.f32 %v1336, %v1370
  %v1387 = vadd.f32 %v1337, %v1371
  %v1388 = vadd.f32 %v1338, %v1372
  %v1389 = vadd.f32 %v1339, %v1373
  %v1390 = vadd.f32 %v1340, %v1374
  %1391 = vst.msk [vmem:[%s2] sm:$0xff] %vm11, %v1375
  %1392 = vst.msk [vmem:[%s2 + $0x8] sm:$0xff] %vm11, %v1376
  %1393 = vst.msk [vmem:[%s2 + $0x10] sm:$0xff] %vm11, %v1377
  %1394 = vst.msk [vmem:[%s2 + $0x18] sm:$0xff] %vm11, %v1378
  %1395 = vst.msk [vmem:[%s2 + $0x20] sm:$0xff] %vm11, %v1379
  %1396 = vst.msk [vmem:[%s2 + $0x28] sm:$0xff] %vm11, %v1380
  %1397 = vst.msk [vmem:[%s2 + $0x30] sm:$0xff] %vm11, %v1381
  %1398 = vst.msk [vmem:[%s2 + $0x38] sm:$0xff] %vm11, %v1382
  %1399 = vst.msk [vmem:[%s2 + $0x40] sm:$0xff] %vm11, %v1383
  %1400 = vst.msk [vmem:[%s2 + $0x48] sm:$0xff] %vm11, %v1384
  %1401 = vst.msk [vmem:[%s2 + $0x50] sm:$0xff] %vm11, %v1385
  %1402 = vst.msk [vmem:[%s2 + $0x58] sm:$0xff] %vm11, %v1386
  %1403 = vst.msk [vmem:[%s2 + $0x60] sm:$0xff] %vm11, %v1387
  %1404 = vst.msk [vmem:[%s2 + $0x68] sm:$0xff] %vm11, %v1388
  %1405 = vst.msk [vmem:[%s2 + $0x70] sm:$0xff] %vm11, %v1389
  %1406 = vst.msk [vmem:[%s2 + $0x78] sm:$0xff] %vm11, %v1390
  %s1407 = scalar_lea.vmem [#allocation2], 192
  %v1408 = vld [vmem:[%s1407] sm:$0xff]
  %v1409 = vld [vmem:[%s1407 + $0x8] sm:$0xff]
  %v1410 = vld [vmem:[%s1407 + $0x18] sm:$0xff]
  %v1411 = vld [vmem:[%s1407 + $0x20] sm:$0xff]
  %v1412 = vld [vmem:[%s1407 + $0x30] sm:$0xff]
  %v1413 = vld [vmem:[%s1407 + $0x38] sm:$0xff]
  %v1414 = vld [vmem:[%s1407 + $0x48] sm:$0xff]
  %v1415 = vld [vmem:[%s1407 + $0x50] sm:$0xff]
  %v1416 = vld [vmem:[%s1407 + $0x60] sm:$0xff]
  %v1417 = vld [vmem:[%s1407 + $0x68] sm:$0xff]
  %v1418 = vld [vmem:[%s1407 + $0x78] sm:$0xff]
  %v1419 = vld [vmem:[%s1407 + $0x80] sm:$0xff]
  %v1420 = vld [vmem:[%s1407 + $0x90] sm:$0xff]
  %v1421 = vld [vmem:[%s1407 + $0x98] sm:$0xff]
  %v1422 = vld [vmem:[%s1407 + $0xa8] sm:$0xff]
  %v1423 = vld [vmem:[%s1407 + $0xb0] sm:$0xff]
  %v1424 = vld [vmem:[%s0] sm:$0x1]
  %v1425 = vperm.slane %v1424, 0
  %v1426 = vmul.f32 %v1408, %v1425
  %v1427 = vmul.f32 %v1409, %v1425
  %v1428 = vmul.f32 %v1410, %v1425
  %v1429 = vmul.f32 %v1411, %v1425
  %v1430 = vmul.f32 %v1412, %v1425
  %v1431 = vmul.f32 %v1413, %v1425
  %v1432 = vmul.f32 %v1414, %v1425
  %v1433 = vmul.f32 %v1415, %v1425
  %v1434 = vmul.f32 %v1416, %v1425
  %v1435 = vmul.f32 %v1417, %v1425
  %v1436 = vmul.f32 %v1418, %v1425
  %v1437 = vmul.f32 %v1419, %v1425
  %v1438 = vmul.f32 %v1420, %v1425
  %v1439 = vmul.f32 %v1421, %v1425
  %v1440 = vmul.f32 %v1422, %v1425
  %v1441 = vmul.f32 %v1423, %v1425
  %v1442 = vadd.f32 %v1426, 0.0
  %v1443 = vadd.f32 %v1427, 0.0
  %v1444 = vadd.f32 %v1428, 0.0
  %v1445 = vadd.f32 %v1429, 0.0
  %v1446 = vadd.f32 %v1430, 0.0
  %v1447 = vadd.f32 %v1431, 0.0
  %v1448 = vadd.f32 %v1432, 0.0
  %v1449 = vadd.f32 %v1433, 0.0
  %v1450 = vadd.f32 %v1434, 0.0
  %v1451 = vadd.f32 %v1435, 0.0
  %v1452 = vadd.f32 %v1436, 0.0
  %v1453 = vadd.f32 %v1437, 0.0
  %v1454 = vadd.f32 %v1438, 0.0
  %v1455 = vadd.f32 %v1439, 0.0
  %v1456 = vadd.f32 %v1440, 0.0
  %v1457 = vadd.f32 %v1441, 0.0
  %v1458 = vld [vmem:[%s1407 + $0x1] sm:$0xff]
  %v1459 = vld [vmem:[%s1407 + $0x9] sm:$0xff]
  %v1460 = vld [vmem:[%s1407 + $0x19] sm:$0xff]
  %v1461 = vld [vmem:[%s1407 + $0x21] sm:$0xff]
  %v1462 = vld [vmem:[%s1407 + $0x31] sm:$0xff]
  %v1463 = vld [vmem:[%s1407 + $0x39] sm:$0xff]
  %v1464 = vld [vmem:[%s1407 + $0x49] sm:$0xff]
  %v1465 = vld [vmem:[%s1407 + $0x51] sm:$0xff]
  %v1466 = vld [vmem:[%s1407 + $0x61] sm:$0xff]
  %v1467 = vld [vmem:[%s1407 + $0x69] sm:$0xff]
  %v1468 = vld [vmem:[%s1407 + $0x79] sm:$0xff]
  %v1469 = vld [vmem:[%s1407 + $0x81] sm:$0xff]
  %v1470 = vld [vmem:[%s1407 + $0x91] sm:$0xff]
  %v1471 = vld [vmem:[%s1407 + $0x99] sm:$0xff]
  %v1472 = vld [vmem:[%s1407 + $0xa9] sm:$0xff]
  %v1473 = vld [vmem:[%s1407 + $0xb1] sm:$0xff]
  %v1474 = vld [vmem:[%s0 + $0x1] sm:$0x1]
  %v1475 = vperm.slane %v1474, 0
  %v1476 = vmul.f32 %v1458, %v1475
  %v1477 = vmul.f32 %v1459, %v1475
  %v1478 = vmul.f32 %v1460, %v1475
  %v1479 = vmul.f32 %v1461, %v1475
  %v1480 = vmul.f32 %v1462, %v1475
  %v1481 = vmul.f32 %v1463, %v1475
  %v1482 = vmul.f32 %v1464, %v1475
  %v1483 = vmul.f32 %v1465, %v1475
  %v1484 = vmul.f32 %v1466, %v1475
  %v1485 = vmul.f32 %v1467, %v1475
  %v1486 = vmul.f32 %v1468, %v1475
  %v1487 = vmul.f32 %v1469, %v1475
  %v1488 = vmul.f32 %v1470, %v1475
  %v1489 = vmul.f32 %v1471, %v1475
  %v1490 = vmul.f32 %v1472, %v1475
  %v1491 = vmul.f32 %v1473, %v1475
  %v1492 = vadd.f32 %v1442, %v1476
  %v1493 = vadd.f32 %v1443, %v1477
  %v1494 = vadd.f32 %v1444, %v1478
  %v1495 = vadd.f32 %v1445, %v1479
  %v1496 = vadd.f32 %v1446, %v1480
  %v1497 = vadd.f32 %v1447, %v1481
  %v1498 = vadd.f32 %v1448, %v1482
  %v1499 = vadd.f32 %v1449, %v1483
  %v1500 = vadd.f32 %v1450, %v1484
  %v1501 = vadd.f32 %v1451, %v1485
  %v1502 = vadd.f32 %v1452, %v1486
  %v1503 = vadd.f32 %v1453, %v1487
  %v1504 = vadd.f32 %v1454, %v1488
  %v1505 = vadd.f32 %v1455, %v1489
  %v1506 = vadd.f32 %v1456, %v1490
  %v1507 = vadd.f32 %v1457, %v1491
  %v1508 = vld [vmem:[%s1407 + $0x2] sm:$0xff]
  %v1509 = vld [vmem:[%s1407 + $0xa] sm:$0xff]
  %v1510 = vld [vmem:[%s1407 + $0x1a] sm:$0xff]
  %v1511 = vld [vmem:[%s1407 + $0x22] sm:$0xff]
  %v1512 = vld [vmem:[%s1407 + $0x32] sm:$0xff]
  %v1513 = vld [vmem:[%s1407 + $0x3a] sm:$0xff]
  %v1514 = vld [vmem:[%s1407 + $0x4a] sm:$0xff]
  %v1515 = vld [vmem:[%s1407 + $0x52] sm:$0xff]
  %v1516 = vld [vmem:[%s1407 + $0x62] sm:$0xff]
  %v1517 = vld [vmem:[%s1407 + $0x6a] sm:$0xff]
  %v1518 = vld [vmem:[%s1407 + $0x7a] sm:$0xff]
  %v1519 = vld [vmem:[%s1407 + $0x82] sm:$0xff]
  %v1520 = vld [vmem:[%s1407 + $0x92] sm:$0xff]
  %v1521 = vld [vmem:[%s1407 + $0x9a] sm:$0xff]
  %v1522 = vld [vmem:[%s1407 + $0xaa] sm:$0xff]
  %v1523 = vld [vmem:[%s1407 + $0xb2] sm:$0xff]
  %v1524 = vld [vmem:[%s0 + $0x2] sm:$0x1]
  %v1525 = vperm.slane %v1524, 0
  %v1526 = vmul.f32 %v1508, %v1525
  %v1527 = vmul.f32 %v1509, %v1525
  %v1528 = vmul.f32 %v1510, %v1525
  %v1529 = vmul.f32 %v1511, %v1525
  %v1530 = vmul.f32 %v1512, %v1525
  %v1531 = vmul.f32 %v1513, %v1525
  %v1532 = vmul.f32 %v1514, %v1525
  %v1533 = vmul.f32 %v1515, %v1525
  %v1534 = vmul.f32 %v1516, %v1525
  %v1535 = vmul.f32 %v1517, %v1525
  %v1536 = vmul.f32 %v1518, %v1525
  %v1537 = vmul.f32 %v1519, %v1525
  %v1538 = vmul.f32 %v1520, %v1525
  %v1539 = vmul.f32 %v1521, %v1525
  %v1540 = vmul.f32 %v1522, %v1525
  %v1541 = vmul.f32 %v1523, %v1525
  %v1542 = vadd.f32 %v1492, %v1526
  %v1543 = vadd.f32 %v1493, %v1527
  %v1544 = vadd.f32 %v1494, %v1528
  %v1545 = vadd.f32 %v1495, %v1529
  %v1546 = vadd.f32 %v1496, %v1530
  %v1547 = vadd.f32 %v1497, %v1531
  %v1548 = vadd.f32 %v1498, %v1532
  %v1549 = vadd.f32 %v1499, %v1533
  %v1550 = vadd.f32 %v1500, %v1534
  %v1551 = vadd.f32 %v1501, %v1535
  %v1552 = vadd.f32 %v1502, %v1536
  %v1553 = vadd.f32 %v1503, %v1537
  %v1554 = vadd.f32 %v1504, %v1538
  %v1555 = vadd.f32 %v1505, %v1539
  %v1556 = vadd.f32 %v1506, %v1540
  %v1557 = vadd.f32 %v1507, %v1541
  %v1558 = vld [vmem:[%s1407 + $0x3] sm:$0xff]
  %v1559 = vld [vmem:[%s1407 + $0xb] sm:$0xff]
  %v1560 = vld [vmem:[%s1407 + $0x1b] sm:$0xff]
  %v1561 = vld [vmem:[%s1407 + $0x23] sm:$0xff]
  %v1562 = vld [vmem:[%s1407 + $0x33] sm:$0xff]
  %v1563 = vld [vmem:[%s1407 + $0x3b] sm:$0xff]
  %v1564 = vld [vmem:[%s1407 + $0x4b] sm:$0xff]
  %v1565 = vld [vmem:[%s1407 + $0x53] sm:$0xff]
  %v1566 = vld [vmem:[%s1407 + $0x63] sm:$0xff]
  %v1567 = vld [vmem:[%s1407 + $0x6b] sm:$0xff]
  %v1568 = vld [vmem:[%s1407 + $0x7b] sm:$0xff]
  %v1569 = vld [vmem:[%s1407 + $0x83] sm:$0xff]
  %v1570 = vld [vmem:[%s1407 + $0x93] sm:$0xff]
  %v1571 = vld [vmem:[%s1407 + $0x9b] sm:$0xff]
  %v1572 = vld [vmem:[%s1407 + $0xab] sm:$0xff]
  %v1573 = vld [vmem:[%s1407 + $0xb3] sm:$0xff]
  %v1574 = vld [vmem:[%s0 + $0x3] sm:$0x1]
  %v1575 = vperm.slane %v1574, 0
  %v1576 = vmul.f32 %v1558, %v1575
  %v1577 = vmul.f32 %v1559, %v1575
  %v1578 = vmul.f32 %v1560, %v1575
  %v1579 = vmul.f32 %v1561, %v1575
  %v1580 = vmul.f32 %v1562, %v1575
  %v1581 = vmul.f32 %v1563, %v1575
  %v1582 = vmul.f32 %v1564, %v1575
  %v1583 = vmul.f32 %v1565, %v1575
  %v1584 = vmul.f32 %v1566, %v1575
  %v1585 = vmul.f32 %v1567, %v1575
  %v1586 = vmul.f32 %v1568, %v1575
  %v1587 = vmul.f32 %v1569, %v1575
  %v1588 = vmul.f32 %v1570, %v1575
  %v1589 = vmul.f32 %v1571, %v1575
  %v1590 = vmul.f32 %v1572, %v1575
  %v1591 = vmul.f32 %v1573, %v1575
  %v1592 = vadd.f32 %v1542, %v1576
  %v1593 = vadd.f32 %v1543, %v1577
  %v1594 = vadd.f32 %v1544, %v1578
  %v1595 = vadd.f32 %v1545, %v1579
  %v1596 = vadd.f32 %v1546, %v1580
  %v1597 = vadd.f32 %v1547, %v1581
  %v1598 = vadd.f32 %v1548, %v1582
  %v1599 = vadd.f32 %v1549, %v1583
  %v1600 = vadd.f32 %v1550, %v1584
  %v1601 = vadd.f32 %v1551, %v1585
  %v1602 = vadd.f32 %v1552, %v1586
  %v1603 = vadd.f32 %v1553, %v1587
  %v1604 = vadd.f32 %v1554, %v1588
  %v1605 = vadd.f32 %v1555, %v1589
  %v1606 = vadd.f32 %v1556, %v1590
  %v1607 = vadd.f32 %v1557, %v1591
  %v1608 = vld [vmem:[%s1407 + $0x4] sm:$0xff]
  %v1609 = vld [vmem:[%s1407 + $0xc] sm:$0xff]
  %v1610 = vld [vmem:[%s1407 + $0x1c] sm:$0xff]
  %v1611 = vld [vmem:[%s1407 + $0x24] sm:$0xff]
  %v1612 = vld [vmem:[%s1407 + $0x34] sm:$0xff]
  %v1613 = vld [vmem:[%s1407 + $0x3c] sm:$0xff]
  %v1614 = vld [vmem:[%s1407 + $0x4c] sm:$0xff]
  %v1615 = vld [vmem:[%s1407 + $0x54] sm:$0xff]
  %v1616 = vld [vmem:[%s1407 + $0x64] sm:$0xff]
  %v1617 = vld [vmem:[%s1407 + $0x6c] sm:$0xff]
  %v1618 = vld [vmem:[%s1407 + $0x7c] sm:$0xff]
  %v1619 = vld [vmem:[%s1407 + $0x84] sm:$0xff]
  %v1620 = vld [vmem:[%s1407 + $0x94] sm:$0xff]
  %v1621 = vld [vmem:[%s1407 + $0x9c] sm:$0xff]
  %v1622 = vld [vmem:[%s1407 + $0xac] sm:$0xff]
  %v1623 = vld [vmem:[%s1407 + $0xb4] sm:$0xff]
  %v1624 = vld [vmem:[%s0 + $0x4] sm:$0x1]
  %v1625 = vperm.slane %v1624, 0
  %v1626 = vmul.f32 %v1608, %v1625
  %v1627 = vmul.f32 %v1609, %v1625
  %v1628 = vmul.f32 %v1610, %v1625
  %v1629 = vmul.f32 %v1611, %v1625
  %v1630 = vmul.f32 %v1612, %v1625
  %v1631 = vmul.f32 %v1613, %v1625
  %v1632 = vmul.f32 %v1614, %v1625
  %v1633 = vmul.f32 %v1615, %v1625
  %v1634 = vmul.f32 %v1616, %v1625
  %v1635 = vmul.f32 %v1617, %v1625
  %v1636 = vmul.f32 %v1618, %v1625
  %v1637 = vmul.f32 %v1619, %v1625
  %v1638 = vmul.f32 %v1620, %v1625
  %v1639 = vmul.f32 %v1621, %v1625
  %v1640 = vmul.f32 %v1622, %v1625
  %v1641 = vmul.f32 %v1623, %v1625
  %v1642 = vadd.f32 %v1592, %v1626
  %v1643 = vadd.f32 %v1593, %v1627
  %v1644 = vadd.f32 %v1594, %v1628
  %v1645 = vadd.f32 %v1595, %v1629
  %v1646 = vadd.f32 %v1596, %v1630
  %v1647 = vadd.f32 %v1597, %v1631
  %v1648 = vadd.f32 %v1598, %v1632
  %v1649 = vadd.f32 %v1599, %v1633
  %v1650 = vadd.f32 %v1600, %v1634
  %v1651 = vadd.f32 %v1601, %v1635
  %v1652 = vadd.f32 %v1602, %v1636
  %v1653 = vadd.f32 %v1603, %v1637
  %v1654 = vadd.f32 %v1604, %v1638
  %v1655 = vadd.f32 %v1605, %v1639
  %v1656 = vadd.f32 %v1606, %v1640
  %v1657 = vadd.f32 %v1607, %v1641
  %s1658 = scalar_lea.vmem [#allocation2], 216
  %v1659 = vld [vmem:[%s1658] sm:$0xff]
  %v1660 = vld [vmem:[%s1658 + $0x8] sm:$0xff]
  %v1661 = vld [vmem:[%s1658 + $0x18] sm:$0xff]
  %v1662 = vld [vmem:[%s1658 + $0x20] sm:$0xff]
  %v1663 = vld [vmem:[%s1658 + $0x30] sm:$0xff]
  %v1664 = vld [vmem:[%s1658 + $0x38] sm:$0xff]
  %v1665 = vld [vmem:[%s1658 + $0x48] sm:$0xff]
  %v1666 = vld [vmem:[%s1658 + $0x50] sm:$0xff]
  %v1667 = vld [vmem:[%s1658 + $0x60] sm:$0xff]
  %v1668 = vld [vmem:[%s1658 + $0x68] sm:$0xff]
  %v1669 = vld [vmem:[%s1658 + $0x78] sm:$0xff]
  %v1670 = vld [vmem:[%s1658 + $0x80] sm:$0xff]
  %v1671 = vld [vmem:[%s1658 + $0x90] sm:$0xff]
  %v1672 = vld [vmem:[%s1658 + $0x98] sm:$0xff]
  %v1673 = vld [vmem:[%s1658 + $0xa8] sm:$0xff]
  %v1674 = vld [vmem:[%s1658 + $0xb0] sm:$0xff]
  %v1675 = vld [vmem:[%s0 + $0x5] sm:$0x1]
  %v1676 = vperm.slane %v1675, 0
  %v1677 = vmul.f32 %v1659, %v1676
  %v1678 = vmul.f32 %v1660, %v1676
  %v1679 = vmul.f32 %v1661, %v1676
  %v1680 = vmul.f32 %v1662, %v1676
  %v1681 = vmul.f32 %v1663, %v1676
  %v1682 = vmul.f32 %v1664, %v1676
  %v1683 = vmul.f32 %v1665, %v1676
  %v1684 = vmul.f32 %v1666, %v1676
  %v1685 = vmul.f32 %v1667, %v1676
  %v1686 = vmul.f32 %v1668, %v1676
  %v1687 = vmul.f32 %v1669, %v1676
  %v1688 = vmul.f32 %v1670, %v1676
  %v1689 = vmul.f32 %v1671, %v1676
  %v1690 = vmul.f32 %v1672, %v1676
  %v1691 = vmul.f32 %v1673, %v1676
  %v1692 = vmul.f32 %v1674, %v1676
  %v1693 = vadd.f32 %v1642, %v1677
  %v1694 = vadd.f32 %v1643, %v1678
  %v1695 = vadd.f32 %v1644, %v1679
  %v1696 = vadd.f32 %v1645, %v1680
  %v1697 = vadd.f32 %v1646, %v1681
  %v1698 = vadd.f32 %v1647, %v1682
  %v1699 = vadd.f32 %v1648, %v1683
  %v1700 = vadd.f32 %v1649, %v1684
  %v1701 = vadd.f32 %v1650, %v1685
  %v1702 = vadd.f32 %v1651, %v1686
  %v1703 = vadd.f32 %v1652, %v1687
  %v1704 = vadd.f32 %v1653, %v1688
  %v1705 = vadd.f32 %v1654, %v1689
  %v1706 = vadd.f32 %v1655, %v1690
  %v1707 = vadd.f32 %v1656, %v1691
  %v1708 = vadd.f32 %v1657, %v1692
  %v1709 = vld [vmem:[%s1658 + $0x1] sm:$0xff]
  %v1710 = vld [vmem:[%s1658 + $0x9] sm:$0xff]
  %v1711 = vld [vmem:[%s1658 + $0x19] sm:$0xff]
  %v1712 = vld [vmem:[%s1658 + $0x21] sm:$0xff]
  %v1713 = vld [vmem:[%s1658 + $0x31] sm:$0xff]
  %v1714 = vld [vmem:[%s1658 + $0x39] sm:$0xff]
  %v1715 = vld [vmem:[%s1658 + $0x49] sm:$0xff]
  %v1716 = vld [vmem:[%s1658 + $0x51] sm:$0xff]
  %v1717 = vld [vmem:[%s1658 + $0x61] sm:$0xff]
  %v1718 = vld [vmem:[%s1658 + $0x69] sm:$0xff]
  %v1719 = vld [vmem:[%s1658 + $0x79] sm:$0xff]
  %v1720 = vld [vmem:[%s1658 + $0x81] sm:$0xff]
  %v1721 = vld [vmem:[%s1658 + $0x91] sm:$0xff]
  %v1722 = vld [vmem:[%s1658 + $0x99] sm:$0xff]
  %v1723 = vld [vmem:[%s1658 + $0xa9] sm:$0xff]
  %v1724 = vld [vmem:[%s1658 + $0xb1] sm:$0xff]
  %v1725 = vld [vmem:[%s0 + $0x6] sm:$0x1]
  %v1726 = vperm.slane %v1725, 0
  %v1727 = vmul.f32 %v1709, %v1726
  %v1728 = vmul.f32 %v1710, %v1726
  %v1729 = vmul.f32 %v1711, %v1726
  %v1730 = vmul.f32 %v1712, %v1726
  %v1731 = vmul.f32 %v1713, %v1726
  %v1732 = vmul.f32 %v1714, %v1726
  %v1733 = vmul.f32 %v1715, %v1726
  %v1734 = vmul.f32 %v1716, %v1726
  %v1735 = vmul.f32 %v1717, %v1726
  %v1736 = vmul.f32 %v1718, %v1726
  %v1737 = vmul.f32 %v1719, %v1726
  %v1738 = vmul.f32 %v1720, %v1726
  %v1739 = vmul.f32 %v1721, %v1726
  %v1740 = vmul.f32 %v1722, %v1726
  %v1741 = vmul.f32 %v1723, %v1726
  %v1742 = vmul.f32 %v1724, %v1726
  %v1743 = vadd.f32 %v1693, %v1727
  %v1744 = vadd.f32 %v1694, %v1728
  %v1745 = vadd.f32 %v1695, %v1729
  %v1746 = vadd.f32 %v1696, %v1730
  %v1747 = vadd.f32 %v1697, %v1731
  %v1748 = vadd.f32 %v1698, %v1732
  %v1749 = vadd.f32 %v1699, %v1733
  %v1750 = vadd.f32 %v1700, %v1734
  %v1751 = vadd.f32 %v1701, %v1735
  %v1752 = vadd.f32 %v1702, %v1736
  %v1753 = vadd.f32 %v1703, %v1737
  %v1754 = vadd.f32 %v1704, %v1738
  %v1755 = vadd.f32 %v1705, %v1739
  %v1756 = vadd.f32 %v1706, %v1740
  %v1757 = vadd.f32 %v1707, %v1741
  %v1758 = vadd.f32 %v1708, %v1742
  %v1759 = vld [vmem:[%s1658 + $0x2] sm:$0xff]
  %v1760 = vld [vmem:[%s1658 + $0xa] sm:$0xff]
  %v1761 = vld [vmem:[%s1658 + $0x1a] sm:$0xff]
  %v1762 = vld [vmem:[%s1658 + $0x22] sm:$0xff]
  %v1763 = vld [vmem:[%s1658 + $0x32] sm:$0xff]
  %v1764 = vld [vmem:[%s1658 + $0x3a] sm:$0xff]
  %v1765 = vld [vmem:[%s1658 + $0x4a] sm:$0xff]
  %v1766 = vld [vmem:[%s1658 + $0x52] sm:$0xff]
  %v1767 = vld [vmem:[%s1658 + $0x62] sm:$0xff]
  %v1768 = vld [vmem:[%s1658 + $0x6a] sm:$0xff]
  %v1769 = vld [vmem:[%s1658 + $0x7a] sm:$0xff]
  %v1770 = vld [vmem:[%s1658 + $0x82] sm:$0xff]
  %v1771 = vld [vmem:[%s1658 + $0x92] sm:$0xff]
  %v1772 = vld [vmem:[%s1658 + $0x9a] sm:$0xff]
  %v1773 = vld [vmem:[%s1658 + $0xaa] sm:$0xff]
  %v1774 = vld [vmem:[%s1658 + $0xb2] sm:$0xff]
  %v1775 = vld [vmem:[%s0 + $0x7] sm:$0x1]
  %v1776 = vperm.slane %v1775, 0
  %v1777 = vmul.f32 %v1759, %v1776
  %v1778 = vmul.f32 %v1760, %v1776
  %v1779 = vmul.f32 %v1761, %v1776
  %v1780 = vmul.f32 %v1762, %v1776
  %v1781 = vmul.f32 %v1763, %v1776
  %v1782 = vmul.f32 %v1764, %v1776
  %v1783 = vmul.f32 %v1765, %v1776
  %v1784 = vmul.f32 %v1766, %v1776
  %v1785 = vmul.f32 %v1767, %v1776
  %v1786 = vmul.f32 %v1768, %v1776
  %v1787 = vmul.f32 %v1769, %v1776
  %v1788 = vmul.f32 %v1770, %v1776
  %v1789 = vmul.f32 %v1771, %v1776
  %v1790 = vmul.f32 %v1772, %v1776
  %v1791 = vmul.f32 %v1773, %v1776
  %v1792 = vmul.f32 %v1774, %v1776
  %v1793 = vadd.f32 %v1743, %v1777
  %v1794 = vadd.f32 %v1744, %v1778
  %v1795 = vadd.f32 %v1745, %v1779
  %v1796 = vadd.f32 %v1746, %v1780
  %v1797 = vadd.f32 %v1747, %v1781
  %v1798 = vadd.f32 %v1748, %v1782
  %v1799 = vadd.f32 %v1749, %v1783
  %v1800 = vadd.f32 %v1750, %v1784
  %v1801 = vadd.f32 %v1751, %v1785
  %v1802 = vadd.f32 %v1752, %v1786
  %v1803 = vadd.f32 %v1753, %v1787
  %v1804 = vadd.f32 %v1754, %v1788
  %v1805 = vadd.f32 %v1755, %v1789
  %v1806 = vadd.f32 %v1756, %v1790
  %v1807 = vadd.f32 %v1757, %v1791
  %v1808 = vadd.f32 %v1758, %v1792
  %v1809 = vld [vmem:[%s1658 + $0x3] sm:$0xff]
  %v1810 = vld [vmem:[%s1658 + $0xb] sm:$0xff]
  %v1811 = vld [vmem:[%s1658 + $0x1b] sm:$0xff]
  %v1812 = vld [vmem:[%s1658 + $0x23] sm:$0xff]
  %v1813 = vld [vmem:[%s1658 + $0x33] sm:$0xff]
  %v1814 = vld [vmem:[%s1658 + $0x3b] sm:$0xff]
  %v1815 = vld [vmem:[%s1658 + $0x4b] sm:$0xff]
  %v1816 = vld [vmem:[%s1658 + $0x53] sm:$0xff]
  %v1817 = vld [vmem:[%s1658 + $0x63] sm:$0xff]
  %v1818 = vld [vmem:[%s1658 + $0x6b] sm:$0xff]
  %v1819 = vld [vmem:[%s1658 + $0x7b] sm:$0xff]
  %v1820 = vld [vmem:[%s1658 + $0x83] sm:$0xff]
  %v1821 = vld [vmem:[%s1658 + $0x93] sm:$0xff]
  %v1822 = vld [vmem:[%s1658 + $0x9b] sm:$0xff]
  %v1823 = vld [vmem:[%s1658 + $0xab] sm:$0xff]
  %v1824 = vld [vmem:[%s1658 + $0xb3] sm:$0xff]
  %v1825 = vld [vmem:[%s0 + $0x8] sm:$0x1]
  %v1826 = vperm.slane %v1825, 0
  %v1827 = vmul.f32 %v1809, %v1826
  %v1828 = vmul.f32 %v1810, %v1826
  %v1829 = vmul.f32 %v1811, %v1826
  %v1830 = vmul.f32 %v1812, %v1826
  %v1831 = vmul.f32 %v1813, %v1826
  %v1832 = vmul.f32 %v1814, %v1826
  %v1833 = vmul.f32 %v1815, %v1826
  %v1834 = vmul.f32 %v1816, %v1826
  %v1835 = vmul.f32 %v1817, %v1826
  %v1836 = vmul.f32 %v1818, %v1826
  %v1837 = vmul.f32 %v1819, %v1826
  %v1838 = vmul.f32 %v1820, %v1826
  %v1839 = vmul.f32 %v1821, %v1826
  %v1840 = vmul.f32 %v1822, %v1826
  %v1841 = vmul.f32 %v1823, %v1826
  %v1842 = vmul.f32 %v1824, %v1826
  %v1843 = vadd.f32 %v1793, %v1827
  %v1844 = vadd.f32 %v1794, %v1828
  %v1845 = vadd.f32 %v1795, %v1829
  %v1846 = vadd.f32 %v1796, %v1830
  %v1847 = vadd.f32 %v1797, %v1831
  %v1848 = vadd.f32 %v1798, %v1832
  %v1849 = vadd.f32 %v1799, %v1833
  %v1850 = vadd.f32 %v1800, %v1834
  %v1851 = vadd.f32 %v1801, %v1835
  %v1852 = vadd.f32 %v1802, %v1836
  %v1853 = vadd.f32 %v1803, %v1837
  %v1854 = vadd.f32 %v1804, %v1838
  %v1855 = vadd.f32 %v1805, %v1839
  %v1856 = vadd.f32 %v1806, %v1840
  %v1857 = vadd.f32 %v1807, %v1841
  %v1858 = vadd.f32 %v1808, %v1842
  %v1859 = vld [vmem:[%s1658 + $0x4] sm:$0xff]
  %v1860 = vld [vmem:[%s1658 + $0xc] sm:$0xff]
  %v1861 = vld [vmem:[%s1658 + $0x1c] sm:$0xff]
  %v1862 = vld [vmem:[%s1658 + $0x24] sm:$0xff]
  %v1863 = vld [vmem:[%s1658 + $0x34] sm:$0xff]
  %v1864 = vld [vmem:[%s1658 + $0x3c] sm:$0xff]
  %v1865 = vld [vmem:[%s1658 + $0x4c] sm:$0xff]
  %v1866 = vld [vmem:[%s1658 + $0x54] sm:$0xff]
  %v1867 = vld [vmem:[%s1658 + $0x64] sm:$0xff]
  %v1868 = vld [vmem:[%s1658 + $0x6c] sm:$0xff]
  %v1869 = vld [vmem:[%s1658 + $0x7c] sm:$0xff]
  %v1870 = vld [vmem:[%s1658 + $0x84] sm:$0xff]
  %v1871 = vld [vmem:[%s1658 + $0x94] sm:$0xff]
  %v1872 = vld [vmem:[%s1658 + $0x9c] sm:$0xff]
  %v1873 = vld [vmem:[%s1658 + $0xac] sm:$0xff]
  %v1874 = vld [vmem:[%s1658 + $0xb4] sm:$0xff]
  %v1875 = vld [vmem:[%s0 + $0x9] sm:$0x1]
  %v1876 = vperm.slane %v1875, 0
  %v1877 = vmul.f32 %v1859, %v1876
  %v1878 = vmul.f32 %v1860, %v1876
  %v1879 = vmul.f32 %v1861, %v1876
  %v1880 = vmul.f32 %v1862, %v1876
  %v1881 = vmul.f32 %v1863, %v1876
  %v1882 = vmul.f32 %v1864, %v1876
  %v1883 = vmul.f32 %v1865, %v1876
  %v1884 = vmul.f32 %v1866, %v1876
  %v1885 = vmul.f32 %v1867, %v1876
  %v1886 = vmul.f32 %v1868, %v1876
  %v1887 = vmul.f32 %v1869, %v1876
  %v1888 = vmul.f32 %v1870, %v1876
  %v1889 = vmul.f32 %v1871, %v1876
  %v1890 = vmul.f32 %v1872, %v1876
  %v1891 = vmul.f32 %v1873, %v1876
  %v1892 = vmul.f32 %v1874, %v1876
  %v1893 = vadd.f32 %v1843, %v1877
  %v1894 = vadd.f32 %v1844, %v1878
  %v1895 = vadd.f32 %v1845, %v1879
  %v1896 = vadd.f32 %v1846, %v1880
  %v1897 = vadd.f32 %v1847, %v1881
  %v1898 = vadd.f32 %v1848, %v1882
  %v1899 = vadd.f32 %v1849, %v1883
  %v1900 = vadd.f32 %v1850, %v1884
  %v1901 = vadd.f32 %v1851, %v1885
  %v1902 = vadd.f32 %v1852, %v1886
  %v1903 = vadd.f32 %v1853, %v1887
  %v1904 = vadd.f32 %v1854, %v1888
  %v1905 = vadd.f32 %v1855, %v1889
  %v1906 = vadd.f32 %v1856, %v1890
  %v1907 = vadd.f32 %v1857, %v1891
  %v1908 = vadd.f32 %v1858, %v1892
  %s1909 = scalar_lea.vmem [#allocation2], 240
  %v1910 = vld [vmem:[%s1909] sm:$0xff]
  %v1911 = vld [vmem:[%s1909 + $0x8] sm:$0xff]
  %v1912 = vld [vmem:[%s1909 + $0x18] sm:$0xff]
  %v1913 = vld [vmem:[%s1909 + $0x20] sm:$0xff]
  %v1914 = vld [vmem:[%s1909 + $0x30] sm:$0xff]
  %v1915 = vld [vmem:[%s1909 + $0x38] sm:$0xff]
  %v1916 = vld [vmem:[%s1909 + $0x48] sm:$0xff]
  %v1917 = vld [vmem:[%s1909 + $0x50] sm:$0xff]
  %v1918 = vld [vmem:[%s1909 + $0x60] sm:$0xff]
  %v1919 = vld [vmem:[%s1909 + $0x68] sm:$0xff]
  %v1920 = vld [vmem:[%s1909 + $0x78] sm:$0xff]
  %v1921 = vld [vmem:[%s1909 + $0x80] sm:$0xff]
  %v1922 = vld [vmem:[%s1909 + $0x90] sm:$0xff]
  %v1923 = vld [vmem:[%s1909 + $0x98] sm:$0xff]
  %v1924 = vld [vmem:[%s1909 + $0xa8] sm:$0xff]
  %v1925 = vld [vmem:[%s1909 + $0xb0] sm:$0xff]
  %v1926 = vld [vmem:[%s0 + $0xa] sm:$0x1]
  %v1927 = vperm.slane %v1926, 0
  %v1928 = vmul.f32 %v1910, %v1927
  %v1929 = vmul.f32 %v1911, %v1927
  %v1930 = vmul.f32 %v1912, %v1927
  %v1931 = vmul.f32 %v1913, %v1927
  %v1932 = vmul.f32 %v1914, %v1927
  %v1933 = vmul.f32 %v1915, %v1927
  %v1934 = vmul.f32 %v1916, %v1927
  %v1935 = vmul.f32 %v1917, %v1927
  %v1936 = vmul.f32 %v1918, %v1927
  %v1937 = vmul.f32 %v1919, %v1927
  %v1938 = vmul.f32 %v1920, %v1927
  %v1939 = vmul.f32 %v1921, %v1927
  %v1940 = vmul.f32 %v1922, %v1927
  %v1941 = vmul.f32 %v1923, %v1927
  %v1942 = vmul.f32 %v1924, %v1927
  %v1943 = vmul.f32 %v1925, %v1927
  %v1944 = vadd.f32 %v1893, %v1928
  %v1945 = vadd.f32 %v1894, %v1929
  %v1946 = vadd.f32 %v1895, %v1930
  %v1947 = vadd.f32 %v1896, %v1931
  %v1948 = vadd.f32 %v1897, %v1932
  %v1949 = vadd.f32 %v1898, %v1933
  %v1950 = vadd.f32 %v1899, %v1934
  %v1951 = vadd.f32 %v1900, %v1935
  %v1952 = vadd.f32 %v1901, %v1936
  %v1953 = vadd.f32 %v1902, %v1937
  %v1954 = vadd.f32 %v1903, %v1938
  %v1955 = vadd.f32 %v1904, %v1939
  %v1956 = vadd.f32 %v1905, %v1940
  %v1957 = vadd.f32 %v1906, %v1941
  %v1958 = vadd.f32 %v1907, %v1942
  %v1959 = vadd.f32 %v1908, %v1943
  %v1960 = vld [vmem:[%s1909 + $0x1] sm:$0xff]
  %v1961 = vld [vmem:[%s1909 + $0x9] sm:$0xff]
  %v1962 = vld [vmem:[%s1909 + $0x19] sm:$0xff]
  %v1963 = vld [vmem:[%s1909 + $0x21] sm:$0xff]
  %v1964 = vld [vmem:[%s1909 + $0x31] sm:$0xff]
  %v1965 = vld [vmem:[%s1909 + $0x39] sm:$0xff]
  %v1966 = vld [vmem:[%s1909 + $0x49] sm:$0xff]
  %v1967 = vld [vmem:[%s1909 + $0x51] sm:$0xff]
  %v1968 = vld [vmem:[%s1909 + $0x61] sm:$0xff]
  %v1969 = vld [vmem:[%s1909 + $0x69] sm:$0xff]
  %v1970 = vld [vmem:[%s1909 + $0x79] sm:$0xff]
  %v1971 = vld [vmem:[%s1909 + $0x81] sm:$0xff]
  %v1972 = vld [vmem:[%s1909 + $0x91] sm:$0xff]
  %v1973 = vld [vmem:[%s1909 + $0x99] sm:$0xff]
  %v1974 = vld [vmem:[%s1909 + $0xa9] sm:$0xff]
  %v1975 = vld [vmem:[%s1909 + $0xb1] sm:$0xff]
  %v1976 = vld [vmem:[%s0 + $0xb] sm:$0x1]
  %v1977 = vperm.slane %v1976, 0
  %v1978 = vmul.f32 %v1960, %v1977
  %v1979 = vmul.f32 %v1961, %v1977
  %v1980 = vmul.f32 %v1962, %v1977
  %v1981 = vmul.f32 %v1963, %v1977
  %v1982 = vmul.f32 %v1964, %v1977
  %v1983 = vmul.f32 %v1965, %v1977
  %v1984 = vmul.f32 %v1966, %v1977
  %v1985 = vmul.f32 %v1967, %v1977
  %v1986 = vmul.f32 %v1968, %v1977
  %v1987 = vmul.f32 %v1969, %v1977
  %v1988 = vmul.f32 %v1970, %v1977
  %v1989 = vmul.f32 %v1971, %v1977
  %v1990 = vmul.f32 %v1972, %v1977
  %v1991 = vmul.f32 %v1973, %v1977
  %v1992 = vmul.f32 %v1974, %v1977
  %v1993 = vmul.f32 %v1975, %v1977
  %v1994 = vadd.f32 %v1944, %v1978
  %v1995 = vadd.f32 %v1945, %v1979
  %v1996 = vadd.f32 %v1946, %v1980
  %v1997 = vadd.f32 %v1947, %v1981
  %v1998 = vadd.f32 %v1948, %v1982
  %v1999 = vadd.f32 %v1949, %v1983
  %v2000 = vadd.f32 %v1950, %v1984
  %v2001 = vadd.f32 %v1951, %v1985
  %v2002 = vadd.f32 %v1952, %v1986
  %v2003 = vadd.f32 %v1953, %v1987
  %v2004 = vadd.f32 %v1954, %v1988
  %v2005 = vadd.f32 %v1955, %v1989
  %v2006 = vadd.f32 %v1956, %v1990
  %v2007 = vadd.f32 %v1957, %v1991
  %v2008 = vadd.f32 %v1958, %v1992
  %v2009 = vadd.f32 %v1959, %v1993
  %v2010 = vld [vmem:[%s1909 + $0x2] sm:$0xff]
  %v2011 = vld [vmem:[%s1909 + $0xa] sm:$0xff]
  %v2012 = vld [vmem:[%s1909 + $0x1a] sm:$0xff]
  %v2013 = vld [vmem:[%s1909 + $0x22] sm:$0xff]
  %v2014 = vld [vmem:[%s1909 + $0x32] sm:$0xff]
  %v2015 = vld [vmem:[%s1909 + $0x3a] sm:$0xff]
  %v2016 = vld [vmem:[%s1909 + $0x4a] sm:$0xff]
  %v2017 = vld [vmem:[%s1909 + $0x52] sm:$0xff]
  %v2018 = vld [vmem:[%s1909 + $0x62] sm:$0xff]
  %v2019 = vld [vmem:[%s1909 + $0x6a] sm:$0xff]
  %v2020 = vld [vmem:[%s1909 + $0x7a] sm:$0xff]
  %v2021 = vld [vmem:[%s1909 + $0x82] sm:$0xff]
  %v2022 = vld [vmem:[%s1909 + $0x92] sm:$0xff]
  %v2023 = vld [vmem:[%s1909 + $0x9a] sm:$0xff]
  %v2024 = vld [vmem:[%s1909 + $0xaa] sm:$0xff]
  %v2025 = vld [vmem:[%s1909 + $0xb2] sm:$0xff]
  %v2026 = vld [vmem:[%s0 + $0xc] sm:$0x1]
  %v2027 = vperm.slane %v2026, 0
  %v2028 = vmul.f32 %v2010, %v2027
  %v2029 = vmul.f32 %v2011, %v2027
  %v2030 = vmul.f32 %v2012, %v2027
  %v2031 = vmul.f32 %v2013, %v2027
  %v2032 = vmul.f32 %v2014, %v2027
  %v2033 = vmul.f32 %v2015, %v2027
  %v2034 = vmul.f32 %v2016, %v2027
  %v2035 = vmul.f32 %v2017, %v2027
  %v2036 = vmul.f32 %v2018, %v2027
  %v2037 = vmul.f32 %v2019, %v2027
  %v2038 = vmul.f32 %v2020, %v2027
  %v2039 = vmul.f32 %v2021, %v2027
  %v2040 = vmul.f32 %v2022, %v2027
  %v2041 = vmul.f32 %v2023, %v2027
  %v2042 = vmul.f32 %v2024, %v2027
  %v2043 = vmul.f32 %v2025, %v2027
  %v2044 = vadd.f32 %v1994, %v2028
  %v2045 = vadd.f32 %v1995, %v2029
  %v2046 = vadd.f32 %v1996, %v2030
  %v2047 = vadd.f32 %v1997, %v2031
  %v2048 = vadd.f32 %v1998, %v2032
  %v2049 = vadd.f32 %v1999, %v2033
  %v2050 = vadd.f32 %v2000, %v2034
  %v2051 = vadd.f32 %v2001, %v2035
  %v2052 = vadd.f32 %v2002, %v2036
  %v2053 = vadd.f32 %v2003, %v2037
  %v2054 = vadd.f32 %v2004, %v2038
  %v2055 = vadd.f32 %v2005, %v2039
  %v2056 = vadd.f32 %v2006, %v2040
  %v2057 = vadd.f32 %v2007, %v2041
  %v2058 = vadd.f32 %v2008, %v2042
  %v2059 = vadd.f32 %v2009, %v2043
  %v2060 = vld [vmem:[%s1909 + $0x3] sm:$0xff]
  %v2061 = vld [vmem:[%s1909 + $0xb] sm:$0xff]
  %v2062 = vld [vmem:[%s1909 + $0x1b] sm:$0xff]
  %v2063 = vld [vmem:[%s1909 + $0x23] sm:$0xff]
  %v2064 = vld [vmem:[%s1909 + $0x33] sm:$0xff]
  %v2065 = vld [vmem:[%s1909 + $0x3b] sm:$0xff]
  %v2066 = vld [vmem:[%s1909 + $0x4b] sm:$0xff]
  %v2067 = vld [vmem:[%s1909 + $0x53] sm:$0xff]
  %v2068 = vld [vmem:[%s1909 + $0x63] sm:$0xff]
  %v2069 = vld [vmem:[%s1909 + $0x6b] sm:$0xff]
  %v2070 = vld [vmem:[%s1909 + $0x7b] sm:$0xff]
  %v2071 = vld [vmem:[%s1909 + $0x83] sm:$0xff]
  %v2072 = vld [vmem:[%s1909 + $0x93] sm:$0xff]
  %v2073 = vld [vmem:[%s1909 + $0x9b] sm:$0xff]
  %v2074 = vld [vmem:[%s1909 + $0xab] sm:$0xff]
  %v2075 = vld [vmem:[%s1909 + $0xb3] sm:$0xff]
  %v2076 = vld [vmem:[%s0 + $0xd] sm:$0x1]
  %v2077 = vperm.slane %v2076, 0
  %v2078 = vmul.f32 %v2060, %v2077
  %v2079 = vmul.f32 %v2061, %v2077
  %v2080 = vmul.f32 %v2062, %v2077
  %v2081 = vmul.f32 %v2063, %v2077
  %v2082 = vmul.f32 %v2064, %v2077
  %v2083 = vmul.f32 %v2065, %v2077
  %v2084 = vmul.f32 %v2066, %v2077
  %v2085 = vmul.f32 %v2067, %v2077
  %v2086 = vmul.f32 %v2068, %v2077
  %v2087 = vmul.f32 %v2069, %v2077
  %v2088 = vmul.f32 %v2070, %v2077
  %v2089 = vmul.f32 %v2071, %v2077
  %v2090 = vmul.f32 %v2072, %v2077
  %v2091 = vmul.f32 %v2073, %v2077
  %v2092 = vmul.f32 %v2074, %v2077
  %v2093 = vmul.f32 %v2075, %v2077
  %v2094 = vadd.f32 %v2044, %v2078
  %v2095 = vadd.f32 %v2045, %v2079
  %v2096 = vadd.f32 %v2046, %v2080
  %v2097 = vadd.f32 %v2047, %v2081
  %v2098 = vadd.f32 %v2048, %v2082
  %v2099 = vadd.f32 %v2049, %v2083
  %v2100 = vadd.f32 %v2050, %v2084
  %v2101 = vadd.f32 %v2051, %v2085
  %v2102 = vadd.f32 %v2052, %v2086
  %v2103 = vadd.f32 %v2053, %v2087
  %v2104 = vadd.f32 %v2054, %v2088
  %v2105 = vadd.f32 %v2055, %v2089
  %v2106 = vadd.f32 %v2056, %v2090
  %v2107 = vadd.f32 %v2057, %v2091
  %v2108 = vadd.f32 %v2058, %v2092
  %v2109 = vadd.f32 %v2059, %v2093
  %v2110 = vld [vmem:[%s1909 + $0x4] sm:$0xff]
  %v2111 = vld [vmem:[%s1909 + $0xc] sm:$0xff]
  %v2112 = vld [vmem:[%s1909 + $0x1c] sm:$0xff]
  %v2113 = vld [vmem:[%s1909 + $0x24] sm:$0xff]
  %v2114 = vld [vmem:[%s1909 + $0x34] sm:$0xff]
  %v2115 = vld [vmem:[%s1909 + $0x3c] sm:$0xff]
  %v2116 = vld [vmem:[%s1909 + $0x4c] sm:$0xff]
  %v2117 = vld [vmem:[%s1909 + $0x54] sm:$0xff]
  %v2118 = vld [vmem:[%s1909 + $0x64] sm:$0xff]
  %v2119 = vld [vmem:[%s1909 + $0x6c] sm:$0xff]
  %v2120 = vld [vmem:[%s1909 + $0x7c] sm:$0xff]
  %v2121 = vld [vmem:[%s1909 + $0x84] sm:$0xff]
  %v2122 = vld [vmem:[%s1909 + $0x94] sm:$0xff]
  %v2123 = vld [vmem:[%s1909 + $0x9c] sm:$0xff]
  %v2124 = vld [vmem:[%s1909 + $0xac] sm:$0xff]
  %v2125 = vld [vmem:[%s1909 + $0xb4] sm:$0xff]
  %v2126 = vld [vmem:[%s0 + $0xe] sm:$0x1]
  %v2127 = vperm.slane %v2126, 0
  %v2128 = vmul.f32 %v2110, %v2127
  %v2129 = vmul.f32 %v2111, %v2127
  %v2130 = vmul.f32 %v2112, %v2127
  %v2131 = vmul.f32 %v2113, %v2127
  %v2132 = vmul.f32 %v2114, %v2127
  %v2133 = vmul.f32 %v2115, %v2127
  %v2134 = vmul.f32 %v2116, %v2127
  %v2135 = vmul.f32 %v2117, %v2127
  %v2136 = vmul.f32 %v2118, %v2127
  %v2137 = vmul.f32 %v2119, %v2127
  %v2138 = vmul.f32 %v2120, %v2127
  %v2139 = vmul.f32 %v2121, %v2127
  %v2140 = vmul.f32 %v2122, %v2127
  %v2141 = vmul.f32 %v2123, %v2127
  %v2142 = vmul.f32 %v2124, %v2127
  %v2143 = vmul.f32 %v2125, %v2127
  %v2144 = vadd.f32 %v2094, %v2128
  %v2145 = vadd.f32 %v2095, %v2129
  %v2146 = vadd.f32 %v2096, %v2130
  %v2147 = vadd.f32 %v2097, %v2131
  %v2148 = vadd.f32 %v2098, %v2132
  %v2149 = vadd.f32 %v2099, %v2133
  %v2150 = vadd.f32 %v2100, %v2134
  %v2151 = vadd.f32 %v2101, %v2135
  %v2152 = vadd.f32 %v2102, %v2136
  %v2153 = vadd.f32 %v2103, %v2137
  %v2154 = vadd.f32 %v2104, %v2138
  %v2155 = vadd.f32 %v2105, %v2139
  %v2156 = vadd.f32 %v2106, %v2140
  %v2157 = vadd.f32 %v2107, %v2141
  %v2158 = vadd.f32 %v2108, %v2142
  %v2159 = vadd.f32 %v2109, %v2143
  %s2160 = scalar_lea.vmem [#allocation2], 264
  %v2161 = vld [vmem:[%s2160] sm:$0xff]
  %v2162 = vld [vmem:[%s2160 + $0x8] sm:$0xff]
  %v2163 = vld [vmem:[%s2160 + $0x18] sm:$0xff]
  %v2164 = vld [vmem:[%s2160 + $0x20] sm:$0xff]
  %v2165 = vld [vmem:[%s2160 + $0x30] sm:$0xff]
  %v2166 = vld [vmem:[%s2160 + $0x38] sm:$0xff]
  %v2167 = vld [vmem:[%s2160 + $0x48] sm:$0xff]
  %v2168 = vld [vmem:[%s2160 + $0x50] sm:$0xff]
  %v2169 = vld [vmem:[%s2160 + $0x60] sm:$0xff]
  %v2170 = vld [vmem:[%s2160 + $0x68] sm:$0xff]
  %v2171 = vld [vmem:[%s2160 + $0x78] sm:$0xff]
  %v2172 = vld [vmem:[%s2160 + $0x80] sm:$0xff]
  %v2173 = vld [vmem:[%s2160 + $0x90] sm:$0xff]
  %v2174 = vld [vmem:[%s2160 + $0x98] sm:$0xff]
  %v2175 = vld [vmem:[%s2160 + $0xa8] sm:$0xff]
  %v2176 = vld [vmem:[%s2160 + $0xb0] sm:$0xff]
  %v2177 = vld [vmem:[%s0 + $0xf] sm:$0x1]
  %v2178 = vperm.slane %v2177, 0
  %v2179 = vmul.f32 %v2161, %v2178
  %v2180 = vmul.f32 %v2162, %v2178
  %v2181 = vmul.f32 %v2163, %v2178
  %v2182 = vmul.f32 %v2164, %v2178
  %v2183 = vmul.f32 %v2165, %v2178
  %v2184 = vmul.f32 %v2166, %v2178
  %v2185 = vmul.f32 %v2167, %v2178
  %v2186 = vmul.f32 %v2168, %v2178
  %v2187 = vmul.f32 %v2169, %v2178
  %v2188 = vmul.f32 %v2170, %v2178
  %v2189 = vmul.f32 %v2171, %v2178
  %v2190 = vmul.f32 %v2172, %v2178
  %v2191 = vmul.f32 %v2173, %v2178
  %v2192 = vmul.f32 %v2174, %v2178
  %v2193 = vmul.f32 %v2175, %v2178
  %v2194 = vmul.f32 %v2176, %v2178
  %v2195 = vadd.f32 %v2144, %v2179
  %v2196 = vadd.f32 %v2145, %v2180
  %v2197 = vadd.f32 %v2146, %v2181
  %v2198 = vadd.f32 %v2147, %v2182
  %v2199 = vadd.f32 %v2148, %v2183
  %v2200 = vadd.f32 %v2149, %v2184
  %v2201 = vadd.f32 %v2150, %v2185
  %v2202 = vadd.f32 %v2151, %v2186
  %v2203 = vadd.f32 %v2152, %v2187
  %v2204 = vadd.f32 %v2153, %v2188
  %v2205 = vadd.f32 %v2154, %v2189
  %v2206 = vadd.f32 %v2155, %v2190
  %v2207 = vadd.f32 %v2156, %v2191
  %v2208 = vadd.f32 %v2157, %v2192
  %v2209 = vadd.f32 %v2158, %v2193
  %v2210 = vadd.f32 %v2159, %v2194
  %v2211 = vld [vmem:[%s2160 + $0x1] sm:$0xff]
  %v2212 = vld [vmem:[%s2160 + $0x9] sm:$0xff]
  %v2213 = vld [vmem:[%s2160 + $0x19] sm:$0xff]
  %v2214 = vld [vmem:[%s2160 + $0x21] sm:$0xff]
  %v2215 = vld [vmem:[%s2160 + $0x31] sm:$0xff]
  %v2216 = vld [vmem:[%s2160 + $0x39] sm:$0xff]
  %v2217 = vld [vmem:[%s2160 + $0x49] sm:$0xff]
  %v2218 = vld [vmem:[%s2160 + $0x51] sm:$0xff]
  %v2219 = vld [vmem:[%s2160 + $0x61] sm:$0xff]
  %v2220 = vld [vmem:[%s2160 + $0x69] sm:$0xff]
  %v2221 = vld [vmem:[%s2160 + $0x79] sm:$0xff]
  %v2222 = vld [vmem:[%s2160 + $0x81] sm:$0xff]
  %v2223 = vld [vmem:[%s2160 + $0x91] sm:$0xff]
  %v2224 = vld [vmem:[%s2160 + $0x99] sm:$0xff]
  %v2225 = vld [vmem:[%s2160 + $0xa9] sm:$0xff]
  %v2226 = vld [vmem:[%s2160 + $0xb1] sm:$0xff]
  %v2227 = vld [vmem:[%s0 + $0x10] sm:$0x1]
  %v2228 = vperm.slane %v2227, 0
  %v2229 = vmul.f32 %v2211, %v2228
  %v2230 = vmul.f32 %v2212, %v2228
  %v2231 = vmul.f32 %v2213, %v2228
  %v2232 = vmul.f32 %v2214, %v2228
  %v2233 = vmul.f32 %v2215, %v2228
  %v2234 = vmul.f32 %v2216, %v2228
  %v2235 = vmul.f32 %v2217, %v2228
  %v2236 = vmul.f32 %v2218, %v2228
  %v2237 = vmul.f32 %v2219, %v2228
  %v2238 = vmul.f32 %v2220, %v2228
  %v2239 = vmul.f32 %v2221, %v2228
  %v2240 = vmul.f32 %v2222, %v2228
  %v2241 = vmul.f32 %v2223, %v2228
  %v2242 = vmul.f32 %v2224, %v2228
  %v2243 = vmul.f32 %v2225, %v2228
  %v2244 = vmul.f32 %v2226, %v2228
  %v2245 = vadd.f32 %v2195, %v2229
  %v2246 = vadd.f32 %v2196, %v2230
  %v2247 = vadd.f32 %v2197, %v2231
  %v2248 = vadd.f32 %v2198, %v2232
  %v2249 = vadd.f32 %v2199, %v2233
  %v2250 = vadd.f32 %v2200, %v2234
  %v2251 = vadd.f32 %v2201, %v2235
  %v2252 = vadd.f32 %v2202, %v2236
  %v2253 = vadd.f32 %v2203, %v2237
  %v2254 = vadd.f32 %v2204, %v2238
  %v2255 = vadd.f32 %v2205, %v2239
  %v2256 = vadd.f32 %v2206, %v2240
  %v2257 = vadd.f32 %v2207, %v2241
  %v2258 = vadd.f32 %v2208, %v2242
  %v2259 = vadd.f32 %v2209, %v2243
  %v2260 = vadd.f32 %v2210, %v2244
  %v2261 = vld [vmem:[%s2160 + $0x2] sm:$0xff]
  %v2262 = vld [vmem:[%s2160 + $0xa] sm:$0xff]
  %v2263 = vld [vmem:[%s2160 + $0x1a] sm:$0xff]
  %v2264 = vld [vmem:[%s2160 + $0x22] sm:$0xff]
  %v2265 = vld [vmem:[%s2160 + $0x32] sm:$0xff]
  %v2266 = vld [vmem:[%s2160 + $0x3a] sm:$0xff]
  %v2267 = vld [vmem:[%s2160 + $0x4a] sm:$0xff]
  %v2268 = vld [vmem:[%s2160 + $0x52] sm:$0xff]
  %v2269 = vld [vmem:[%s2160 + $0x62] sm:$0xff]
  %v2270 = vld [vmem:[%s2160 + $0x6a] sm:$0xff]
  %v2271 = vld [vmem:[%s2160 + $0x7a] sm:$0xff]
  %v2272 = vld [vmem:[%s2160 + $0x82] sm:$0xff]
  %v2273 = vld [vmem:[%s2160 + $0x92] sm:$0xff]
  %v2274 = vld [vmem:[%s2160 + $0x9a] sm:$0xff]
  %v2275 = vld [vmem:[%s2160 + $0xaa] sm:$0xff]
  %v2276 = vld [vmem:[%s2160 + $0xb2] sm:$0xff]
  %v2277 = vld [vmem:[%s0 + $0x11] sm:$0x1]
  %v2278 = vperm.slane %v2277, 0
  %v2279 = vmul.f32 %v2261, %v2278
  %v2280 = vmul.f32 %v2262, %v2278
  %v2281 = vmul.f32 %v2263, %v2278
  %v2282 = vmul.f32 %v2264, %v2278
  %v2283 = vmul.f32 %v2265, %v2278
  %v2284 = vmul.f32 %v2266, %v2278
  %v2285 = vmul.f32 %v2267, %v2278
  %v2286 = vmul.f32 %v2268, %v2278
  %v2287 = vmul.f32 %v2269, %v2278
  %v2288 = vmul.f32 %v2270, %v2278
  %v2289 = vmul.f32 %v2271, %v2278
  %v2290 = vmul.f32 %v2272, %v2278
  %v2291 = vmul.f32 %v2273, %v2278
  %v2292 = vmul.f32 %v2274, %v2278
  %v2293 = vmul.f32 %v2275, %v2278
  %v2294 = vmul.f32 %v2276, %v2278
  %v2295 = vadd.f32 %v2245, %v2279
  %v2296 = vadd.f32 %v2246, %v2280
  %v2297 = vadd.f32 %v2247, %v2281
  %v2298 = vadd.f32 %v2248, %v2282
  %v2299 = vadd.f32 %v2249, %v2283
  %v2300 = vadd.f32 %v2250, %v2284
  %v2301 = vadd.f32 %v2251, %v2285
  %v2302 = vadd.f32 %v2252, %v2286
  %v2303 = vadd.f32 %v2253, %v2287
  %v2304 = vadd.f32 %v2254, %v2288
  %v2305 = vadd.f32 %v2255, %v2289
  %v2306 = vadd.f32 %v2256, %v2290
  %v2307 = vadd.f32 %v2257, %v2291
  %v2308 = vadd.f32 %v2258, %v2292
  %v2309 = vadd.f32 %v2259, %v2293
  %v2310 = vadd.f32 %v2260, %v2294
  %v2311 = vld [vmem:[%s2160 + $0x3] sm:$0xff]
  %v2312 = vld [vmem:[%s2160 + $0xb] sm:$0xff]
  %v2313 = vld [vmem:[%s2160 + $0x1b] sm:$0xff]
  %v2314 = vld [vmem:[%s2160 + $0x23] sm:$0xff]
  %v2315 = vld [vmem:[%s2160 + $0x33] sm:$0xff]
  %v2316 = vld [vmem:[%s2160 + $0x3b] sm:$0xff]
  %v2317 = vld [vmem:[%s2160 + $0x4b] sm:$0xff]
  %v2318 = vld [vmem:[%s2160 + $0x53] sm:$0xff]
  %v2319 = vld [vmem:[%s2160 + $0x63] sm:$0xff]
  %v2320 = vld [vmem:[%s2160 + $0x6b] sm:$0xff]
  %v2321 = vld [vmem:[%s2160 + $0x7b] sm:$0xff]
  %v2322 = vld [vmem:[%s2160 + $0x83] sm:$0xff]
  %v2323 = vld [vmem:[%s2160 + $0x93] sm:$0xff]
  %v2324 = vld [vmem:[%s2160 + $0x9b] sm:$0xff]
  %v2325 = vld [vmem:[%s2160 + $0xab] sm:$0xff]
  %v2326 = vld [vmem:[%s2160 + $0xb3] sm:$0xff]
  %v2327 = vld [vmem:[%s0 + $0x12] sm:$0x1]
  %v2328 = vperm.slane %v2327, 0
  %v2329 = vmul.f32 %v2311, %v2328
  %v2330 = vmul.f32 %v2312, %v2328
  %v2331 = vmul.f32 %v2313, %v2328
  %v2332 = vmul.f32 %v2314, %v2328
  %v2333 = vmul.f32 %v2315, %v2328
  %v2334 = vmul.f32 %v2316, %v2328
  %v2335 = vmul.f32 %v2317, %v2328
  %v2336 = vmul.f32 %v2318, %v2328
  %v2337 = vmul.f32 %v2319, %v2328
  %v2338 = vmul.f32 %v2320, %v2328
  %v2339 = vmul.f32 %v2321, %v2328
  %v2340 = vmul.f32 %v2322, %v2328
  %v2341 = vmul.f32 %v2323, %v2328
  %v2342 = vmul.f32 %v2324, %v2328
  %v2343 = vmul.f32 %v2325, %v2328
  %v2344 = vmul.f32 %v2326, %v2328
  %v2345 = vadd.f32 %v2295, %v2329
  %v2346 = vadd.f32 %v2296, %v2330
  %v2347 = vadd.f32 %v2297, %v2331
  %v2348 = vadd.f32 %v2298, %v2332
  %v2349 = vadd.f32 %v2299, %v2333
  %v2350 = vadd.f32 %v2300, %v2334
  %v2351 = vadd.f32 %v2301, %v2335
  %v2352 = vadd.f32 %v2302, %v2336
  %v2353 = vadd.f32 %v2303, %v2337
  %v2354 = vadd.f32 %v2304, %v2338
  %v2355 = vadd.f32 %v2305, %v2339
  %v2356 = vadd.f32 %v2306, %v2340
  %v2357 = vadd.f32 %v2307, %v2341
  %v2358 = vadd.f32 %v2308, %v2342
  %v2359 = vadd.f32 %v2309, %v2343
  %v2360 = vadd.f32 %v2310, %v2344
  %v2361 = vld [vmem:[%s2160 + $0x4] sm:$0xff]
  %v2362 = vld [vmem:[%s2160 + $0xc] sm:$0xff]
  %v2363 = vld [vmem:[%s2160 + $0x1c] sm:$0xff]
  %v2364 = vld [vmem:[%s2160 + $0x24] sm:$0xff]
  %v2365 = vld [vmem:[%s2160 + $0x34] sm:$0xff]
  %v2366 = vld [vmem:[%s2160 + $0x3c] sm:$0xff]
  %v2367 = vld [vmem:[%s2160 + $0x4c] sm:$0xff]
  %v2368 = vld [vmem:[%s2160 + $0x54] sm:$0xff]
  %v2369 = vld [vmem:[%s2160 + $0x64] sm:$0xff]
  %v2370 = vld [vmem:[%s2160 + $0x6c] sm:$0xff]
  %v2371 = vld [vmem:[%s2160 + $0x7c] sm:$0xff]
  %v2372 = vld [vmem:[%s2160 + $0x84] sm:$0xff]
  %v2373 = vld [vmem:[%s2160 + $0x94] sm:$0xff]
  %v2374 = vld [vmem:[%s2160 + $0x9c] sm:$0xff]
  %v2375 = vld [vmem:[%s2160 + $0xac] sm:$0xff]
  %v2376 = vld [vmem:[%s2160 + $0xb4] sm:$0xff]
  %v2377 = vld [vmem:[%s0 + $0x13] sm:$0x1]
  %v2378 = vperm.slane %v2377, 0
  %v2379 = vmul.f32 %v2361, %v2378
  %v2380 = vmul.f32 %v2362, %v2378
  %v2381 = vmul.f32 %v2363, %v2378
  %v2382 = vmul.f32 %v2364, %v2378
  %v2383 = vmul.f32 %v2365, %v2378
  %v2384 = vmul.f32 %v2366, %v2378
  %v2385 = vmul.f32 %v2367, %v2378
  %v2386 = vmul.f32 %v2368, %v2378
  %v2387 = vmul.f32 %v2369, %v2378
  %v2388 = vmul.f32 %v2370, %v2378
  %v2389 = vmul.f32 %v2371, %v2378
  %v2390 = vmul.f32 %v2372, %v2378
  %v2391 = vmul.f32 %v2373, %v2378
  %v2392 = vmul.f32 %v2374, %v2378
  %v2393 = vmul.f32 %v2375, %v2378
  %v2394 = vmul.f32 %v2376, %v2378
  %v2395 = vadd.f32 %v2345, %v2379
  %v2396 = vadd.f32 %v2346, %v2380
  %v2397 = vadd.f32 %v2347, %v2381
  %v2398 = vadd.f32 %v2348, %v2382
  %v2399 = vadd.f32 %v2349, %v2383
  %v2400 = vadd.f32 %v2350, %v2384
  %v2401 = vadd.f32 %v2351, %v2385
  %v2402 = vadd.f32 %v2352, %v2386
  %v2403 = vadd.f32 %v2353, %v2387
  %v2404 = vadd.f32 %v2354, %v2388
  %v2405 = vadd.f32 %v2355, %v2389
  %v2406 = vadd.f32 %v2356, %v2390
  %v2407 = vadd.f32 %v2357, %v2391
  %v2408 = vadd.f32 %v2358, %v2392
  %v2409 = vadd.f32 %v2359, %v2393
  %v2410 = vadd.f32 %v2360, %v2394
  %s2411 = scalar_lea.vmem [#allocation2], 288
  %v2412 = vld [vmem:[%s2411] sm:$0xff]
  %v2413 = vld [vmem:[%s2411 + $0x8] sm:$0xff]
  %v2414 = vld [vmem:[%s2411 + $0x18] sm:$0xff]
  %v2415 = vld [vmem:[%s2411 + $0x20] sm:$0xff]
  %v2416 = vld [vmem:[%s2411 + $0x30] sm:$0xff]
  %v2417 = vld [vmem:[%s2411 + $0x38] sm:$0xff]
  %v2418 = vld [vmem:[%s2411 + $0x48] sm:$0xff]
  %v2419 = vld [vmem:[%s2411 + $0x50] sm:$0xff]
  %v2420 = vld [vmem:[%s2411 + $0x60] sm:$0xff]
  %v2421 = vld [vmem:[%s2411 + $0x68] sm:$0xff]
  %v2422 = vld [vmem:[%s2411 + $0x78] sm:$0xff]
  %v2423 = vld [vmem:[%s2411 + $0x80] sm:$0xff]
  %v2424 = vld [vmem:[%s2411 + $0x90] sm:$0xff]
  %v2425 = vld [vmem:[%s2411 + $0x98] sm:$0xff]
  %v2426 = vld [vmem:[%s2411 + $0xa8] sm:$0xff]
  %v2427 = vld [vmem:[%s2411 + $0xb0] sm:$0xff]
  %v2428 = vld [vmem:[%s0 + $0x14] sm:$0x1]
  %v2429 = vperm.slane %v2428, 0
  %v2430 = vmul.f32 %v2412, %v2429
  %v2431 = vmul.f32 %v2413, %v2429
  %v2432 = vmul.f32 %v2414, %v2429
  %v2433 = vmul.f32 %v2415, %v2429
  %v2434 = vmul.f32 %v2416, %v2429
  %v2435 = vmul.f32 %v2417, %v2429
  %v2436 = vmul.f32 %v2418, %v2429
  %v2437 = vmul.f32 %v2419, %v2429
  %v2438 = vmul.f32 %v2420, %v2429
  %v2439 = vmul.f32 %v2421, %v2429
  %v2440 = vmul.f32 %v2422, %v2429
  %v2441 = vmul.f32 %v2423, %v2429
  %v2442 = vmul.f32 %v2424, %v2429
  %v2443 = vmul.f32 %v2425, %v2429
  %v2444 = vmul.f32 %v2426, %v2429
  %v2445 = vmul.f32 %v2427, %v2429
  %v2446 = vadd.f32 %v2395, %v2430
  %v2447 = vadd.f32 %v2396, %v2431
  %v2448 = vadd.f32 %v2397, %v2432
  %v2449 = vadd.f32 %v2398, %v2433
  %v2450 = vadd.f32 %v2399, %v2434
  %v2451 = vadd.f32 %v2400, %v2435
  %v2452 = vadd.f32 %v2401, %v2436
  %v2453 = vadd.f32 %v2402, %v2437
  %v2454 = vadd.f32 %v2403, %v2438
  %v2455 = vadd.f32 %v2404, %v2439
  %v2456 = vadd.f32 %v2405, %v2440
  %v2457 = vadd.f32 %v2406, %v2441
  %v2458 = vadd.f32 %v2407, %v2442
  %v2459 = vadd.f32 %v2408, %v2443
  %v2460 = vadd.f32 %v2409, %v2444
  %v2461 = vadd.f32 %v2410, %v2445
  %v2462 = vld [vmem:[%s2411 + $0x1] sm:$0xff]
  %v2463 = vld [vmem:[%s2411 + $0x9] sm:$0xff]
  %v2464 = vld [vmem:[%s2411 + $0x19] sm:$0xff]
  %v2465 = vld [vmem:[%s2411 + $0x21] sm:$0xff]
  %v2466 = vld [vmem:[%s2411 + $0x31] sm:$0xff]
  %v2467 = vld [vmem:[%s2411 + $0x39] sm:$0xff]
  %v2468 = vld [vmem:[%s2411 + $0x49] sm:$0xff]
  %v2469 = vld [vmem:[%s2411 + $0x51] sm:$0xff]
  %v2470 = vld [vmem:[%s2411 + $0x61] sm:$0xff]
  %v2471 = vld [vmem:[%s2411 + $0x69] sm:$0xff]
  %v2472 = vld [vmem:[%s2411 + $0x79] sm:$0xff]
  %v2473 = vld [vmem:[%s2411 + $0x81] sm:$0xff]
  %v2474 = vld [vmem:[%s2411 + $0x91] sm:$0xff]
  %v2475 = vld [vmem:[%s2411 + $0x99] sm:$0xff]
  %v2476 = vld [vmem:[%s2411 + $0xa9] sm:$0xff]
  %v2477 = vld [vmem:[%s2411 + $0xb1] sm:$0xff]
  %v2478 = vld [vmem:[%s0 + $0x15] sm:$0x1]
  %v2479 = vperm.slane %v2478, 0
  %v2480 = vmul.f32 %v2462, %v2479
  %v2481 = vmul.f32 %v2463, %v2479
  %v2482 = vmul.f32 %v2464, %v2479
  %v2483 = vmul.f32 %v2465, %v2479
  %v2484 = vmul.f32 %v2466, %v2479
  %v2485 = vmul.f32 %v2467, %v2479
  %v2486 = vmul.f32 %v2468, %v2479
  %v2487 = vmul.f32 %v2469, %v2479
  %v2488 = vmul.f32 %v2470, %v2479
  %v2489 = vmul.f32 %v2471, %v2479
  %v2490 = vmul.f32 %v2472, %v2479
  %v2491 = vmul.f32 %v2473, %v2479
  %v2492 = vmul.f32 %v2474, %v2479
  %v2493 = vmul.f32 %v2475, %v2479
  %v2494 = vmul.f32 %v2476, %v2479
  %v2495 = vmul.f32 %v2477, %v2479
  %v2496 = vadd.f32 %v2446, %v2480
  %v2497 = vadd.f32 %v2447, %v2481
  %v2498 = vadd.f32 %v2448, %v2482
  %v2499 = vadd.f32 %v2449, %v2483
  %v2500 = vadd.f32 %v2450, %v2484
  %v2501 = vadd.f32 %v2451, %v2485
  %v2502 = vadd.f32 %v2452, %v2486
  %v2503 = vadd.f32 %v2453, %v2487
  %v2504 = vadd.f32 %v2454, %v2488
  %v2505 = vadd.f32 %v2455, %v2489
  %v2506 = vadd.f32 %v2456, %v2490
  %v2507 = vadd.f32 %v2457, %v2491
  %v2508 = vadd.f32 %v2458, %v2492
  %v2509 = vadd.f32 %v2459, %v2493
  %v2510 = vadd.f32 %v2460, %v2494
  %v2511 = vadd.f32 %v2461, %v2495
  %v2512 = vld [vmem:[%s2411 + $0x2] sm:$0xff]
  %v2513 = vld [vmem:[%s2411 + $0xa] sm:$0xff]
  %v2514 = vld [vmem:[%s2411 + $0x1a] sm:$0xff]
  %v2515 = vld [vmem:[%s2411 + $0x22] sm:$0xff]
  %v2516 = vld [vmem:[%s2411 + $0x32] sm:$0xff]
  %v2517 = vld [vmem:[%s2411 + $0x3a] sm:$0xff]
  %v2518 = vld [vmem:[%s2411 + $0x4a] sm:$0xff]
  %v2519 = vld [vmem:[%s2411 + $0x52] sm:$0xff]
  %v2520 = vld [vmem:[%s2411 + $0x62] sm:$0xff]
  %v2521 = vld [vmem:[%s2411 + $0x6a] sm:$0xff]
  %v2522 = vld [vmem:[%s2411 + $0x7a] sm:$0xff]
  %v2523 = vld [vmem:[%s2411 + $0x82] sm:$0xff]
  %v2524 = vld [vmem:[%s2411 + $0x92] sm:$0xff]
  %v2525 = vld [vmem:[%s2411 + $0x9a] sm:$0xff]
  %v2526 = vld [vmem:[%s2411 + $0xaa] sm:$0xff]
  %v2527 = vld [vmem:[%s2411 + $0xb2] sm:$0xff]
  %v2528 = vld [vmem:[%s0 + $0x16] sm:$0x1]
  %v2529 = vperm.slane %v2528, 0
  %v2530 = vmul.f32 %v2512, %v2529
  %v2531 = vmul.f32 %v2513, %v2529
  %v2532 = vmul.f32 %v2514, %v2529
  %v2533 = vmul.f32 %v2515, %v2529
  %v2534 = vmul.f32 %v2516, %v2529
  %v2535 = vmul.f32 %v2517, %v2529
  %v2536 = vmul.f32 %v2518, %v2529
  %v2537 = vmul.f32 %v2519, %v2529
  %v2538 = vmul.f32 %v2520, %v2529
  %v2539 = vmul.f32 %v2521, %v2529
  %v2540 = vmul.f32 %v2522, %v2529
  %v2541 = vmul.f32 %v2523, %v2529
  %v2542 = vmul.f32 %v2524, %v2529
  %v2543 = vmul.f32 %v2525, %v2529
  %v2544 = vmul.f32 %v2526, %v2529
  %v2545 = vmul.f32 %v2527, %v2529
  %v2546 = vadd.f32 %v2496, %v2530
  %v2547 = vadd.f32 %v2497, %v2531
  %v2548 = vadd.f32 %v2498, %v2532
  %v2549 = vadd.f32 %v2499, %v2533
  %v2550 = vadd.f32 %v2500, %v2534
  %v2551 = vadd.f32 %v2501, %v2535
  %v2552 = vadd.f32 %v2502, %v2536
  %v2553 = vadd.f32 %v2503, %v2537
  %v2554 = vadd.f32 %v2504, %v2538
  %v2555 = vadd.f32 %v2505, %v2539
  %v2556 = vadd.f32 %v2506, %v2540
  %v2557 = vadd.f32 %v2507, %v2541
  %v2558 = vadd.f32 %v2508, %v2542
  %v2559 = vadd.f32 %v2509, %v2543
  %v2560 = vadd.f32 %v2510, %v2544
  %v2561 = vadd.f32 %v2511, %v2545
  %v2562 = vld [vmem:[%s2411 + $0x3] sm:$0xff]
  %v2563 = vld [vmem:[%s2411 + $0xb] sm:$0xff]
  %v2564 = vld [vmem:[%s2411 + $0x1b] sm:$0xff]
  %v2565 = vld [vmem:[%s2411 + $0x23] sm:$0xff]
  %v2566 = vld [vmem:[%s2411 + $0x33] sm:$0xff]
  %v2567 = vld [vmem:[%s2411 + $0x3b] sm:$0xff]
  %v2568 = vld [vmem:[%s2411 + $0x4b] sm:$0xff]
  %v2569 = vld [vmem:[%s2411 + $0x53] sm:$0xff]
  %v2570 = vld [vmem:[%s2411 + $0x63] sm:$0xff]
  %v2571 = vld [vmem:[%s2411 + $0x6b] sm:$0xff]
  %v2572 = vld [vmem:[%s2411 + $0x7b] sm:$0xff]
  %v2573 = vld [vmem:[%s2411 + $0x83] sm:$0xff]
  %v2574 = vld [vmem:[%s2411 + $0x93] sm:$0xff]
  %v2575 = vld [vmem:[%s2411 + $0x9b] sm:$0xff]
  %v2576 = vld [vmem:[%s2411 + $0xab] sm:$0xff]
  %v2577 = vld [vmem:[%s2411 + $0xb3] sm:$0xff]
  %v2578 = vld [vmem:[%s0 + $0x17] sm:$0x1]
  %v2579 = vperm.slane %v2578, 0
  %v2580 = vmul.f32 %v2562, %v2579
  %v2581 = vmul.f32 %v2563, %v2579
  %v2582 = vmul.f32 %v2564, %v2579
  %v2583 = vmul.f32 %v2565, %v2579
  %v2584 = vmul.f32 %v2566, %v2579
  %v2585 = vmul.f32 %v2567, %v2579
  %v2586 = vmul.f32 %v2568, %v2579
  %v2587 = vmul.f32 %v2569, %v2579
  %v2588 = vmul.f32 %v2570, %v2579
  %v2589 = vmul.f32 %v2571, %v2579
  %v2590 = vmul.f32 %v2572, %v2579
  %v2591 = vmul.f32 %v2573, %v2579
  %v2592 = vmul.f32 %v2574, %v2579
  %v2593 = vmul.f32 %v2575, %v2579
  %v2594 = vmul.f32 %v2576, %v2579
  %v2595 = vmul.f32 %v2577, %v2579
  %v2596 = vadd.f32 %v2546, %v2580
  %v2597 = vadd.f32 %v2547, %v2581
  %v2598 = vadd.f32 %v2548, %v2582
  %v2599 = vadd.f32 %v2549, %v2583
  %v2600 = vadd.f32 %v2550, %v2584
  %v2601 = vadd.f32 %v2551, %v2585
  %v2602 = vadd.f32 %v2552, %v2586
  %v2603 = vadd.f32 %v2553, %v2587
  %v2604 = vadd.f32 %v2554, %v2588
  %v2605 = vadd.f32 %v2555, %v2589
  %v2606 = vadd.f32 %v2556, %v2590
  %v2607 = vadd.f32 %v2557, %v2591
  %v2608 = vadd.f32 %v2558, %v2592
  %v2609 = vadd.f32 %v2559, %v2593
  %v2610 = vadd.f32 %v2560, %v2594
  %v2611 = vadd.f32 %v2561, %v2595
  %v2612 = vld [vmem:[%s2411 + $0x4] sm:$0xff]
  %v2613 = vld [vmem:[%s2411 + $0xc] sm:$0xff]
  %v2614 = vld [vmem:[%s2411 + $0x1c] sm:$0xff]
  %v2615 = vld [vmem:[%s2411 + $0x24] sm:$0xff]
  %v2616 = vld [vmem:[%s2411 + $0x34] sm:$0xff]
  %v2617 = vld [vmem:[%s2411 + $0x3c] sm:$0xff]
  %v2618 = vld [vmem:[%s2411 + $0x4c] sm:$0xff]
  %v2619 = vld [vmem:[%s2411 + $0x54] sm:$0xff]
  %v2620 = vld [vmem:[%s2411 + $0x64] sm:$0xff]
  %v2621 = vld [vmem:[%s2411 + $0x6c] sm:$0xff]
  %v2622 = vld [vmem:[%s2411 + $0x7c] sm:$0xff]
  %v2623 = vld [vmem:[%s2411 + $0x84] sm:$0xff]
  %v2624 = vld [vmem:[%s2411 + $0x94] sm:$0xff]
  %v2625 = vld [vmem:[%s2411 + $0x9c] sm:$0xff]
  %v2626 = vld [vmem:[%s2411 + $0xac] sm:$0xff]
  %v2627 = vld [vmem:[%s2411 + $0xb4] sm:$0xff]
  %v2628 = vld [vmem:[%s0 + $0x18] sm:$0x1]
  %v2629 = vperm.slane %v2628, 0
  %v2630 = vmul.f32 %v2612, %v2629
  %v2631 = vmul.f32 %v2613, %v2629
  %v2632 = vmul.f32 %v2614, %v2629
  %v2633 = vmul.f32 %v2615, %v2629
  %v2634 = vmul.f32 %v2616, %v2629
  %v2635 = vmul.f32 %v2617, %v2629
  %v2636 = vmul.f32 %v2618, %v2629
  %v2637 = vmul.f32 %v2619, %v2629
  %v2638 = vmul.f32 %v2620, %v2629
  %v2639 = vmul.f32 %v2621, %v2629
  %v2640 = vmul.f32 %v2622, %v2629
  %v2641 = vmul.f32 %v2623, %v2629
  %v2642 = vmul.f32 %v2624, %v2629
  %v2643 = vmul.f32 %v2625, %v2629
  %v2644 = vmul.f32 %v2626, %v2629
  %v2645 = vmul.f32 %v2627, %v2629
  %v2646 = vadd.f32 %v2596, %v2630
  %v2647 = vadd.f32 %v2597, %v2631
  %v2648 = vadd.f32 %v2598, %v2632
  %v2649 = vadd.f32 %v2599, %v2633
  %v2650 = vadd.f32 %v2600, %v2634
  %v2651 = vadd.f32 %v2601, %v2635
  %v2652 = vadd.f32 %v2602, %v2636
  %v2653 = vadd.f32 %v2603, %v2637
  %v2654 = vadd.f32 %v2604, %v2638
  %v2655 = vadd.f32 %v2605, %v2639
  %v2656 = vadd.f32 %v2606, %v2640
  %v2657 = vadd.f32 %v2607, %v2641
  %v2658 = vadd.f32 %v2608, %v2642
  %v2659 = vadd.f32 %v2609, %v2643
  %v2660 = vadd.f32 %v2610, %v2644
  %v2661 = vadd.f32 %v2611, %v2645
  %s2662 = scalar_lea.vmem %s2, 128
  %2663 = vst.msk [vmem:[%s2662] sm:$0xff] %vm11, %v2646
  %2664 = vst.msk [vmem:[%s2662 + $0x8] sm:$0xff] %vm11, %v2647
  %2665 = vst.msk [vmem:[%s2662 + $0x10] sm:$0xff] %vm11, %v2648
  %2666 = vst.msk [vmem:[%s2662 + $0x18] sm:$0xff] %vm11, %v2649
  %2667 = vst.msk [vmem:[%s2662 + $0x20] sm:$0xff] %vm11, %v2650
  %2668 = vst.msk [vmem:[%s2662 + $0x28] sm:$0xff] %vm11, %v2651
  %2669 = vst.msk [vmem:[%s2662 + $0x30] sm:$0xff] %vm11, %v2652
  %2670 = vst.msk [vmem:[%s2662 + $0x38] sm:$0xff] %vm11, %v2653
  %2671 = vst.msk [vmem:[%s2662 + $0x40] sm:$0xff] %vm11, %v2654
  %2672 = vst.msk [vmem:[%s2662 + $0x48] sm:$0xff] %vm11, %v2655
  %2673 = vst.msk [vmem:[%s2662 + $0x50] sm:$0xff] %vm11, %v2656
  %2674 = vst.msk [vmem:[%s2662 + $0x58] sm:$0xff] %vm11, %v2657
  %2675 = vst.msk [vmem:[%s2662 + $0x60] sm:$0xff] %vm11, %v2658
  %2676 = vst.msk [vmem:[%s2662 + $0x68] sm:$0xff] %vm11, %v2659
  %2677 = vst.msk [vmem:[%s2662 + $0x70] sm:$0xff] %vm11, %v2660
  %2678 = vst.msk [vmem:[%s2662 + $0x78] sm:$0xff] %vm11, %v2661
  // Predicated region
  $region10: #{tpu_custom_call.1} parent=0 // pred_check
    _
  $region11: #{tpu_custom_call.1} parent=0 // pred_check_branch
    %2680 = sbr.rel (0) target = $region13
  $region12: #{tpu_custom_call.1} parent=0 // pred_region
    _
  $region13: #{tpu_custom_call.1} parent=0 // pred_fallthru
    _
  // Predicated region
  $region14: #{tpu_custom_call.1} parent=0 // pred_check
    _
  $region15: #{tpu_custom_call.1} parent=0 // pred_check_branch
    %2682 = sbr.rel (0) target = $region17
  $region16: #{tpu_custom_call.1} parent=0 // pred_region
    _
  $region17: #{tpu_custom_call.1} parent=0 // pred_fallthru
    _

</llo_original>
